<compile_context>
chip_gen: v6e
topology: v6e:2x2x1
jax: 0.10.0
libtpu: 0.0.40
codegen_flags: <defaults>
</compile_context>

<pallas_src>
import functools

import jax
import jax.numpy as jnp
from jax.experimental import pallas as pl
from jax.experimental.pallas import tpu as pltpu

_VMEM = pltpu.MemorySpace.VMEM
_EPS = 1e-5
_VMEM_LIMIT = 32 * 1024 * 1024   # explicit scoped-VMEM cap, valid on v5e/v6e/v7x


def _vspec():
    return pl.BlockSpec(memory_space=_VMEM)


def _cparams():
    return pltpu.CompilerParams(vmem_limit_bytes=_VMEM_LIMIT)


def _gelu(x):
    # exact (erf-based) GELU, matching torch.nn.GELU() default
    return 0.5 * x * (1.0 + jax.lax.erf(x * 0.7071067811865476))


# ---------------------------------------------------------------------------
# Kernel 1: patch embed = im2col matmul (bf16 MXU) + bias + GELU + BN(train)
# ---------------------------------------------------------------------------
def embed_kernel(p_ref, w_ref, b_ref, g_ref, be_ref, o_ref):
    y = jnp.dot(p_ref[...], w_ref[...], preferred_element_type=jnp.float32)
    y = _gelu(y + b_ref[...])
    mean = jnp.mean(y, axis=0, keepdims=True)
    var = jnp.mean((y - mean) ** 2, axis=0, keepdims=True)
    o_ref[...] = (y - mean) * jax.lax.rsqrt(var + _EPS) * g_ref[...] + be_ref[...]


def patch_embed(patches_bf16, w_bf16, b, g, be):
    M = patches_bf16.shape[0]
    N = w_bf16.shape[1]
    return pl.pallas_call(
        embed_kernel,
        out_shape=jax.ShapeDtypeStruct((M, N), jnp.float32),
        in_specs=[_vspec()] * 5,
        out_specs=_vspec(),
        compiler_params=_cparams(),
    )(patches_bf16, w_bf16, b, g, be)


# ---------------------------------------------------------------------------
# Kernel 2: one fused ConvMixer block
#   Residual( depthwise kxk 'same' conv + GELU + BN ) followed by the
#   pointwise 1x1 conv with padding=1 + GELU + BN, in a single pallas_call.
#   Zero padding is built in VMEM; border rows of the pointwise conv are
#   handled analytically (exact) so the matmul only runs on interior rows.
# ---------------------------------------------------------------------------
def fused_block_kernel(x_ref, wdw_ref, bdw_ref, g1_ref, be1_ref,
                       wpw_ref, bpw_ref, g2_ref, be2_ref, o_ref, *, k, H, W):
    p = (k - 1) // 2
    x = x_ref[...]                                    # (B, H, W, C) f32
    B = x.shape[0]
    C = x.shape[3]

    # ---- depthwise kxk conv, 'same' zero padding handled in VMEM ----------
    if p > 0:
        zw = jnp.zeros((B, H, p, C), jnp.float32)
        zh = jnp.zeros((B, p, W, C), jnp.float32)
        xpw = jnp.concatenate([zw, x, zw], axis=2)    # (B, H, W+2p, C)
    else:
        xpw = x
    cols = []
    for kx in range(k):                               # only k W-shifted copies
        s = xpw[:, :, kx:kx + W, :]                   # (B, H, W, C)
        if p > 0:
            s = jnp.concatenate([zh, s, zh], axis=1)  # H zero pad (cheap axis)
        cols.append(s)                                # (B, H+2p, W, C)

    acc = jnp.zeros((B, H, W, C), jnp.float32)
    for ky in range(k):
        for kx in range(k):
            tap = cols[kx][:, ky:ky + H, :, :]        # cheap non-tiled-axis slice
            acc = acc + tap * wdw_ref[ky * k + kx, :][None, None, None, :]

    # ---- GELU + BN(train) + residual (f32 VPU/EUP math) --------------------
    M1 = B * H * W
    y = _gelu(acc.reshape(M1, C) + bdw_ref[...])
    m1 = jnp.mean(y, axis=0, keepdims=True)
    v1 = jnp.mean((y - m1) ** 2, axis=0, keepdims=True)
    x1 = ((y - m1) * jax.lax.rsqrt(v1 + _EPS) * g1_ref[...] + be1_ref[...]
          + x.reshape(M1, C))                         # residual, (M1, C)

    # ---- pointwise 1x1 conv with padding=1 + GELU + BN(train) --------------
    Ho, Wo = H + 2, W + 2
    n_tot = B * Ho * Wo
    n_brd = n_tot - M1

    y2 = jnp.dot(x1.astype(jnp.bfloat16), wpw_ref[...],
                 preferred_element_type=jnp.float32)  # bf16 MXU, f32 acc
    y2 = _gelu(y2 + bpw_ref[...])                     # (M1, C) interior rows
    yb = _gelu(bpw_ref[...])                          # (1, C) border-row value

    m2 = (jnp.sum(y2, axis=0, keepdims=True) + n_brd * yb) / n_tot
    d = y2 - m2
    db = yb - m2
    v2 = (jnp.sum(d * d, axis=0, keepdims=True) + n_brd * (db * db)) / n_tot
    inv = jax.lax.rsqrt(v2 + _EPS)
    out_int = (d * inv * g2_ref[...] + be2_ref[...]).reshape(B, H, W, C)
    out_brd = db * inv * g2_ref[...] + be2_ref[...]   # (1, C)

    # ---- assemble padded output, single lane-dense full store --------------
    bcol = jnp.broadcast_to(out_brd, (B, H, 1, C))
    rows = jnp.concatenate([bcol, out_int, bcol], axis=2)      # (B, H, Wo, C)
    brow = jnp.broadcast_to(out_brd, (B, 1, Wo, C))
    o_ref[...] = jnp.concatenate([brow, rows, brow], axis=1)   # (B, Ho, Wo, C)


def fused_block(x, blk, k):
    B, H, W, C = x.shape
    kern = functools.partial(fused_block_kernel, k=k, H=H, W=W)
    return pl.pallas_call(
        kern,
        out_shape=jax.ShapeDtypeStruct((B, H + 2, W + 2, C), jnp.float32),
        in_specs=[_vspec()] * 9,
        out_specs=_vspec(),
        compiler_params=_cparams(),
    )(x, blk['dw_w'], blk['dw_b'], blk['bn1_g'], blk['bn1_b'],
      blk['pw_w'], blk['pw_b'], blk['bn2_g'], blk['bn2_b'])


# ---------------------------------------------------------------------------
# Kernel 3: fused pooling (channel-mean gap + spatial-mean feature) + MLP head
# ---------------------------------------------------------------------------
def pool_head_kernel(x_ref, w1_ref, b1_ref, w2_ref, b2_ref, w3_ref, b3_ref,
                     out_ref, gap_ref, feat_ref):
    x = x_ref[...]                                    # (B, Hf, Wf, C)
    B, Hf, Wf, C = x.shape
    x3 = x.reshape(B, Hf * Wf, C)
    feat = jnp.mean(x3, axis=1)                       # (B, C)  spatial mean
    feat_ref[...] = feat
    gap_ref[...] = jnp.mean(x3, axis=2)               # (B, Hf*Wf) lane-dense
    h = jnp.dot(feat, w1_ref[...], preferred_element_type=jnp.float32) + b1_ref[...]
    h = jnp.dot(h, w2_ref[...], preferred_element_type=jnp.float32) + b2_ref[...]
    out_ref[...] = jnp.dot(h, w3_ref[...], preferred_element_type=jnp.float32) + b3_ref[...]


def pool_and_head(x, prm):
    B, Hf, Wf, C = x.shape
    ncls = prm['fc3_w'].shape[1]
    out, gap_flat, feat = pl.pallas_call(
        pool_head_kernel,
        out_shape=(jax.ShapeDtypeStruct((B, ncls), jnp.float32),
                   jax.ShapeDtypeStruct((B, Hf * Wf), jnp.float32),
                   jax.ShapeDtypeStruct((B, C), jnp.float32)),
        in_specs=[_vspec()] * 7,
        out_specs=(_vspec(), _vspec(), _vspec()),
        compiler_params=_cparams(),
    )(x, prm['fc1_w'], prm['fc1_b'], prm['fc2_w'], prm['fc2_b'],
      prm['fc3_w'], prm['fc3_b'])
    return out, gap_flat.reshape(B, Hf, Wf), feat


# ---------------------------------------------------------------------------
# Full forward (glue: im2col + reshapes in plain JAX, all under one jit)
# ---------------------------------------------------------------------------
def patch_convmix_convnext_forward(x_nchw, params, *, dim, kernel_size, patch_size):
    B, Cin, H, W = x_nchw.shape
    P = patch_size
    Hp, Wp = H // P, W // P

    # patch-embed conv(k=P, stride=P) as im2col; cast operands to bf16 for MXU.
    patches = (x_nchw.reshape(B, Cin, Hp, P, Wp, P)
               .transpose(0, 2, 4, 1, 3, 5)
               .reshape(B * Hp * Wp, Cin * P * P)).astype(jnp.bfloat16)
    y = patch_embed(patches, params['embed_w'], params['embed_b'],
                    params['embed_g'], params['embed_be'])
    x = y.reshape(B, Hp, Wp, dim)                     # NHWC

    for blk in params['blocks']:
        x = fused_block(x, blk, kernel_size)

    output, gap, feature_out = pool_and_head(x, params)
    return output, gap, feature_out


forward = jax.jit(patch_convmix_convnext_forward,
                  static_argnames=('dim', 'kernel_size', 'patch_size'))


# ---------------------------------------------------------------------------
# Parameters: generated in PyTorch layout, converted once to kernel layout
# ---------------------------------------------------------------------------
def init_params(key, dim, depth, k, P, n_classes, cin=3):
    keys = iter(jax.random.split(key, 16 + 8 * depth))

    def rn(shape, scale):
        return jax.random.normal(next(keys), shape, jnp.float32) * scale

    params = {
        'embed_w': rn((dim, cin, P, P), 1.0 / (cin * P * P) ** 0.5),
        'embed_b': rn((dim,), 0.1),
        'embed_g': 1.0 + rn((dim,), 0.1),
        'embed_be': rn((dim,), 0.1),
        'blocks': [],
    }
    for _ in range(depth):
        params['blocks'].append({
            'dw_w': rn((dim, 1, k, k), 1.0 / (k * k) ** 0.5),
            'dw_b': rn((dim,), 0.1),
            'bn1_g': 1.0 + rn((dim,), 0.1),
            'bn1_b': rn((dim,), 0.1),
            'pw_w': rn((dim, dim, 1, 1), 1.0 / dim ** 0.5),
            'pw_b': rn((dim,), 0.1),
            'bn2_g': 1.0 + rn((dim,), 0.1),
            'bn2_b': rn((dim,), 0.1),
        })
    # fc1 hard-coded to in_features=256 in the PyTorch module (requires dim==256)
    params['fc1_w'] = rn((64, 256), 1.0 / 16.0)
    params['fc1_b'] = rn((64,), 0.1)
    params['fc2_w'] = rn((16, 64), 1.0 / 8.0)
    params['fc2_b'] = rn((16,), 0.1)
    params['fc3_w'] = rn((n_classes, 16), 0.25)
    params['fc3_b'] = rn((n_classes,), 0.1)
    return params


def prepare_params(p, dim, k, cin, P):
    """One-time conversion of PyTorch-layout weights into kernel layout
    (transposed, reshaped, bias rows, MXU operands pre-cast to bf16)."""
    prep = {
        'embed_w': p['embed_w'].reshape(dim, cin * P * P).T.astype(jnp.bfloat16),
        'embed_b': p['embed_b'].reshape(1, dim),
        'embed_g': p['embed_g'].reshape(1, dim),
        'embed_be': p['embed_be'].reshape(1, dim),
        'blocks': [],
        'fc1_w': p['fc1_w'].T, 'fc1_b': p['fc1_b'].reshape(1, -1),
        'fc2_w': p['fc2_w'].T, 'fc2_b': p['fc2_b'].reshape(1, -1),
        'fc3_w': p['fc3_w'].T, 'fc3_b': p['fc3_b'].reshape(1, -1),
    }
    for blk in p['blocks']:
        prep['blocks'].append({
            'dw_w': blk['dw_w'].reshape(dim, k * k).T,                 # (k*k, dim) f32
            'dw_b': blk['dw_b'].reshape(1, dim),
            'bn1_g': blk['bn1_g'].reshape(1, dim),
            'bn1_b': blk['bn1_b'].reshape(1, dim),
            'pw_w': blk['pw_w'].reshape(dim, dim).T.astype(jnp.bfloat16),  # (in,out) bf16
            'pw_b': blk['pw_b'].reshape(1, dim),
            'bn2_g': blk['bn2_g'].reshape(1, dim),
            'bn2_b': blk['bn2_b'].reshape(1, dim),
        })
    return prep


if __name__ == "__main__":
    DIM, DEPTH, KSIZE, PATCH, NCLS = 256, 2, 3, 8, 2   # dim=256 forced by fc1(256, 64)
    key = jax.random.PRNGKey(0)
    k_x, k_p = jax.random.split(key)
    x = jax.random.normal(k_x, (2, 3, 32, 32), jnp.float32)   # NCHW like PyTorch
    params = prepare_params(init_params(k_p, DIM, DEPTH, KSIZE, PATCH, NCLS),
                            DIM, KSIZE, 3, PATCH)

    output, gap, feature_out = forward(
        x, params, dim=DIM, kernel_size=KSIZE, patch_size=PATCH)
    jax.tree_util.tree_map(jax.block_until_ready, (output, gap, feature_out))

    # spatial: 32/8=4 patches -> +2 per block over 2 blocks -> 8x8
    assert output.shape == (2, NCLS)
    assert gap.shape == (2, 8, 8)
    assert feature_out.shape == (2, DIM)
    assert all(bool(jnp.all(jnp.isfinite(t))) for t in (output, gap, feature_out))
    print("KERNEL_OK")
</pallas_src>

<mosaic_0001>
module attributes {stable_mosaic.version = 11 : i64} {
  func.func @embed_kernel(%arg0: memref<32x192xbf16, #tpu.memory_space<vmem>>, %arg1: memref<192x256xbf16, #tpu.memory_space<vmem>>, %arg2: memref<1x256xf32, #tpu.memory_space<vmem>>, %arg3: memref<1x256xf32, #tpu.memory_space<vmem>>, %arg4: memref<1x256xf32, #tpu.memory_space<vmem>>, %arg5: memref<32x256xf32, #tpu.memory_space<vmem>>) attributes {dimension_semantics = [], scalar_prefetch = 0 : i64, scratch_operands = 0 : i64, tpu.core_type = #tpu.core_type<tc>} {
    %c0 = arith.constant 0 : index
    %c0_0 = arith.constant 0 : index
    %0 = vector.load %arg0[%c0, %c0_0] : memref<32x192xbf16, #tpu.memory_space<vmem>>, vector<32x192xbf16>
    %c0_1 = arith.constant 0 : index
    %c0_2 = arith.constant 0 : index
    %1 = vector.load %arg1[%c0_1, %c0_2] : memref<192x256xbf16, #tpu.memory_space<vmem>>, vector<192x256xbf16>
    %cst = arith.constant dense<0.000000e+00> : vector<32x256xf32>
    %2 = tpu.matmul %0, %1, %cst {dimension_numbers = #tpu.dot_dimension_numbers<[1], [0], [0], [1], [0, 0, 1, 1], [], []>} : vector<32x192xbf16>, vector<192x256xbf16>, vector<32x256xf32> -> vector<32x256xf32>
    %c0_3 = arith.constant 0 : index
    %c0_4 = arith.constant 0 : index
    %3 = vector.load %arg2[%c0_3, %c0_4] : memref<1x256xf32, #tpu.memory_space<vmem>>, vector<1x256xf32>
    %4 = vector.broadcast %3 : vector<1x256xf32> to vector<32x256xf32>
    %5 = arith.addf %2, %4 : vector<32x256xf32>
    %cst_5 = arith.constant 5.000000e-01 : f32
    %6 = vector.broadcast %cst_5 : f32 to vector<32x256xf32>
    %7 = arith.mulf %6, %5 : vector<32x256xf32>
    %cst_6 = arith.constant 0.707106769 : f32
    %8 = vector.broadcast %cst_6 : f32 to vector<32x256xf32>
    %9 = arith.mulf %5, %8 : vector<32x256xf32>
    %10 = math.erf %9 : vector<32x256xf32>
    %cst_7 = arith.constant 1.000000e+00 : f32
    %11 = vector.broadcast %cst_7 : f32 to vector<32x256xf32>
    %12 = arith.addf %11, %10 : vector<32x256xf32>
    %13 = arith.mulf %7, %12 : vector<32x256xf32>
    %cst_8 = arith.constant dense<0.000000e+00> : vector<256xf32>
    %14 = vector.multi_reduction <add>, %13, %cst_8 [0] : vector<32x256xf32> to vector<256xf32>
    %15 = vector.shape_cast %14 : vector<256xf32> to vector<1x256xf32>
    %cst_9 = arith.constant 3.200000e+01 : f32
    %16 = vector.broadcast %cst_9 : f32 to vector<1x256xf32>
    %17 = arith.divf %15, %16 : vector<1x256xf32>
    %18 = vector.broadcast %17 : vector<1x256xf32> to vector<32x256xf32>
    %19 = arith.subf %13, %18 : vector<32x256xf32>
    %20 = arith.mulf %19, %19 : vector<32x256xf32>
    %cst_10 = arith.constant dense<0.000000e+00> : vector<256xf32>
    %21 = vector.multi_reduction <add>, %20, %cst_10 [0] : vector<32x256xf32> to vector<256xf32>
    %22 = vector.shape_cast %21 : vector<256xf32> to vector<1x256xf32>
    %cst_11 = arith.constant 3.200000e+01 : f32
    %23 = vector.broadcast %cst_11 : f32 to vector<1x256xf32>
    %24 = arith.divf %22, %23 : vector<1x256xf32>
    %25 = vector.broadcast %17 : vector<1x256xf32> to vector<32x256xf32>
    %26 = arith.subf %13, %25 : vector<32x256xf32>
    %cst_12 = arith.constant 9.99999974E-6 : f32
    %27 = vector.broadcast %cst_12 : f32 to vector<1x256xf32>
    %28 = arith.addf %24, %27 : vector<1x256xf32>
    %29 = math.rsqrt %28 : vector<1x256xf32>
    %30 = vector.broadcast %29 : vector<1x256xf32> to vector<32x256xf32>
    %31 = arith.mulf %26, %30 : vector<32x256xf32>
    %c0_13 = arith.constant 0 : index
    %c0_14 = arith.constant 0 : index
    %32 = vector.load %arg3[%c0_13, %c0_14] : memref<1x256xf32, #tpu.memory_space<vmem>>, vector<1x256xf32>
    %33 = vector.broadcast %32 : vector<1x256xf32> to vector<32x256xf32>
    %34 = arith.mulf %31, %33 : vector<32x256xf32>
    %c0_15 = arith.constant 0 : index
    %c0_16 = arith.constant 0 : index
    %35 = vector.load %arg4[%c0_15, %c0_16] : memref<1x256xf32, #tpu.memory_space<vmem>>, vector<1x256xf32>
    %36 = vector.broadcast %35 : vector<1x256xf32> to vector<32x256xf32>
    %37 = arith.addf %34, %36 : vector<32x256xf32>
    %c0_17 = arith.constant 0 : index
    %c0_18 = arith.constant 0 : index
    %38 = vector.load %arg5[%c0_17, %c0_18] : memref<32x256xf32, #tpu.memory_space<vmem>>, vector<32x256xf32>
    tpu.vector_store %arg5[%c0_17, %c0_18], %37 {strides = array<i32>} : memref<32x256xf32, #tpu.memory_space<vmem>>, vector<32x256xf32>,
    return
  }
}

module attributes {stable_mosaic.version = 11 : i64} {
  func.func @fused_block_kernel(%arg0: memref<2x6x6x256xf32, #tpu.memory_space<vmem>>, %arg1: memref<9x256xf32, #tpu.memory_space<vmem>>, %arg2: memref<1x256xf32, #tpu.memory_space<vmem>>, %arg3: memref<1x256xf32, #tpu.memory_space<vmem>>, %arg4: memref<1x256xf32, #tpu.memory_space<vmem>>, %arg5: memref<256x256xbf16, #tpu.memory_space<vmem>>, %arg6: memref<1x256xf32, #tpu.memory_space<vmem>>, %arg7: memref<1x256xf32, #tpu.memory_space<vmem>>, %arg8: memref<1x256xf32, #tpu.memory_space<vmem>>, %arg9: memref<2x8x8x256xf32, #tpu.memory_space<vmem>>) attributes {dimension_semantics = [], scalar_prefetch = 0 : i64, scratch_operands = 0 : i64, tpu.core_type = #tpu.core_type<tc>} {
    %c0 = arith.constant 0 : index
    %c0_0 = arith.constant 0 : index
    %c0_1 = arith.constant 0 : index
    %c0_2 = arith.constant 0 : index
    %0 = vector.load %arg0[%c0, %c0_0, %c0_1, %c0_2] : memref<2x6x6x256xf32, #tpu.memory_space<vmem>>, vector<2x6x6x256xf32>
    %cst = arith.constant 0.000000e+00 : f32
    %1 = vector.broadcast %cst : f32 to vector<2x6x1x256xf32>
    %cst_3 = arith.constant 0.000000e+00 : f32
    %2 = vector.broadcast %cst_3 : f32 to vector<2x1x6x256xf32>
    %3 = tpu.concatenate %1, %0, %1 in 2 : vector<2x6x1x256xf32>, vector<2x6x6x256xf32>, vector<2x6x1x256xf32> -> vector<2x6x8x256xf32>
    %4 = vector.extract_strided_slice %3 {offsets = [0, 0, 0, 0], sizes = [2, 6, 6, 256], strides = [1, 1, 1, 1]} : vector<2x6x8x256xf32> to vector<2x6x6x256xf32>
    %5 = tpu.concatenate %2, %4, %2 in 1 : vector<2x1x6x256xf32>, vector<2x6x6x256xf32>, vector<2x1x6x256xf32> -> vector<2x8x6x256xf32>
    %6 = vector.extract_strided_slice %3 {offsets = [0, 0, 1, 0], sizes = [2, 6, 6, 256], strides = [1, 1, 1, 1]} : vector<2x6x8x256xf32> to vector<2x6x6x256xf32>
    %7 = tpu.concatenate %2, %6, %2 in 1 : vector<2x1x6x256xf32>, vector<2x6x6x256xf32>, vector<2x1x6x256xf32> -> vector<2x8x6x256xf32>
    %8 = vector.extract_strided_slice %3 {offsets = [0, 0, 2, 0], sizes = [2, 6, 6, 256], strides = [1, 1, 1, 1]} : vector<2x6x8x256xf32> to vector<2x6x6x256xf32>
    %9 = tpu.concatenate %2, %8, %2 in 1 : vector<2x1x6x256xf32>, vector<2x6x6x256xf32>, vector<2x1x6x256xf32> -> vector<2x8x6x256xf32>
    %cst_4 = arith.constant 0.000000e+00 : f32
    %10 = vector.broadcast %cst_4 : f32 to vector<2x6x6x256xf32>
    %11 = vector.extract_strided_slice %5 {offsets = [0, 0, 0, 0], sizes = [2, 6, 6, 256], strides = [1, 1, 1, 1]} : vector<2x8x6x256xf32> to vector<2x6x6x256xf32>
    %c0_5 = arith.constant 0 : index
    %c0_6 = arith.constant 0 : index
    %12 = vector.load %arg1[%c0_5, %c0_6] : memref<9x256xf32, #tpu.memory_space<vmem>>, vector<1x256xf32>
    %13 = vector.shape_cast %12 : vector<1x256xf32> to vector<256xf32>
    %14 = vector.shape_cast %13 : vector<256xf32> to vector<1x1x1x256xf32>
    %15 = vector.broadcast %14 : vector<1x1x1x256xf32> to vector<2x6x6x256xf32>
    %16 = arith.mulf %11, %15 : vector<2x6x6x256xf32>
    %17 = arith.addf %10, %16 : vector<2x6x6x256xf32>
    %18 = vector.extract_strided_slice %7 {offsets = [0, 0, 0, 0], sizes = [2, 6, 6, 256], strides = [1, 1, 1, 1]} : vector<2x8x6x256xf32> to vector<2x6x6x256xf32>
    %c1 = arith.constant 1 : index
    %c0_7 = arith.constant 0 : index
    %19 = vector.load %arg1[%c1, %c0_7] : memref<9x256xf32, #tpu.memory_space<vmem>>, vector<1x256xf32>
    %20 = vector.shape_cast %19 : vector<1x256xf32> to vector<256xf32>
    %21 = vector.shape_cast %20 : vector<256xf32> to vector<1x1x1x256xf32>
    %22 = vector.broadcast %21 : vector<1x1x1x256xf32> to vector<2x6x6x256xf32>
    %23 = arith.mulf %18, %22 : vector<2x6x6x256xf32>
    %24 = arith.addf %17, %23 : vector<2x6x6x256xf32>
    %25 = vector.extract_strided_slice %9 {offsets = [0, 0, 0, 0], sizes = [2, 6, 6, 256], strides = [1, 1, 1, 1]} : vector<2x8x6x256xf32> to vector<2x6x6x256xf32>
    %c2 = arith.constant 2 : index
    %c0_8 = arith.constant 0 : index
    %26 = vector.load %arg1[%c2, %c0_8] : memref<9x256xf32, #tpu.memory_space<vmem>>, vector<1x256xf32>
    %27 = vector.shape_cast %26 : vector<1x256xf32> to vector<256xf32>
    %28 = vector.shape_cast %27 : vector<256xf32> to vector<1x1x1x256xf32>
    %29 = vector.broadcast %28 : vector<1x1x1x256xf32> to vector<2x6x6x256xf32>
    %30 = arith.mulf %25, %29 : vector<2x6x6x256xf32>
    %31 = arith.addf %24, %30 : vector<2x6x6x256xf32>
    %32 = vector.extract_strided_slice %5 {offsets = [0, 1, 0, 0], sizes = [2, 6, 6, 256], strides = [1, 1, 1, 1]} : vector<2x8x6x256xf32> to vector<2x6x6x256xf32>
    %c3 = arith.constant 3 : index
    %c0_9 = arith.constant 0 : index
    %33 = vector.load %arg1[%c3, %c0_9] : memref<9x256xf32, #tpu.memory_space<vmem>>, vector<1x256xf32>
    %34 = vector.shape_cast %33 : vector<1x256xf32> to vector<256xf32>
    %35 = vector.shape_cast %34 : vector<256xf32> to vector<1x1x1x256xf32>
    %36 = vector.broadcast %35 : vector<1x1x1x256xf32> to vector<2x6x6x256xf32>
    %37 = arith.mulf %32, %36 : vector<2x6x6x256xf32>
    %38 = arith.addf %31, %37 : vector<2x6x6x256xf32>
    %39 = vector.extract_strided_slice %7 {offsets = [0, 1, 0, 0], sizes = [2, 6, 6, 256], strides = [1, 1, 1, 1]} : vector<2x8x6x256xf32> to vector<2x6x6x256xf32>
    %c4 = arith.constant 4 : index
    %c0_10 = arith.constant 0 : index
    %40 = vector.load %arg1[%c4, %c0_10] : memref<9x256xf32, #tpu.memory_space<vmem>>, vector<1x256xf32>
    %41 = vector.shape_cast %40 : vector<1x256xf32> to vector<256xf32>
    %42 = vector.shape_cast %41 : vector<256xf32> to vector<1x1x1x256xf32>
    %43 = vector.broadcast %42 : vector<1x1x1x256xf32> to vector<2x6x6x256xf32>
    %44 = arith.mulf %39, %43 : vector<2x6x6x256xf32>
    %45 = arith.addf %38, %44 : vector<2x6x6x256xf32>
    %46 = vector.extract_strided_slice %9 {offsets = [0, 1, 0, 0], sizes = [2, 6, 6, 256], strides = [1, 1, 1, 1]} : vector<2x8x6x256xf32> to vector<2x6x6x256xf32>
    %c5 = arith.constant 5 : index
    %c0_11 = arith.constant 0 : index
    %47 = vector.load %arg1[%c5, %c0_11] : memref<9x256xf32, #tpu.memory_space<vmem>>, vector<1x256xf32>
    %48 = vector.shape_cast %47 : vector<1x256xf32> to vector<256xf32>
    %49 = vector.shape_cast %48 : vector<256xf32> to vector<1x1x1x256xf32>
    %50 = vector.broadcast %49 : vector<1x1x1x256xf32> to vector<2x6x6x256xf32>
    %51 = arith.mulf %46, %50 : vector<2x6x6x256xf32>
    %52 = arith.addf %45, %51 : vector<2x6x6x256xf32>
    %53 = vector.extract_strided_slice %5 {offsets = [0, 2, 0, 0], sizes = [2, 6, 6, 256], strides = [1, 1, 1, 1]} : vector<2x8x6x256xf32> to vector<2x6x6x256xf32>
    %c6 = arith.constant 6 : index
    %c0_12 = arith.constant 0 : index
    %54 = vector.load %arg1[%c6, %c0_12] : memref<9x256xf32, #tpu.memory_space<vmem>>, vector<1x256xf32>
    %55 = vector.shape_cast %54 : vector<1x256xf32> to vector<256xf32>
    %56 = vector.shape_cast %55 : vector<256xf32> to vector<1x1x1x256xf32>
    %57 = vector.broadcast %56 : vector<1x1x1x256xf32> to vector<2x6x6x256xf32>
    %58 = arith.mulf %53, %57 : vector<2x6x6x256xf32>
    %59 = arith.addf %52, %58 : vector<2x6x6x256xf32>
    %60 = vector.extract_strided_slice %7 {offsets = [0, 2, 0, 0], sizes = [2, 6, 6, 256], strides = [1, 1, 1, 1]} : vector<2x8x6x256xf32> to vector<2x6x6x256xf32>
    %c7 = arith.constant 7 : index
    %c0_13 = arith.constant 0 : index
    %61 = vector.load %arg1[%c7, %c0_13] : memref<9x256xf32, #tpu.memory_space<vmem>>, vector<1x256xf32>
    %62 = vector.shape_cast %61 : vector<1x256xf32> to vector<256xf32>
    %63 = vector.shape_cast %62 : vector<256xf32> to vector<1x1x1x256xf32>
    %64 = vector.broadcast %63 : vector<1x1x1x256xf32> to vector<2x6x6x256xf32>
    %65 = arith.mulf %60, %64 : vector<2x6x6x256xf32>
    %66 = arith.addf %59, %65 : vector<2x6x6x256xf32>
    %67 = vector.extract_strided_slice %9 {offsets = [0, 2, 0, 0], sizes = [2, 6, 6, 256], strides = [1, 1, 1, 1]} : vector<2x8x6x256xf32> to vector<2x6x6x256xf32>
    %c8 = arith.constant 8 : index
    %c0_14 = arith.constant 0 : index
    %68 = vector.load %arg1[%c8, %c0_14] : memref<9x256xf32, #tpu.memory_space<vmem>>, vector<1x256xf32>
    %69 = vector.shape_cast %68 : vector<1x256xf32> to vector<256xf32>
    %70 = vector.shape_cast %69 : vector<256xf32> to vector<1x1x1x256xf32>
    %71 = vector.broadcast %70 : vector<1x1x1x256xf32> to vector<2x6x6x256xf32>
    %72 = arith.mulf %67, %71 : vector<2x6x6x256xf32>
    %73 = arith.addf %66, %72 : vector<2x6x6x256xf32>
    %74 = vector.shape_cast %73 : vector<2x6x6x256xf32> to vector<72x256xf32>
    %c0_15 = arith.constant 0 : index
    %c0_16 = arith.constant 0 : index
    %75 = vector.load %arg2[%c0_15, %c0_16] : memref<1x256xf32, #tpu.memory_space<vmem>>, vector<1x256xf32>
    %76 = vector.broadcast %75 : vector<1x256xf32> to vector<72x256xf32>
    %77 = arith.addf %74, %76 : vector<72x256xf32>
    %cst_17 = arith.constant 5.000000e-01 : f32
    %78 = vector.broadcast %cst_17 : f32 to vector<72x256xf32>
    %79 = arith.mulf %78, %77 : vector<72x256xf32>
    %cst_18 = arith.constant 0.707106769 : f32
    %80 = vector.broadcast %cst_18 : f32 to vector<72x256xf32>
    %81 = arith.mulf %77, %80 : vector<72x256xf32>
    %82 = math.erf %81 : vector<72x256xf32>
    %cst_19 = arith.constant 1.000000e+00 : f32
    %83 = vector.broadcast %cst_19 : f32 to vector<72x256xf32>
    %84 = arith.addf %83, %82 : vector<72x256xf32>
    %85 = arith.mulf %79, %84 : vector<72x256xf32>
    %cst_20 = arith.constant dense<0.000000e+00> : vector<256xf32>
    %86 = vector.multi_reduction <add>, %85, %cst_20 [0] : vector<72x256xf32> to vector<256xf32>
    %87 = vector.shape_cast %86 : vector<256xf32> to vector<1x256xf32>
    %cst_21 = arith.constant 7.200000e+01 : f32
    %88 = vector.broadcast %cst_21 : f32 to vector<1x256xf32>
    %89 = arith.divf %87, %88 : vector<1x256xf32>
    %90 = vector.broadcast %89 : vector<1x256xf32> to vector<72x256xf32>
    %91 = arith.subf %85, %90 : vector<72x256xf32>
    %92 = arith.mulf %91, %91 : vector<72x256xf32>
    %cst_22 = arith.constant dense<0.000000e+00> : vector<256xf32>
    %93 = vector.multi_reduction <add>, %92, %cst_22 [0] : vector<72x256xf32> to vector<256xf32>
    %94 = vector.shape_cast %93 : vector<256xf32> to vector<1x256xf32>
    %cst_23 = arith.constant 7.200000e+01 : f32
    %95 = vector.broadcast %cst_23 : f32 to vector<1x256xf32>
    %96 = arith.divf %94, %95 : vector<1x256xf32>
    %97 = vector.broadcast %89 : vector<1x256xf32> to vector<72x256xf32>
    %98 = arith.subf %85, %97 : vector<72x256xf32>
    %cst_24 = arith.constant 9.99999974E-6 : f32
    %99 = vector.broadcast %cst_24 : f32 to vector<1x256xf32>
    %100 = arith.addf %96, %99 : vector<1x256xf32>
    %101 = math.rsqrt %100 : vector<1x256xf32>
    %102 = vector.broadcast %101 : vector<1x256xf32> to vector<72x256xf32>
    %103 = arith.mulf %98, %102 : vector<72x256xf32>
    %c0_25 = arith.constant 0 : index
    %c0_26 = arith.constant 0 : index
    %104 = vector.load %arg3[%c0_25, %c0_26] : memref<1x256xf32, #tpu.memory_space<vmem>>, vector<1x256xf32>
    %105 = vector.broadcast %104 : vector<1x256xf32> to vector<72x256xf32>
    %106 = arith.mulf %103, %105 : vector<72x256xf32>
    %c0_27 = arith.constant 0 : index
    %c0_28 = arith.constant 0 : index
    %107 = vector.load %arg4[%c0_27, %c0_28] : memref<1x256xf32, #tpu.memory_space<vmem>>, vector<1x256xf32>
    %108 = vector.broadcast %107 : vector<1x256xf32> to vector<72x256xf32>
    %109 = arith.addf %106, %108 : vector<72x256xf32>
    %110 = vector.shape_cast %0 : vector<2x6x6x256xf32> to vector<72x256xf32>
    %111 = arith.addf %109, %110 : vector<72x256xf32>
    %112 = arith.truncf %111 : vector<72x256xf32> to vector<72x256xbf16>
    %c0_29 = arith.constant 0 : index
    %c0_30 = arith.constant 0 : index
    %113 = vector.load %arg5[%c0_29, %c0_30] : memref<256x256xbf16, #tpu.memory_space<vmem>>, vector<256x256xbf16>
    %cst_31 = arith.constant dense<0.000000e+00> : vector<72x256xf32>
    %114 = tpu.matmul %112, %113, %cst_31 {dimension_numbers = #tpu.dot_dimension_numbers<[1], [0], [0], [1], [0, 0, 1, 1], [], []>} : vector<72x256xbf16>, vector<256x256xbf16>, vector<72x256xf32> -> vector<72x256xf32>
    %c0_32 = arith.constant 0 : index
    %c0_33 = arith.constant 0 : index
    %115 = vector.load %arg6[%c0_32, %c0_33] : memref<1x256xf32, #tpu.memory_space<vmem>>, vector<1x256xf32>
    %116 = vector.broadcast %115 : vector<1x256xf32> to vector<72x256xf32>
    %117 = arith.addf %114, %116 : vector<72x256xf32>
    %cst_34 = arith.constant 5.000000e-01 : f32
    %118 = vector.broadcast %cst_34 : f32 to vector<72x256xf32>
    %119 = arith.mulf %118, %117 : vector<72x256xf32>
    %cst_35 = arith.constant 0.707106769 : f32
    %120 = vector.broadcast %cst_35 : f32 to vector<72x256xf32>
    %121 = arith.mulf %117, %120 : vector<72x256xf32>
    %122 = math.erf %121 : vector<72x256xf32>
    %cst_36 = arith.constant 1.000000e+00 : f32
    %123 = vector.broadcast %cst_36 : f32 to vector<72x256xf32>
    %124 = arith.addf %123, %122 : vector<72x256xf32>
    %125 = arith.mulf %119, %124 : vector<72x256xf32>
    %c0_37 = arith.constant 0 : index
    %c0_38 = arith.constant 0 : index
    %126 = vector.load %arg6[%c0_37, %c0_38] : memref<1x256xf32, #tpu.memory_space<vmem>>, vector<1x256xf32>
    %cst_39 = arith.constant 5.000000e-01 : f32
    %127 = vector.broadcast %cst_39 : f32 to vector<1x256xf32>
    %128 = arith.mulf %127, %126 : vector<1x256xf32>
    %cst_40 = arith.constant 0.707106769 : f32
    %129 = vector.broadcast %cst_40 : f32 to vector<1x256xf32>
    %130 = arith.mulf %126, %129 : vector<1x256xf32>
    %131 = math.erf %130 : vector<1x256xf32>
    %cst_41 = arith.constant 1.000000e+00 : f32
    %132 = vector.broadcast %cst_41 : f32 to vector<1x256xf32>
    %133 = arith.addf %132, %131 : vector<1x256xf32>
    %134 = arith.mulf %128, %133 : vector<1x256xf32>
    %cst_42 = arith.constant dense<0.000000e+00> : vector<256xf32>
    %135 = vector.multi_reduction <add>, %125, %cst_42 [0] : vector<72x256xf32> to vector<256xf32>
    %136 = vector.shape_cast %135 : vector<256xf32> to vector<1x256xf32>
    %cst_43 = arith.constant 5.600000e+01 : f32
    %137 = vector.broadcast %cst_43 : f32 to vector<1x256xf32>
    %138 = arith.mulf %137, %134 : vector<1x256xf32>
    %139 = arith.addf %136, %138 : vector<1x256xf32>
    %cst_44 = arith.constant 1.280000e+02 : f32
    %140 = vector.broadcast %cst_44 : f32 to vector<1x256xf32>
    %141 = arith.divf %139, %140 : vector<1x256xf32>
    %142 = vector.broadcast %141 : vector<1x256xf32> to vector<72x256xf32>
    %143 = arith.subf %125, %142 : vector<72x256xf32>
    %144 = arith.subf %134, %141 : vector<1x256xf32>
    %145 = arith.mulf %143, %143 : vector<72x256xf32>
    %cst_45 = arith.constant dense<0.000000e+00> : vector<256xf32>
    %146 = vector.multi_reduction <add>, %145, %cst_45 [0] : vector<72x256xf32> to vector<256xf32>
    %147 = vector.shape_cast %146 : vector<256xf32> to vector<1x256xf32>
    %148 = arith.mulf %144, %144 : vector<1x256xf32>
    %cst_46 = arith.constant 5.600000e+01 : f32
    %149 = vector.broadcast %cst_46 : f32 to vector<1x256xf32>
    %150 = arith.mulf %149, %148 : vector<1x256xf32>
    %151 = arith.addf %147, %150 : vector<1x256xf32>
    %cst_47 = arith.constant 1.280000e+02 : f32
    %152 = vector.broadcast %cst_47 : f32 to vector<1x256xf32>
    %153 = arith.divf %151, %152 : vector<1x256xf32>
    %cst_48 = arith.constant 9.99999974E-6 : f32
    %154 = vector.broadcast %cst_48 : f32 to vector<1x256xf32>
    %155 = arith.addf %153, %154 : vector<1x256xf32>
    %156 = math.rsqrt %155 : vector<1x256xf32>
    %157 = vector.broadcast %156 : vector<1x256xf32> to vector<72x256xf32>
    %158 = arith.mulf %143, %157 : vector<72x256xf32>
    %c0_49 = arith.constant 0 : index
    %c0_50 = arith.constant 0 : index
    %159 = vector.load %arg7[%c0_49, %c0_50] : memref<1x256xf32, #tpu.memory_space<vmem>>, vector<1x256xf32>
    %160 = vector.broadcast %159 : vector<1x256xf32> to vector<72x256xf32>
    %161 = arith.mulf %158, %160 : vector<72x256xf32>
    %c0_51 = arith.constant 0 : index
    %c0_52 = arith.constant 0 : index
    %162 = vector.load %arg8[%c0_51, %c0_52] : memref<1x256xf32, #tpu.memory_space<vmem>>, vector<1x256xf32>
    %163 = vector.broadcast %162 : vector<1x256xf32> to vector<72x256xf32>
    %164 = arith.addf %161, %163 : vector<72x256xf32>
    %165 = vector.shape_cast %164 : vector<72x256xf32> to vector<2x6x6x256xf32>
    %166 = arith.mulf %144, %156 : vector<1x256xf32>
    %c0_53 = arith.constant 0 : index
    %c0_54 = arith.constant 0 : index
    %167 = vector.load %arg7[%c0_53, %c0_54] : memref<1x256xf32, #tpu.memory_space<vmem>>, vector<1x256xf32>
    %168 = arith.mulf %166, %167 : vector<1x256xf32>
    %c0_55 = arith.constant 0 : index
    %c0_56 = arith.constant 0 : index
    %169 = vector.load %arg8[%c0_55, %c0_56] : memref<1x256xf32, #tpu.memory_space<vmem>>, vector<1x256xf32>
    %170 = arith.addf %168, %169 : vector<1x256xf32>
    %171 = vector.shape_cast %170 : vector<1x256xf32> to vector<1x1x1x256xf32>
    %172 = vector.broadcast %171 : vector<1x1x1x256xf32> to vector<2x6x1x256xf32>
    %173 = tpu.concatenate %172, %165, %172 in 2 : vector<2x6x1x256xf32>, vector<2x6x6x256xf32>, vector<2x6x1x256xf32> -> vector<2x6x8x256xf32>
    %174 = vector.shape_cast %170 : vector<1x256xf32> to vector<1x1x1x256xf32>
    %175 = vector.broadcast %174 : vector<1x1x1x256xf32> to vector<2x1x8x256xf32>
    %176 = tpu.concatenate %175, %173, %175 in 1 : vector<2x1x8x256xf32>, vector<2x6x8x256xf32>, vector<2x1x8x256xf32> -> vector<2x8x8x256xf32>
    %c0_57 = arith.constant 0 : index
    %c0_58 = arith.constant 0 : index
    %c0_59 = arith.constant 0 : index
    %c0_60 = arith.constant 0 : index
    %177 = vector.load %arg9[%c0_57, %c0_58, %c0_59, %c0_60] : memref<2x8x8x256xf32, #tpu.memory_space<vmem>>, vector<2x8x8x256xf32>
    tpu.vector_store %arg9[%c0_57, %c0_58, %c0_59, %c0_60], %176 {strides = array<i32>} : memref<2x8x8x256xf32, #tpu.memory_space<vmem>>, vector<2x8x8x256xf32>,
    return
  }
}

module attributes {stable_mosaic.version = 11 : i64} {
  func.func @fused_block_kernel(%arg0: memref<2x4x4x256xf32, #tpu.memory_space<vmem>>, %arg1: memref<9x256xf32, #tpu.memory_space<vmem>>, %arg2: memref<1x256xf32, #tpu.memory_space<vmem>>, %arg3: memref<1x256xf32, #tpu.memory_space<vmem>>, %arg4: memref<1x256xf32, #tpu.memory_space<vmem>>, %arg5: memref<256x256xbf16, #tpu.memory_space<vmem>>, %arg6: memref<1x256xf32, #tpu.memory_space<vmem>>, %arg7: memref<1x256xf32, #tpu.memory_space<vmem>>, %arg8: memref<1x256xf32, #tpu.memory_space<vmem>>, %arg9: memref<2x6x6x256xf32, #tpu.memory_space<vmem>>) attributes {dimension_semantics = [], scalar_prefetch = 0 : i64, scratch_operands = 0 : i64, tpu.core_type = #tpu.core_type<tc>} {
    %c0 = arith.constant 0 : index
    %c0_0 = arith.constant 0 : index
    %c0_1 = arith.constant 0 : index
    %c0_2 = arith.constant 0 : index
    %0 = vector.load %arg0[%c0, %c0_0, %c0_1, %c0_2] : memref<2x4x4x256xf32, #tpu.memory_space<vmem>>, vector<2x4x4x256xf32>
    %cst = arith.constant 0.000000e+00 : f32
    %1 = vector.broadcast %cst : f32 to vector<2x4x1x256xf32>
    %cst_3 = arith.constant 0.000000e+00 : f32
    %2 = vector.broadcast %cst_3 : f32 to vector<2x1x4x256xf32>
    %3 = tpu.concatenate %1, %0, %1 in 2 : vector<2x4x1x256xf32>, vector<2x4x4x256xf32>, vector<2x4x1x256xf32> -> vector<2x4x6x256xf32>
    %4 = vector.extract_strided_slice %3 {offsets = [0, 0, 0, 0], sizes = [2, 4, 4, 256], strides = [1, 1, 1, 1]} : vector<2x4x6x256xf32> to vector<2x4x4x256xf32>
    %5 = tpu.concatenate %2, %4, %2 in 1 : vector<2x1x4x256xf32>, vector<2x4x4x256xf32>, vector<2x1x4x256xf32> -> vector<2x6x4x256xf32>
    %6 = vector.extract_strided_slice %3 {offsets = [0, 0, 1, 0], sizes = [2, 4, 4, 256], strides = [1, 1, 1, 1]} : vector<2x4x6x256xf32> to vector<2x4x4x256xf32>
    %7 = tpu.concatenate %2, %6, %2 in 1 : vector<2x1x4x256xf32>, vector<2x4x4x256xf32>, vector<2x1x4x256xf32> -> vector<2x6x4x256xf32>
    %8 = vector.extract_strided_slice %3 {offsets = [0, 0, 2, 0], sizes = [2, 4, 4, 256], strides = [1, 1, 1, 1]} : vector<2x4x6x256xf32> to vector<2x4x4x256xf32>
    %9 = tpu.concatenate %2, %8, %2 in 1 : vector<2x1x4x256xf32>, vector<2x4x4x256xf32>, vector<2x1x4x256xf32> -> vector<2x6x4x256xf32>
    %cst_4 = arith.constant 0.000000e+00 : f32
    %10 = vector.broadcast %cst_4 : f32 to vector<2x4x4x256xf32>
    %11 = vector.extract_strided_slice %5 {offsets = [0, 0, 0, 0], sizes = [2, 4, 4, 256], strides = [1, 1, 1, 1]} : vector<2x6x4x256xf32> to vector<2x4x4x256xf32>
    %c0_5 = arith.constant 0 : index
    %c0_6 = arith.constant 0 : index
    %12 = vector.load %arg1[%c0_5, %c0_6] : memref<9x256xf32, #tpu.memory_space<vmem>>, vector<1x256xf32>
    %13 = vector.shape_cast %12 : vector<1x256xf32> to vector<256xf32>
    %14 = vector.shape_cast %13 : vector<256xf32> to vector<1x1x1x256xf32>
    %15 = vector.broadcast %14 : vector<1x1x1x256xf32> to vector<2x4x4x256xf32>
    %16 = arith.mulf %11, %15 : vector<2x4x4x256xf32>
    %17 = arith.addf %10, %16 : vector<2x4x4x256xf32>
    %18 = vector.extract_strided_slice %7 {offsets = [0, 0, 0, 0], sizes = [2, 4, 4, 256], strides = [1, 1, 1, 1]} : vector<2x6x4x256xf32> to vector<2x4x4x256xf32>
    %c1 = arith.constant 1 : index
    %c0_7 = arith.constant 0 : index
    %19 = vector.load %arg1[%c1, %c0_7] : memref<9x256xf32, #tpu.memory_space<vmem>>, vector<1x256xf32>
    %20 = vector.shape_cast %19 : vector<1x256xf32> to vector<256xf32>
    %21 = vector.shape_cast %20 : vector<256xf32> to vector<1x1x1x256xf32>
    %22 = vector.broadcast %21 : vector<1x1x1x256xf32> to vector<2x4x4x256xf32>
    %23 = arith.mulf %18, %22 : vector<2x4x4x256xf32>
    %24 = arith.addf %17, %23 : vector<2x4x4x256xf32>
    %25 = vector.extract_strided_slice %9 {offsets = [0, 0, 0, 0], sizes = [2, 4, 4, 256], strides = [1, 1, 1, 1]} : vector<2x6x4x256xf32> to vector<2x4x4x256xf32>
    %c2 = arith.constant 2 : index
    %c0_8 = arith.constant 0 : index
    %26 = vector.load %arg1[%c2, %c0_8] : memref<9x256xf32, #tpu.memory_space<vmem>>, vector<1x256xf32>
    %27 = vector.shape_cast %26 : vector<1x256xf32> to vector<256xf32>
    %28 = vector.shape_cast %27 : vector<256xf32> to vector<1x1x1x256xf32>
    %29 = vector.broadcast %28 : vector<1x1x1x256xf32> to vector<2x4x4x256xf32>
    %30 = arith.mulf %25, %29 : vector<2x4x4x256xf32>
    %31 = arith.addf %24, %30 : vector<2x4x4x256xf32>
    %32 = vector.extract_strided_slice %5 {offsets = [0, 1, 0, 0], sizes = [2, 4, 4, 256], strides = [1, 1, 1, 1]} : vector<2x6x4x256xf32> to vector<2x4x4x256xf32>
    %c3 = arith.constant 3 : index
    %c0_9 = arith.constant 0 : index
    %33 = vector.load %arg1[%c3, %c0_9] : memref<9x256xf32, #tpu.memory_space<vmem>>, vector<1x256xf32>
    %34 = vector.shape_cast %33 : vector<1x256xf32> to vector<256xf32>
    %35 = vector.shape_cast %34 : vector<256xf32> to vector<1x1x1x256xf32>
    %36 = vector.broadcast %35 : vector<1x1x1x256xf32> to vector<2x4x4x256xf32>
    %37 = arith.mulf %32, %36 : vector<2x4x4x256xf32>
    %38 = arith.addf %31, %37 : vector<2x4x4x256xf32>
    %39 = vector.extract_strided_slice %7 {offsets = [0, 1, 0, 0], sizes = [2, 4, 4, 256], strides = [1, 1, 1, 1]} : vector<2x6x4x256xf32> to vector<2x4x4x256xf32>
    %c4 = arith.constant 4 : index
    %c0_10 = arith.constant 0 : index
    %40 = vector.load %arg1[%c4, %c0_10] : memref<9x256xf32, #tpu.memory_space<vmem>>, vector<1x256xf32>
    %41 = vector.shape_cast %40 : vector<1x256xf32> to vector<256xf32>
    %42 = vector.shape_cast %41 : vector<256xf32> to vector<1x1x1x256xf32>
    %43 = vector.broadcast %42 : vector<1x1x1x256xf32> to vector<2x4x4x256xf32>
    %44 = arith.mulf %39, %43 : vector<2x4x4x256xf32>
    %45 = arith.addf %38, %44 : vector<2x4x4x256xf32>
    %46 = vector.extract_strided_slice %9 {offsets = [0, 1, 0, 0], sizes = [2, 4, 4, 256], strides = [1, 1, 1, 1]} : vector<2x6x4x256xf32> to vector<2x4x4x256xf32>
    %c5 = arith.constant 5 : index
    %c0_11 = arith.constant 0 : index
    %47 = vector.load %arg1[%c5, %c0_11] : memref<9x256xf32, #tpu.memory_space<vmem>>, vector<1x256xf32>
    %48 = vector.shape_cast %47 : vector<1x256xf32> to vector<256xf32>
    %49 = vector.shape_cast %48 : vector<256xf32> to vector<1x1x1x256xf32>
    %50 = vector.broadcast %49 : vector<1x1x1x256xf32> to vector<2x4x4x256xf32>
    %51 = arith.mulf %46, %50 : vector<2x4x4x256xf32>
    %52 = arith.addf %45, %51 : vector<2x4x4x256xf32>
    %53 = vector.extract_strided_slice %5 {offsets = [0, 2, 0, 0], sizes = [2, 4, 4, 256], strides = [1, 1, 1, 1]} : vector<2x6x4x256xf32> to vector<2x4x4x256xf32>
    %c6 = arith.constant 6 : index
    %c0_12 = arith.constant 0 : index
    %54 = vector.load %arg1[%c6, %c0_12] : memref<9x256xf32, #tpu.memory_space<vmem>>, vector<1x256xf32>
    %55 = vector.shape_cast %54 : vector<1x256xf32> to vector<256xf32>
    %56 = vector.shape_cast %55 : vector<256xf32> to vector<1x1x1x256xf32>
    %57 = vector.broadcast %56 : vector<1x1x1x256xf32> to vector<2x4x4x256xf32>
    %58 = arith.mulf %53, %57 : vector<2x4x4x256xf32>
    %59 = arith.addf %52, %58 : vector<2x4x4x256xf32>
    %60 = vector.extract_strided_slice %7 {offsets = [0, 2, 0, 0], sizes = [2, 4, 4, 256], strides = [1, 1, 1, 1]} : vector<2x6x4x256xf32> to vector<2x4x4x256xf32>
    %c7 = arith.constant 7 : index
    %c0_13 = arith.constant 0 : index
    %61 = vector.load %arg1[%c7, %c0_13] : memref<9x256xf32, #tpu.memory_space<vmem>>, vector<1x256xf32>
    %62 = vector.shape_cast %61 : vector<1x256xf32> to vector<256xf32>
    %63 = vector.shape_cast %62 : vector<256xf32> to vector<1x1x1x256xf32>
    %64 = vector.broadcast %63 : vector<1x1x1x256xf32> to vector<2x4x4x256xf32>
    %65 = arith.mulf %60, %64 : vector<2x4x4x256xf32>
    %66 = arith.addf %59, %65 : vector<2x4x4x256xf32>
    %67 = vector.extract_strided_slice %9 {offsets = [0, 2, 0, 0], sizes = [2, 4, 4, 256], strides = [1, 1, 1, 1]} : vector<2x6x4x256xf32> to vector<2x4x4x256xf32>
    %c8 = arith.constant 8 : index
    %c0_14 = arith.constant 0 : index
    %68 = vector.load %arg1[%c8, %c0_14] : memref<9x256xf32, #tpu.memory_space<vmem>>, vector<1x256xf32>
    %69 = vector.shape_cast %68 : vector<1x256xf32> to vector<256xf32>
    %70 = vector.shape_cast %69 : vector<256xf32> to vector<1x1x1x256xf32>
    %71 = vector.broadcast %70 : vector<1x1x1x256xf32> to vector<2x4x4x256xf32>
    %72 = arith.mulf %67, %71 : vector<2x4x4x256xf32>
    %73 = arith.addf %66, %72 : vector<2x4x4x256xf32>
    %74 = vector.shape_cast %73 : vector<2x4x4x256xf32> to vector<32x256xf32>
    %c0_15 = arith.constant 0 : index
    %c0_16 = arith.constant 0 : index
    %75 = vector.load %arg2[%c0_15, %c0_16] : memref<1x256xf32, #tpu.memory_space<vmem>>, vector<1x256xf32>
    %76 = vector.broadcast %75 : vector<1x256xf32> to vector<32x256xf32>
    %77 = arith.addf %74, %76 : vector<32x256xf32>
    %cst_17 = arith.constant 5.000000e-01 : f32
    %78 = vector.broadcast %cst_17 : f32 to vector<32x256xf32>
    %79 = arith.mulf %78, %77 : vector<32x256xf32>
    %cst_18 = arith.constant 0.707106769 : f32
    %80 = vector.broadcast %cst_18 : f32 to vector<32x256xf32>
    %81 = arith.mulf %77, %80 : vector<32x256xf32>
    %82 = math.erf %81 : vector<32x256xf32>
    %cst_19 = arith.constant 1.000000e+00 : f32
    %83 = vector.broadcast %cst_19 : f32 to vector<32x256xf32>
    %84 = arith.addf %83, %82 : vector<32x256xf32>
    %85 = arith.mulf %79, %84 : vector<32x256xf32>
    %cst_20 = arith.constant dense<0.000000e+00> : vector<256xf32>
    %86 = vector.multi_reduction <add>, %85, %cst_20 [0] : vector<32x256xf32> to vector<256xf32>
    %87 = vector.shape_cast %86 : vector<256xf32> to vector<1x256xf32>
    %cst_21 = arith.constant 3.200000e+01 : f32
    %88 = vector.broadcast %cst_21 : f32 to vector<1x256xf32>
    %89 = arith.divf %87, %88 : vector<1x256xf32>
    %90 = vector.broadcast %89 : vector<1x256xf32> to vector<32x256xf32>
    %91 = arith.subf %85, %90 : vector<32x256xf32>
    %92 = arith.mulf %91, %91 : vector<32x256xf32>
    %cst_22 = arith.constant dense<0.000000e+00> : vector<256xf32>
    %93 = vector.multi_reduction <add>, %92, %cst_22 [0] : vector<32x256xf32> to vector<256xf32>
    %94 = vector.shape_cast %93 : vector<256xf32> to vector<1x256xf32>
    %cst_23 = arith.constant 3.200000e+01 : f32
    %95 = vector.broadcast %cst_23 : f32 to vector<1x256xf32>
    %96 = arith.divf %94, %95 : vector<1x256xf32>
    %97 = vector.broadcast %89 : vector<1x256xf32> to vector<32x256xf32>
    %98 = arith.subf %85, %97 : vector<32x256xf32>
    %cst_24 = arith.constant 9.99999974E-6 : f32
    %99 = vector.broadcast %cst_24 : f32 to vector<1x256xf32>
    %100 = arith.addf %96, %99 : vector<1x256xf32>
    %101 = math.rsqrt %100 : vector<1x256xf32>
    %102 = vector.broadcast %101 : vector<1x256xf32> to vector<32x256xf32>
    %103 = arith.mulf %98, %102 : vector<32x256xf32>
    %c0_25 = arith.constant 0 : index
    %c0_26 = arith.constant 0 : index
    %104 = vector.load %arg3[%c0_25, %c0_26] : memref<1x256xf32, #tpu.memory_space<vmem>>, vector<1x256xf32>
    %105 = vector.broadcast %104 : vector<1x256xf32> to vector<32x256xf32>
    %106 = arith.mulf %103, %105 : vector<32x256xf32>
    %c0_27 = arith.constant 0 : index
    %c0_28 = arith.constant 0 : index
    %107 = vector.load %arg4[%c0_27, %c0_28] : memref<1x256xf32, #tpu.memory_space<vmem>>, vector<1x256xf32>
    %108 = vector.broadcast %107 : vector<1x256xf32> to vector<32x256xf32>
    %109 = arith.addf %106, %108 : vector<32x256xf32>
    %110 = vector.shape_cast %0 : vector<2x4x4x256xf32> to vector<32x256xf32>
    %111 = arith.addf %109, %110 : vector<32x256xf32>
    %112 = arith.truncf %111 : vector<32x256xf32> to vector<32x256xbf16>
    %c0_29 = arith.constant 0 : index
    %c0_30 = arith.constant 0 : index
    %113 = vector.load %arg5[%c0_29, %c0_30] : memref<256x256xbf16, #tpu.memory_space<vmem>>, vector<256x256xbf16>
    %cst_31 = arith.constant dense<0.000000e+00> : vector<32x256xf32>
    %114 = tpu.matmul %112, %113, %cst_31 {dimension_numbers = #tpu.dot_dimension_numbers<[1], [0], [0], [1], [0, 0, 1, 1], [], []>} : vector<32x256xbf16>, vector<256x256xbf16>, vector<32x256xf32> -> vector<32x256xf32>
    %c0_32 = arith.constant 0 : index
    %c0_33 = arith.constant 0 : index
    %115 = vector.load %arg6[%c0_32, %c0_33] : memref<1x256xf32, #tpu.memory_space<vmem>>, vector<1x256xf32>
    %116 = vector.broadcast %115 : vector<1x256xf32> to vector<32x256xf32>
    %117 = arith.addf %114, %116 : vector<32x256xf32>
    %cst_34 = arith.constant 5.000000e-01 : f32
    %118 = vector.broadcast %cst_34 : f32 to vector<32x256xf32>
    %119 = arith.mulf %118, %117 : vector<32x256xf32>
    %cst_35 = arith.constant 0.707106769 : f32
    %120 = vector.broadcast %cst_35 : f32 to vector<32x256xf32>
    %121 = arith.mulf %117, %120 : vector<32x256xf32>
    %122 = math.erf %121 : vector<32x256xf32>
    %cst_36 = arith.constant 1.000000e+00 : f32
    %123 = vector.broadcast %cst_36 : f32 to vector<32x256xf32>
    %124 = arith.addf %123, %122 : vector<32x256xf32>
    %125 = arith.mulf %119, %124 : vector<32x256xf32>
    %c0_37 = arith.constant 0 : index
    %c0_38 = arith.constant 0 : index
    %126 = vector.load %arg6[%c0_37, %c0_38] : memref<1x256xf32, #tpu.memory_space<vmem>>, vector<1x256xf32>
    %cst_39 = arith.constant 5.000000e-01 : f32
    %127 = vector.broadcast %cst_39 : f32 to vector<1x256xf32>
    %128 = arith.mulf %127, %126 : vector<1x256xf32>
    %cst_40 = arith.constant 0.707106769 : f32
    %129 = vector.broadcast %cst_40 : f32 to vector<1x256xf32>
    %130 = arith.mulf %126, %129 : vector<1x256xf32>
    %131 = math.erf %130 : vector<1x256xf32>
    %cst_41 = arith.constant 1.000000e+00 : f32
    %132 = vector.broadcast %cst_41 : f32 to vector<1x256xf32>
    %133 = arith.addf %132, %131 : vector<1x256xf32>
    %134 = arith.mulf %128, %133 : vector<1x256xf32>
    %cst_42 = arith.constant dense<0.000000e+00> : vector<256xf32>
    %135 = vector.multi_reduction <add>, %125, %cst_42 [0] : vector<32x256xf32> to vector<256xf32>
    %136 = vector.shape_cast %135 : vector<256xf32> to vector<1x256xf32>
    %cst_43 = arith.constant 4.000000e+01 : f32
    %137 = vector.broadcast %cst_43 : f32 to vector<1x256xf32>
    %138 = arith.mulf %137, %134 : vector<1x256xf32>
    %139 = arith.addf %136, %138 : vector<1x256xf32>
    %cst_44 = arith.constant 7.200000e+01 : f32
    %140 = vector.broadcast %cst_44 : f32 to vector<1x256xf32>
    %141 = arith.divf %139, %140 : vector<1x256xf32>
    %142 = vector.broadcast %141 : vector<1x256xf32> to vector<32x256xf32>
    %143 = arith.subf %125, %142 : vector<32x256xf32>
    %144 = arith.subf %134, %141 : vector<1x256xf32>
    %145 = arith.mulf %143, %143 : vector<32x256xf32>
    %cst_45 = arith.constant dense<0.000000e+00> : vector<256xf32>
    %146 = vector.multi_reduction <add>, %145, %cst_45 [0] : vector<32x256xf32> to vector<256xf32>
    %147 = vector.shape_cast %146 : vector<256xf32> to vector<1x256xf32>
    %148 = arith.mulf %144, %144 : vector<1x256xf32>
    %cst_46 = arith.constant 4.000000e+01 : f32
    %149 = vector.broadcast %cst_46 : f32 to vector<1x256xf32>
    %150 = arith.mulf %149, %148 : vector<1x256xf32>
    %151 = arith.addf %147, %150 : vector<1x256xf32>
    %cst_47 = arith.constant 7.200000e+01 : f32
    %152 = vector.broadcast %cst_47 : f32 to vector<1x256xf32>
    %153 = arith.divf %151, %152 : vector<1x256xf32>
    %cst_48 = arith.constant 9.99999974E-6 : f32
    %154 = vector.broadcast %cst_48 : f32 to vector<1x256xf32>
    %155 = arith.addf %153, %154 : vector<1x256xf32>
    %156 = math.rsqrt %155 : vector<1x256xf32>
    %157 = vector.broadcast %156 : vector<1x256xf32> to vector<32x256xf32>
    %158 = arith.mulf %143, %157 : vector<32x256xf32>
    %c0_49 = arith.constant 0 : index
    %c0_50 = arith.constant 0 : index
    %159 = vector.load %arg7[%c0_49, %c0_50] : memref<1x256xf32, #tpu.memory_space<vmem>>, vector<1x256xf32>
    %160 = vector.broadcast %159 : vector<1x256xf32> to vector<32x256xf32>
    %161 = arith.mulf %158, %160 : vector<32x256xf32>
    %c0_51 = arith.constant 0 : index
    %c0_52 = arith.constant 0 : index
    %162 = vector.load %arg8[%c0_51, %c0_52] : memref<1x256xf32, #tpu.memory_space<vmem>>, vector<1x256xf32>
    %163 = vector.broadcast %162 : vector<1x256xf32> to vector<32x256xf32>
    %164 = arith.addf %161, %163 : vector<32x256xf32>
    %165 = vector.shape_cast %164 : vector<32x256xf32> to vector<2x4x4x256xf32>
    %166 = arith.mulf %144, %156 : vector<1x256xf32>
    %c0_53 = arith.constant 0 : index
    %c0_54 = arith.constant 0 : index
    %167 = vector.load %arg7[%c0_53, %c0_54] : memref<1x256xf32, #tpu.memory_space<vmem>>, vector<1x256xf32>
    %168 = arith.mulf %166, %167 : vector<1x256xf32>
    %c0_55 = arith.constant 0 : index
    %c0_56 = arith.constant 0 : index
    %169 = vector.load %arg8[%c0_55, %c0_56] : memref<1x256xf32, #tpu.memory_space<vmem>>, vector<1x256xf32>
    %170 = arith.addf %168, %169 : vector<1x256xf32>
    %171 = vector.shape_cast %170 : vector<1x256xf32> to vector<1x1x1x256xf32>
    %172 = vector.broadcast %171 : vector<1x1x1x256xf32> to vector<2x4x1x256xf32>
    %173 = tpu.concatenate %172, %165, %172 in 2 : vector<2x4x1x256xf32>, vector<2x4x4x256xf32>, vector<2x4x1x256xf32> -> vector<2x4x6x256xf32>
    %174 = vector.shape_cast %170 : vector<1x256xf32> to vector<1x1x1x256xf32>
    %175 = vector.broadcast %174 : vector<1x1x1x256xf32> to vector<2x1x6x256xf32>
    %176 = tpu.concatenate %175, %173, %175 in 1 : vector<2x1x6x256xf32>, vector<2x4x6x256xf32>, vector<2x1x6x256xf32> -> vector<2x6x6x256xf32>
    %c0_57 = arith.constant 0 : index
    %c0_58 = arith.constant 0 : index
    %c0_59 = arith.constant 0 : index
    %c0_60 = arith.constant 0 : index
    %177 = vector.load %arg9[%c0_57, %c0_58, %c0_59, %c0_60] : memref<2x6x6x256xf32, #tpu.memory_space<vmem>>, vector<2x6x6x256xf32>
    tpu.vector_store %arg9[%c0_57, %c0_58, %c0_59, %c0_60], %176 {strides = array<i32>} : memref<2x6x6x256xf32, #tpu.memory_space<vmem>>, vector<2x6x6x256xf32>,
    return
  }
}

module attributes {stable_mosaic.version = 11 : i64} {
  func.func @pool_head_kernel(%arg0: memref<2x8x8x256xf32, #tpu.memory_space<vmem>>, %arg1: memref<256x64xf32, #tpu.memory_space<vmem>>, %arg2: memref<1x64xf32, #tpu.memory_space<vmem>>, %arg3: memref<64x16xf32, #tpu.memory_space<vmem>>, %arg4: memref<1x16xf32, #tpu.memory_space<vmem>>, %arg5: memref<16x2xf32, #tpu.memory_space<vmem>>, %arg6: memref<1x2xf32, #tpu.memory_space<vmem>>, %arg7: memref<2x2xf32, #tpu.memory_space<vmem>>, %arg8: memref<2x64xf32, #tpu.memory_space<vmem>>, %arg9: memref<2x256xf32, #tpu.memory_space<vmem>>) attributes {dimension_semantics = [], scalar_prefetch = 0 : i64, scratch_operands = 0 : i64, tpu.core_type = #tpu.core_type<tc>} {
    %c0 = arith.constant 0 : index
    %c0_0 = arith.constant 0 : index
    %c0_1 = arith.constant 0 : index
    %c0_2 = arith.constant 0 : index
    %0 = vector.load %arg0[%c0, %c0_0, %c0_1, %c0_2] : memref<2x8x8x256xf32, #tpu.memory_space<vmem>>, vector<2x8x8x256xf32>
    %1 = vector.shape_cast %0 : vector<2x8x8x256xf32> to vector<2x64x256xf32>
    %cst = arith.constant dense<0.000000e+00> : vector<2x256xf32>
    %2 = vector.multi_reduction <add>, %1, %cst [1] : vector<2x64x256xf32> to vector<2x256xf32>
    %cst_3 = arith.constant 6.400000e+01 : f32
    %3 = vector.broadcast %cst_3 : f32 to vector<2x256xf32>
    %4 = arith.divf %2, %3 : vector<2x256xf32>
    %c0_4 = arith.constant 0 : index
    %c0_5 = arith.constant 0 : index
    %5 = vector.load %arg9[%c0_4, %c0_5] : memref<2x256xf32, #tpu.memory_space<vmem>>, vector<2x256xf32>
    tpu.vector_store %arg9[%c0_4, %c0_5], %4 {strides = array<i32>} : memref<2x256xf32, #tpu.memory_space<vmem>>, vector<2x256xf32>,
    %cst_6 = arith.constant dense<0.000000e+00> : vector<2x64xf32>
    %6 = vector.multi_reduction <add>, %1, %cst_6 [2] : vector<2x64x256xf32> to vector<2x64xf32>
    %cst_7 = arith.constant 2.560000e+02 : f32
    %7 = vector.broadcast %cst_7 : f32 to vector<2x64xf32>
    %8 = arith.divf %6, %7 : vector<2x64xf32>
    %c0_8 = arith.constant 0 : index
    %c0_9 = arith.constant 0 : index
    %9 = vector.load %arg8[%c0_8, %c0_9] : memref<2x64xf32, #tpu.memory_space<vmem>>, vector<2x64xf32>
    tpu.vector_store %arg8[%c0_8, %c0_9], %8 {strides = array<i32>} : memref<2x64xf32, #tpu.memory_space<vmem>>, vector<2x64xf32>,
    %c0_10 = arith.constant 0 : index
    %c0_11 = arith.constant 0 : index
    %10 = vector.load %arg1[%c0_10, %c0_11] : memref<256x64xf32, #tpu.memory_space<vmem>>, vector<256x64xf32>
    %cst_12 = arith.constant dense<0.000000e+00> : vector<2x64xf32>
    %11 = tpu.matmul %4, %10, %cst_12 {dimension_numbers = #tpu.dot_dimension_numbers<[1], [0], [0], [1], [0, 0, 1, 1], [], []>} : vector<2x256xf32>, vector<256x64xf32>, vector<2x64xf32> -> vector<2x64xf32>
    %c0_13 = arith.constant 0 : index
    %c0_14 = arith.constant 0 : index
    %12 = vector.load %arg2[%c0_13, %c0_14] : memref<1x64xf32, #tpu.memory_space<vmem>>, vector<1x64xf32>
    %13 = vector.broadcast %12 : vector<1x64xf32> to vector<2x64xf32>
    %14 = arith.addf %11, %13 : vector<2x64xf32>
    %c0_15 = arith.constant 0 : index
    %c0_16 = arith.constant 0 : index
    %15 = vector.load %arg3[%c0_15, %c0_16] : memref<64x16xf32, #tpu.memory_space<vmem>>, vector<64x16xf32>
    %cst_17 = arith.constant dense<0.000000e+00> : vector<2x16xf32>
    %16 = tpu.matmul %14, %15, %cst_17 {dimension_numbers = #tpu.dot_dimension_numbers<[1], [0], [0], [1], [0, 0, 1, 1], [], []>} : vector<2x64xf32>, vector<64x16xf32>, vector<2x16xf32> -> vector<2x16xf32>
    %c0_18 = arith.constant 0 : index
    %c0_19 = arith.constant 0 : index
    %17 = vector.load %arg4[%c0_18, %c0_19] : memref<1x16xf32, #tpu.memory_space<vmem>>, vector<1x16xf32>
    %18 = vector.broadcast %17 : vector<1x16xf32> to vector<2x16xf32>
    %19 = arith.addf %16, %18 : vector<2x16xf32>
    %c0_20 = arith.constant 0 : index
    %c0_21 = arith.constant 0 : index
    %20 = vector.load %arg5[%c0_20, %c0_21] : memref<16x2xf32, #tpu.memory_space<vmem>>, vector<16x2xf32>
    %cst_22 = arith.constant dense<0.000000e+00> : vector<2x2xf32>
    %21 = tpu.matmul %19, %20, %cst_22 {dimension_numbers = #tpu.dot_dimension_numbers<[1], [0], [0], [1], [0, 0, 1, 1], [], []>} : vector<2x16xf32>, vector<16x2xf32>, vector<2x2xf32> -> vector<2x2xf32>
    %c0_23 = arith.constant 0 : index
    %c0_24 = arith.constant 0 : index
    %22 = vector.load %arg6[%c0_23, %c0_24] : memref<1x2xf32, #tpu.memory_space<vmem>>, vector<1x2xf32>
    %23 = vector.broadcast %22 : vector<1x2xf32> to vector<2x2xf32>
    %24 = arith.addf %21, %23 : vector<2x2xf32>
    %c0_25 = arith.constant 0 : index
    %c0_26 = arith.constant 0 : index
    %25 = vector.load %arg7[%c0_25, %c0_26] : memref<2x2xf32, #tpu.memory_space<vmem>>, vector<2x2xf32>
    tpu.vector_store %arg7[%c0_25, %c0_26], %24 {strides = array<i32>} : memref<2x2xf32, #tpu.memory_space<vmem>>, vector<2x2xf32>,
    return
  }
}

</mosaic_0001>

<llo_original>
// kernel: patch_convmix_convnext_forward.4
$region0: #{patch_convmix_convnext_forward.4}
  #allocation0 [shape = 'u32[]', space=smem, size = 0x4, offset = 0x4, fixed_abs, tag = 'smem constant byte address 0x4 - core index']
  #allocation1 [shape = 'u32[144,128]{1,0:T(1,128)}', space=vmem, size = 0x12000, scoped, tag = 'internal scratch']
  %s0 = inlined_call_operand.vmem [shape: bf16[32,192], index: 0, kind: input, shape index: {}]
  %s1 = inlined_call_operand.vmem [shape: bf16[192,256], index: 1, kind: input, shape index: {}]
  %s2 = inlined_call_operand.vmem [shape: f32[1,256], index: 2, kind: input, shape index: {}]
  %s3 = inlined_call_operand.vmem [shape: f32[1,256], index: 3, kind: input, shape index: {}]
  %s4 = inlined_call_operand.vmem [shape: f32[1,256], index: 4, kind: input, shape index: {}]
  %s5 = inlined_call_operand.vmem [shape: f32[32,256], index: 5, kind: output, shape index: {}]
  %s6 = sld [smem:[#allocation0]]
  $region30: #{patch_convmix_convnext_forward.4} parent=0
    _
  %s8 = ssub.s32 1, %s6
  %s9 = scalar_select 0, %s8, %s6
  // Predicated region
  $region2: #{patch_convmix_convnext_forward.4} parent=0 // pred_check
    _
  $region3: #{patch_convmix_convnext_forward.4} parent=0 // pred_check_branch
    %11 = sbr.rel (0) target = $region5
  $region4: #{patch_convmix_convnext_forward.4} parent=0 // pred_region
    _
  $region5: #{patch_convmix_convnext_forward.4} parent=0 // pred_fallthru
    _
  // Predicated region
  $region6: #{patch_convmix_convnext_forward.4} parent=0 // pred_check
    _
  $region7: #{patch_convmix_convnext_forward.4} parent=0 // pred_check_branch
    %13 = sbr.rel (0) target = $region9
  $region8: #{patch_convmix_convnext_forward.4} parent=0 // pred_region
    _
  $region9: #{patch_convmix_convnext_forward.4} parent=0 // pred_fallthru
    _
  // Predicated region
  $region10: #{patch_convmix_convnext_forward.4} parent=0 // pred_check
    _
  $region11: #{patch_convmix_convnext_forward.4} parent=0 // pred_check_branch
    %15 = sbr.rel (0) target = $region13
  $region12: #{patch_convmix_convnext_forward.4} parent=0 // pred_region
    _
  $region13: #{patch_convmix_convnext_forward.4} parent=0 // pred_fallthru
    _
  // Predicated region
  $region14: #{patch_convmix_convnext_forward.4} parent=0 // pred_check
    _
  $region15: #{patch_convmix_convnext_forward.4} parent=0 // pred_check_branch
    %17 = sbr.rel (0) target = $region17
  $region16: #{patch_convmix_convnext_forward.4} parent=0 // pred_region
    _
  $region17: #{patch_convmix_convnext_forward.4} parent=0 // pred_fallthru
    _
  // Predicated region
  $region18: #{patch_convmix_convnext_forward.4} parent=0 // pred_check
    _
  $region19: #{patch_convmix_convnext_forward.4} parent=0 // pred_check_branch
    %19 = sbr.rel (0) target = $region21
  $region20: #{patch_convmix_convnext_forward.4} parent=0 // pred_region
    _
  $region21: #{patch_convmix_convnext_forward.4} parent=0 // pred_fallthru
    _
  %v21 = vld [vmem:[%s0] sm:$0xff]
  %v22 = vld [vmem:[%s0 + $0x8] sm:$0xff]
  %v23 = vld [vmem:[%s0 + $0x10] sm:$0xff]
  %v24 = vld [vmem:[%s0 + $0x18] sm:$0xff]
  %v25 = vld [vmem:[%s1] sm:$0xff]
  %v26 = vld [vmem:[%s1 + $0x8] sm:$0xff]
  %v27 = vld [vmem:[%s1 + $0x10] sm:$0xff]
  %v28 = vld [vmem:[%s1 + $0x18] sm:$0xff]
  %v29 = vld [vmem:[%s1 + $0x20] sm:$0xff]
  %v30 = vld [vmem:[%s1 + $0x28] sm:$0xff]
  %v31 = vld [vmem:[%s1 + $0x30] sm:$0xff]
  %v32 = vld [vmem:[%s1 + $0x38] sm:$0xff]
  %v33 = vld [vmem:[%s1 + $0x40] sm:$0xff]
  %v34 = vld [vmem:[%s1 + $0x48] sm:$0xff]
  %v35 = vld [vmem:[%s1 + $0x50] sm:$0xff]
  %v36 = vld [vmem:[%s1 + $0x58] sm:$0xff]
  %v37 = vld [vmem:[%s1 + $0x60] sm:$0xff]
  %v38 = vld [vmem:[%s1 + $0x68] sm:$0xff]
  %v39 = vld [vmem:[%s1 + $0x70] sm:$0xff]
  %v40 = vld [vmem:[%s1 + $0x78] sm:$0xff]
  %v41 = vld [vmem:[%s1 + $0x80] sm:$0xff]
  %v42 = vld [vmem:[%s1 + $0x88] sm:$0xff]
  %v43 = vld [vmem:[%s1 + $0x90] sm:$0xff]
  %v44 = vld [vmem:[%s1 + $0x98] sm:$0xff]
  %v45 = vld [vmem:[%s1 + $0xa0] sm:$0xff]
  %v46 = vld [vmem:[%s1 + $0xa8] sm:$0xff]
  %v47 = vld [vmem:[%s1 + $0xb0] sm:$0xff]
  %v48 = vld [vmem:[%s1 + $0xb8] sm:$0xff]
  %v49 = vld [vmem:[%s2] sm:$0x3]
  %v51 = vlaneseq
  %v52 = vshrl.u32 %v51, 7
  %v53 = vsub.s32 0, %v52
  %v54 = vrot.slane %v49, %v53
  %v55 = vlaneseq
  %v56 = vshrl.u32 %v55, 7
  %v57 = vsub.s32 1, %v56
  %v58 = vrot.slane %v49, %v57
  %v65 = vunpack.c.l.b16 %v21
  %v66 = vunpack.c.h.b16 %v21
  %v67 = vunpack.c.l.b16 %v22
  %v68 = vunpack.c.h.b16 %v22
  %v69 = vunpack.c.l.b16 %v23
  %v70 = vunpack.c.h.b16 %v23
  %v71 = vunpack.c.l.b16 %v24
  %v72 = vunpack.c.h.b16 %v24
  %v73 = vpack.c.b16 %v67, %v65
  %v74 = vpack.c.b16 %v68, %v66
  %v75 = vpack.c.b16 %v71, %v69
  %v76 = vpack.c.b16 %v72, %v70
  %v103 = vunpack.c.l.b16 %v25
  %v104 = vunpack.c.h.b16 %v25
  %v105 = vunpack.c.l.b16 %v26
  %v106 = vunpack.c.h.b16 %v26
  %v107 = vunpack.c.l.b16 %v27
  %v108 = vunpack.c.h.b16 %v27
  %v109 = vunpack.c.l.b16 %v28
  %v110 = vunpack.c.h.b16 %v28
  %v111 = vunpack.c.l.b16 %v29
  %v112 = vunpack.c.h.b16 %v29
  %v113 = vunpack.c.l.b16 %v30
  %v114 = vunpack.c.h.b16 %v30
  %v115 = vunpack.c.l.b16 %v31
  %v116 = vunpack.c.h.b16 %v31
  %v117 = vunpack.c.l.b16 %v32
  %v118 = vunpack.c.h.b16 %v32
  %v119 = vunpack.c.l.b16 %v33
  %v120 = vunpack.c.h.b16 %v33
  %v121 = vunpack.c.l.b16 %v34
  %v122 = vunpack.c.h.b16 %v34
  %v123 = vunpack.c.l.b16 %v35
  %v124 = vunpack.c.h.b16 %v35
  %v125 = vunpack.c.l.b16 %v36
  %v126 = vunpack.c.h.b16 %v36
  %v127 = vunpack.c.l.b16 %v37
  %v128 = vunpack.c.h.b16 %v37
  %v129 = vunpack.c.l.b16 %v38
  %v130 = vunpack.c.h.b16 %v38
  %v131 = vunpack.c.l.b16 %v39
  %v132 = vunpack.c.h.b16 %v39
  %v133 = vunpack.c.l.b16 %v40
  %v134 = vunpack.c.h.b16 %v40
  %v135 = vunpack.c.l.b16 %v41
  %v136 = vunpack.c.h.b16 %v41
  %v137 = vunpack.c.l.b16 %v42
  %v138 = vunpack.c.h.b16 %v42
  %v139 = vunpack.c.l.b16 %v43
  %v140 = vunpack.c.h.b16 %v43
  %v141 = vunpack.c.l.b16 %v44
  %v142 = vunpack.c.h.b16 %v44
  %v143 = vunpack.c.l.b16 %v45
  %v144 = vunpack.c.h.b16 %v45
  %v145 = vunpack.c.l.b16 %v46
  %v146 = vunpack.c.h.b16 %v46
  %v147 = vunpack.c.l.b16 %v47
  %v148 = vunpack.c.h.b16 %v47
  %v149 = vunpack.c.l.b16 %v48
  %v150 = vunpack.c.h.b16 %v48
  %v151 = vpack.c.b16 %v105, %v103
  %v152 = vpack.c.b16 %v106, %v104
  %v153 = vpack.c.b16 %v109, %v107
  %v154 = vpack.c.b16 %v110, %v108
  %v155 = vpack.c.b16 %v113, %v111
  %v156 = vpack.c.b16 %v114, %v112
  %v157 = vpack.c.b16 %v117, %v115
  %v158 = vpack.c.b16 %v118, %v116
  %v159 = vpack.c.b16 %v121, %v119
  %v160 = vpack.c.b16 %v122, %v120
  %v161 = vpack.c.b16 %v125, %v123
  %v162 = vpack.c.b16 %v126, %v124
  %v163 = vpack.c.b16 %v129, %v127
  %v164 = vpack.c.b16 %v130, %v128
  %v165 = vpack.c.b16 %v133, %v131
  %v166 = vpack.c.b16 %v134, %v132
  %v167 = vpack.c.b16 %v137, %v135
  %v168 = vpack.c.b16 %v138, %v136
  %v169 = vpack.c.b16 %v141, %v139
  %v170 = vpack.c.b16 %v142, %v140
  %v171 = vpack.c.b16 %v145, %v143
  %v172 = vpack.c.b16 %v146, %v144
  %v173 = vpack.c.b16 %v149, %v147
  %v174 = vpack.c.b16 %v150, %v148
  %vm199 = vcmask 523264
  %v201 = vsel %vm199, %v74, 0
  %v204 = vsel %vm199, %v76, 0
  %206 = vmatprep.subr.bf16.mxu0 %v166
  %207 = vmatpush1.bf16.msra.mxu0 %v165
  %208 = vmatprep.subr.bf16.mxu0 %v164
  %209 = vmatpush1.bf16.msra.mxu0 %v163
  %210 = vmatprep.subr.bf16.mxu0 %v162
  %211 = vmatpush1.bf16.msra.mxu0 %v161
  %212 = vmatprep.subr.bf16.mxu0 %v160
  %213 = vmatpush1.bf16.msra.mxu0 %v159
  %214 = vmatprep.subr.bf16.mxu0 %v158
  %215 = vmatpush1.bf16.msra.mxu0 %v157
  %216 = vmatprep.subr.bf16.mxu0 %v156
  %217 = vmatpush1.bf16.msra.mxu0 %v155
  %218 = vmatprep.subr.bf16.mxu0 %v154
  %219 = vmatpush1.bf16.msra.mxu0 %v153
  %220 = vmatprep.subr.bf16.mxu0 %v152
  %221 = vmatpush1.bf16.msra.mxu0 %v151
  %222 = vmatprep.subr.bf16.mxu0 0
  %223 = vmatpush2.bf16.msra.mxu0 0
  %224 = vmatprep.subr.bf16.mxu0 0
  %225 = vmatpush2.bf16.msra.mxu0 0
  %226 = vmatprep.subr.bf16.mxu0 0
  %227 = vmatpush2.bf16.msra.mxu0 0
  %228 = vmatprep.subr.bf16.mxu0 0
  %229 = vmatpush2.bf16.msra.mxu0 0
  %230 = vmatprep.subr.bf16.mxu0 %v174
  %231 = vmatpush2.bf16.msra.mxu0 %v173
  %232 = vmatprep.subr.bf16.mxu0 %v172
  %233 = vmatpush2.bf16.msra.mxu0 %v171
  %234 = vmatprep.subr.bf16.mxu0 %v170
  %235 = vmatpush2.bf16.msra.mxu0 %v169
  %236 = vmatprep.subr.bf16.mxu0 %v168
  %237 = vmatpush2.bf16.msra.mxu0 %v167
  %238 = vmatprep.mubr.bf16.mxu0 %v201
  %239 = vmatmul.mubr.bf16.gmra.mxu0 %v73
  %v240 = vpop.f32.mrf.mxu0
  %v241 = vadd.f32 %v54, %v240
  %v242 = vpop.f32.mrf.mxu0
  %v243 = vadd.f32 %v58, %v242
  %v244 = vpop.f32.mrf.mxu0
  %v245 = vadd.f32 %v54, %v244
  %v246 = vpop.f32.mrf.mxu0
  %v247 = vadd.f32 %v58, %v246
  %248 = vmatprep.mubr.bf16.mxu0 %v204
  %249 = vmatmul.mubr.bf16.gmra.mxu0 %v75
  %v250 = vpop.f32.mrf.mxu0
  %v251 = vadd.f32 %v54, %v250
  %v252 = vpop.f32.mrf.mxu0
  %v253 = vadd.f32 %v58, %v252
  %v254 = vpop.f32.mrf.mxu0
  %v255 = vadd.f32 %v54, %v254
  %v256 = vpop.f32.mrf.mxu0
  %v257 = vadd.f32 %v58, %v256
  %258 = vdwg.mxu0
  %v259 = vmul.f32 %v241, 0.5
  %v260 = vmul.f32 %v243, 0.5
  %v261 = vmul.f32 %v245, 0.5
  %v262 = vmul.f32 %v247, 0.5
  %v263 = vmul.f32 %v251, 0.5
  %v264 = vmul.f32 %v253, 0.5
  %v265 = vmul.f32 %v255, 0.5
  %v266 = vmul.f32 %v257, 0.5
  %v267 = vmul.f32 %v241, 0.70710677
  %v268 = vmul.f32 %v243, 0.70710677
  %v269 = vmul.f32 %v245, 0.70710677
  %v270 = vmul.f32 %v247, 0.70710677
  %v271 = vmul.f32 %v251, 0.70710677
  %v272 = vmul.f32 %v253, 0.70710677
  %v273 = vmul.f32 %v255, 0.70710677
  %v274 = vmul.f32 %v257, 0.70710677
  %v275 = verf.f32.pop %v267
  %v276 = verf.f32.pop %v268
  %v277 = verf.f32.pop %v269
  %v278 = verf.f32.pop %v270
  %v279 = verf.f32.pop %v271
  %v280 = verf.f32.pop %v272
  %v281 = verf.f32.pop %v273
  %v282 = verf.f32.pop %v274
  %v283 = vadd.f32 %v275, 1.0
  %v284 = vadd.f32 %v276, 1.0
  %v285 = vadd.f32 %v277, 1.0
  %v286 = vadd.f32 %v278, 1.0
  %v287 = vadd.f32 %v279, 1.0
  %v288 = vadd.f32 %v280, 1.0
  %v289 = vadd.f32 %v281, 1.0
  %v290 = vadd.f32 %v282, 1.0
  %v291 = vmul.f32 %v259, %v283
  %v292 = vmul.f32 %v260, %v284
  %v293 = vmul.f32 %v261, %v285
  %v294 = vmul.f32 %v262, %v286
  %v295 = vmul.f32 %v263, %v287
  %v296 = vmul.f32 %v264, %v288
  %v297 = vmul.f32 %v265, %v289
  %v298 = vmul.f32 %v266, %v290
  %v299 = vadd.f32 %v291, %v293
  %v300 = vadd.f32 %v299, %v295
  %v301 = vadd.f32 %v300, %v297
  %v302 = vrot.slane %v301, 4
  %v303 = vadd.f32 %v301, %v302
  %v304 = vrot.slane %v303, 2
  %v305 = vadd.f32 %v303, %v304
  %v306 = vrot.slane %v305, 1
  %v307 = vadd.f32 %v305, %v306
  %v308 = vadd.f32 %v292, %v294
  %v309 = vadd.f32 %v308, %v296
  %v310 = vadd.f32 %v309, %v298
  %v311 = vrot.slane %v310, 4
  %v312 = vadd.f32 %v310, %v311
  %v313 = vrot.slane %v312, 2
  %v314 = vadd.f32 %v312, %v313
  %v315 = vrot.slane %v314, 1
  %v316 = vadd.f32 %v314, %v315
  %v317 = vrcp.pop 32.0
  %v318 = vmul.f32 %v307, %v317
  %v319 = vmul.f32 %v316, %v317
  %v320 = vsub.f32 %v291, %v318
  %v321 = vsub.f32 %v292, %v319
  %v322 = vsub.f32 %v293, %v318
  %v323 = vsub.f32 %v294, %v319
  %v324 = vsub.f32 %v295, %v318
  %v325 = vsub.f32 %v296, %v319
  %v326 = vsub.f32 %v297, %v318
  %v327 = vsub.f32 %v298, %v319
  %v328 = vmul.f32 %v320, %v320
  %v329 = vmul.f32 %v321, %v321
  %v330 = vmul.f32 %v322, %v322
  %v331 = vmul.f32 %v323, %v323
  %v332 = vmul.f32 %v324, %v324
  %v333 = vmul.f32 %v325, %v325
  %v334 = vmul.f32 %v326, %v326
  %v335 = vmul.f32 %v327, %v327
  %v336 = vadd.f32 %v328, %v330
  %v337 = vadd.f32 %v336, %v332
  %v338 = vadd.f32 %v337, %v334
  %v339 = vrot.slane %v338, 4
  %v340 = vadd.f32 %v338, %v339
  %v341 = vrot.slane %v340, 2
  %v342 = vadd.f32 %v340, %v341
  %v343 = vrot.slane %v342, 1
  %v344 = vadd.f32 %v342, %v343
  %v345 = vadd.f32 %v329, %v331
  %v346 = vadd.f32 %v345, %v333
  %v347 = vadd.f32 %v346, %v335
  %v348 = vrot.slane %v347, 4
  %v349 = vadd.f32 %v347, %v348
  %v350 = vrot.slane %v349, 2
  %v351 = vadd.f32 %v349, %v350
  %v352 = vrot.slane %v351, 1
  %v353 = vadd.f32 %v351, %v352
  %v354 = vmul.f32 %v344, %v317
  %v355 = vmul.f32 %v353, %v317
  %v356 = vadd.f32 %v354, 1e-05
  %v357 = vadd.f32 %v355, 1e-05
  %v358 = vrsqrt.pop %v356
  %v359 = vrsqrt.pop %v357
  %v360 = vmul.f32 %v320, %v358
  %v361 = vmul.f32 %v321, %v359
  %v362 = vmul.f32 %v322, %v358
  %v363 = vmul.f32 %v323, %v359
  %v364 = vmul.f32 %v324, %v358
  %v365 = vmul.f32 %v325, %v359
  %v366 = vmul.f32 %v326, %v358
  %v367 = vmul.f32 %v327, %v359
  %v368 = vld [vmem:[%s3] sm:$0x3]
  %v370 = vlaneseq
  %v371 = vshrl.u32 %v370, 7
  %v372 = vsub.s32 0, %v371
  %v373 = vrot.slane %v368, %v372
  %v374 = vlaneseq
  %v375 = vshrl.u32 %v374, 7
  %v376 = vsub.s32 1, %v375
  %v377 = vrot.slane %v368, %v376
  %v380 = vmul.f32 %v360, %v373
  %v381 = vmul.f32 %v361, %v377
  %v382 = vmul.f32 %v362, %v373
  %v383 = vmul.f32 %v363, %v377
  %v384 = vmul.f32 %v364, %v373
  %v385 = vmul.f32 %v365, %v377
  %v386 = vmul.f32 %v366, %v373
  %v387 = vmul.f32 %v367, %v377
  %v388 = vld [vmem:[%s4] sm:$0x3]
  %v390 = vlaneseq
  %v391 = vshrl.u32 %v390, 7
  %v392 = vsub.s32 0, %v391
  %v393 = vrot.slane %v388, %v392
  %v394 = vlaneseq
  %v395 = vshrl.u32 %v394, 7
  %v396 = vsub.s32 1, %v395
  %v397 = vrot.slane %v388, %v396
  %v400 = vadd.f32 %v380, %v393
  %v401 = vadd.f32 %v381, %v397
  %v402 = vadd.f32 %v382, %v393
  %v403 = vadd.f32 %v383, %v397
  %v404 = vadd.f32 %v384, %v393
  %v405 = vadd.f32 %v385, %v397
  %v406 = vadd.f32 %v386, %v393
  %v407 = vadd.f32 %v387, %v397
  %408 = vst [vmem:[%s5] sm:$0xff] %v400
  %409 = vst [vmem:[%s5 + $0x8] sm:$0xff] %v401
  %410 = vst [vmem:[%s5 + $0x10] sm:$0xff] %v402
  %411 = vst [vmem:[%s5 + $0x18] sm:$0xff] %v403
  %412 = vst [vmem:[%s5 + $0x20] sm:$0xff] %v404
  %413 = vst [vmem:[%s5 + $0x28] sm:$0xff] %v405
  %414 = vst [vmem:[%s5 + $0x30] sm:$0xff] %v406
  %415 = vst [vmem:[%s5 + $0x38] sm:$0xff] %v407
  // Predicated region
  $region22: #{patch_convmix_convnext_forward.4} parent=0 // pred_check
    _
  $region23: #{patch_convmix_convnext_forward.4} parent=0 // pred_check_branch
    %417 = sbr.rel (0) target = $region25
  $region24: #{patch_convmix_convnext_forward.4} parent=0 // pred_region
    _
  $region25: #{patch_convmix_convnext_forward.4} parent=0 // pred_fallthru
    _
  // Predicated region
  $region26: #{patch_convmix_convnext_forward.4} parent=0 // pred_check
    _
  $region27: #{patch_convmix_convnext_forward.4} parent=0 // pred_check_branch
    %419 = sbr.rel (0) target = $region29
  $region28: #{patch_convmix_convnext_forward.4} parent=0 // pred_region
    _
  $region29: #{patch_convmix_convnext_forward.4} parent=0 // pred_fallthru
    _

// kernel: patch_convmix_convnext_forward.7
$region0: #{patch_convmix_convnext_forward.7}
  #allocation0 [shape = 'u32[]', space=smem, size = 0x4, offset = 0x4, fixed_abs, tag = 'smem constant byte address 0x4 - core index']
  #allocation1 [shape = 'u32[144,128]{1,0:T(1,128)}', space=vmem, size = 0x12000, scoped, tag = 'internal scratch']
  %s0 = inlined_call_operand.vmem [shape: f32[2,8,8,256], index: 0, kind: input, shape index: {}]
  %s1 = inlined_call_operand.vmem [shape: f32[256,64], index: 1, kind: input, shape index: {}]
  %s2 = inlined_call_operand.vmem [shape: f32[1,64], index: 2, kind: input, shape index: {}]
  %s3 = inlined_call_operand.vmem [shape: f32[64,16], index: 3, kind: input, shape index: {}]
  %s4 = inlined_call_operand.vmem [shape: f32[1,16], index: 4, kind: input, shape index: {}]
  %s5 = inlined_call_operand.vmem [shape: f32[16,2], index: 5, kind: input, shape index: {}]
  %s6 = inlined_call_operand.vmem [shape: f32[1,2], index: 6, kind: input, shape index: {}]
  %s7 = inlined_call_operand.hbm [shape: f32[2,2], index: 7, kind: output, shape index: {0}]
  %s8 = inlined_call_operand.vmem [shape: f32[2,64], index: 8, kind: output, shape index: {1}]
  %s9 = inlined_call_operand.hbm [shape: f32[2,256], index: 9, kind: output, shape index: {2}]
  %10 = xla_tuple %s7, %s8, %s9
  %s11 = sld [smem:[#allocation0]]
  $region54: #{patch_convmix_convnext_forward.7} parent=0
    _
  %s13 = ssub.s32 1, %s11
  %s14 = scalar_select 0, %s13, %s11
  $region1: #{patch_convmix_convnext_forward.7} parent=0
    #allocation2 [shape = 'u8[1024]{0}', space=vmem, size = 0x400, scoped, tag = 'output window, operand 0, single buffered']
    #allocation3 [shape = 's32[1]{0}', space=sflag, size = 0x4, scoped, tag = 'scoped memory for patch_convmix_convnext_forward.7']
    #allocation4 [shape = 'u8[2048]{0}', space=vmem, size = 0x800, scoped, tag = 'output window, operand 2, single buffered']
    #allocation5 [shape = 's32[1]{0}', space=sflag, size = 0x4, scoped, tag = 'scoped memory for patch_convmix_convnext_forward.7']
    %15 = vsyncpa [#allocation3], 0
    %16 = vsyncpa [#allocation5], 0
    // Predicated region
    $region2: #{patch_convmix_convnext_forward.7} parent=1 // pred_check
      _
    $region3: #{patch_convmix_convnext_forward.7} parent=1 // pred_check_branch
      %18 = sbr.rel (0) target = $region5
    $region4: #{patch_convmix_convnext_forward.7} parent=1 // pred_region
      _
    $region5: #{patch_convmix_convnext_forward.7} parent=1 // pred_fallthru
      _
    // Predicated region
    $region6: #{patch_convmix_convnext_forward.7} parent=1 // pred_check
      _
    $region7: #{patch_convmix_convnext_forward.7} parent=1 // pred_check_branch
      %20 = sbr.rel (0) target = $region9
    $region8: #{patch_convmix_convnext_forward.7} parent=1 // pred_region
      _
    $region9: #{patch_convmix_convnext_forward.7} parent=1 // pred_fallthru
      _
    // Predicated region
    $region10: #{patch_convmix_convnext_forward.7} parent=1 // pred_check
      _
    $region11: #{patch_convmix_convnext_forward.7} parent=1 // pred_check_branch
      %22 = sbr.rel (0) target = $region13
    $region12: #{patch_convmix_convnext_forward.7} parent=1 // pred_region
      _
    $region13: #{patch_convmix_convnext_forward.7} parent=1 // pred_fallthru
      _
    // Predicated region
    $region14: #{patch_convmix_convnext_forward.7} parent=1 // pred_check
      _
    $region15: #{patch_convmix_convnext_forward.7} parent=1 // pred_check_branch
      %24 = sbr.rel (0) target = $region17
    $region16: #{patch_convmix_convnext_forward.7} parent=1 // pred_region
      _
    $region17: #{patch_convmix_convnext_forward.7} parent=1 // pred_fallthru
      _
    // Predicated region
    $region18: #{patch_convmix_convnext_forward.7} parent=1 // pred_check
      _
    $region19: #{patch_convmix_convnext_forward.7} parent=1 // pred_check_branch
      %26 = sbr.rel (0) target = $region21
    $region20: #{patch_convmix_convnext_forward.7} parent=1 // pred_region
      _
    $region21: #{patch_convmix_convnext_forward.7} parent=1 // pred_fallthru
      _
    // Predicated region
    $region22: #{patch_convmix_convnext_forward.7} parent=1 // pred_check
      _
    $region23: #{patch_convmix_convnext_forward.7} parent=1 // pred_check_branch
      %28 = sbr.rel (0) target = $region25
    $region24: #{patch_convmix_convnext_forward.7} parent=1 // pred_region
      _
    $region25: #{patch_convmix_convnext_forward.7} parent=1 // pred_fallthru
      _
    // Predicated region
    $region26: #{patch_convmix_convnext_forward.7} parent=1 // pred_check
      _
    $region27: #{patch_convmix_convnext_forward.7} parent=1 // pred_check_branch
      %30 = sbr.rel (0) target = $region29
    $region28: #{patch_convmix_convnext_forward.7} parent=1 // pred_region
      _
    $region29: #{patch_convmix_convnext_forward.7} parent=1 // pred_fallthru
      _
    %v31 = vld [vmem:[%s0] sm:$0xff]
    %v32 = vld [vmem:[%s0 + $0x8] sm:$0xff]
    %v33 = vld [vmem:[%s0 + $0x10] sm:$0xff]
    %v34 = vld [vmem:[%s0 + $0x18] sm:$0xff]
    %v35 = vld [vmem:[%s0 + $0x20] sm:$0xff]
    %v36 = vld [vmem:[%s0 + $0x28] sm:$0xff]
    %v37 = vld [vmem:[%s0 + $0x30] sm:$0xff]
    %v38 = vld [vmem:[%s0 + $0x38] sm:$0xff]
    %v39 = vld [vmem:[%s0 + $0x40] sm:$0xff]
    %v40 = vld [vmem:[%s0 + $0x48] sm:$0xff]
    %v41 = vld [vmem:[%s0 + $0x50] sm:$0xff]
    %v42 = vld [vmem:[%s0 + $0x58] sm:$0xff]
    %v43 = vld [vmem:[%s0 + $0x60] sm:$0xff]
    %v44 = vld [vmem:[%s0 + $0x68] sm:$0xff]
    %v45 = vld [vmem:[%s0 + $0x70] sm:$0xff]
    %v46 = vld [vmem:[%s0 + $0x78] sm:$0xff]
    %v47 = vld [vmem:[%s0 + $0x80] sm:$0xff]
    %v48 = vld [vmem:[%s0 + $0x88] sm:$0xff]
    %v49 = vld [vmem:[%s0 + $0x90] sm:$0xff]
    %v50 = vld [vmem:[%s0 + $0x98] sm:$0xff]
    %v51 = vld [vmem:[%s0 + $0xa0] sm:$0xff]
    %v52 = vld [vmem:[%s0 + $0xa8] sm:$0xff]
    %v53 = vld [vmem:[%s0 + $0xb0] sm:$0xff]
    %v54 = vld [vmem:[%s0 + $0xb8] sm:$0xff]
    %v55 = vld [vmem:[%s0 + $0xc0] sm:$0xff]
    %v56 = vld [vmem:[%s0 + $0xc8] sm:$0xff]
    %v57 = vld [vmem:[%s0 + $0xd0] sm:$0xff]
    %v58 = vld [vmem:[%s0 + $0xd8] sm:$0xff]
    %v59 = vld [vmem:[%s0 + $0xe0] sm:$0xff]
    %v60 = vld [vmem:[%s0 + $0xe8] sm:$0xff]
    %v61 = vld [vmem:[%s0 + $0xf0] sm:$0xff]
    %v62 = vld [vmem:[%s0 + $0xf8] sm:$0xff]
    %v63 = vadd.f32 %v31, %v33
    %v64 = vadd.f32 %v63, %v35
    %v65 = vadd.f32 %v64, %v37
    %v66 = vadd.f32 %v65, %v39
    %v67 = vadd.f32 %v66, %v41
    %v68 = vadd.f32 %v67, %v43
    %v69 = vadd.f32 %v68, %v45
    %v70 = vrot.slane %v69, 4
    %v71 = vadd.f32 %v69, %v70
    %v72 = vrot.slane %v71, 2
    %v73 = vadd.f32 %v71, %v72
    %v74 = vrot.slane %v73, 1
    %v75 = vadd.f32 %v73, %v74
    %v76 = vadd.f32 %v32, %v34
    %v77 = vadd.f32 %v76, %v36
    %v78 = vadd.f32 %v77, %v38
    %v79 = vadd.f32 %v78, %v40
    %v80 = vadd.f32 %v79, %v42
    %v81 = vadd.f32 %v80, %v44
    %v82 = vadd.f32 %v81, %v46
    %v83 = vrot.slane %v82, 4
    %v84 = vadd.f32 %v82, %v83
    %v85 = vrot.slane %v84, 2
    %v86 = vadd.f32 %v84, %v85
    %v87 = vrot.slane %v86, 1
    %v88 = vadd.f32 %v86, %v87
    %v89 = vadd.f32 %v47, %v49
    %v90 = vadd.f32 %v89, %v51
    %v91 = vadd.f32 %v90, %v53
    %v92 = vadd.f32 %v91, %v55
    %v93 = vadd.f32 %v92, %v57
    %v94 = vadd.f32 %v93, %v59
    %v95 = vadd.f32 %v94, %v61
    %v96 = vrot.slane %v95, 4
    %v97 = vadd.f32 %v95, %v96
    %v98 = vrot.slane %v97, 2
    %v99 = vadd.f32 %v97, %v98
    %v100 = vrot.slane %v99, 1
    %v101 = vadd.f32 %v99, %v100
    %v102 = vadd.f32 %v48, %v50
    %v103 = vadd.f32 %v102, %v52
    %v104 = vadd.f32 %v103, %v54
    %v105 = vadd.f32 %v104, %v56
    %v106 = vadd.f32 %v105, %v58
    %v107 = vadd.f32 %v106, %v60
    %v108 = vadd.f32 %v107, %v62
    %v109 = vrot.slane %v108, 4
    %v110 = vadd.f32 %v108, %v109
    %v111 = vrot.slane %v110, 2
    %v112 = vadd.f32 %v110, %v111
    %v113 = vrot.slane %v112, 1
    %v114 = vadd.f32 %v112, %v113
    %v115 = vrcp.pop 64.0
    %v116 = vmul.f32 %v75, %v115
    %v117 = vmul.f32 %v88, %v115
    %v118 = vmul.f32 %v101, %v115
    %v119 = vmul.f32 %v114, %v115
    %v124 = vcombine.low %v116, %v117
    %v126 = vunpack.c.l.s4 1983009808
    %v127 = vunpack.c.0.s8 %v126
    %v128 = vlaneseq
    %v129 = vshrl.u32 %v128, 7
    %v130 = vsub.s32 %v127, %v129
    %v131 = vrot.slane %v124, %v130
    %v132 = vcombine.low %v118, %v119
    %v134 = vunpack.c.l.s4 1983009808
    %v135 = vunpack.c.0.s8 %v134
    %v136 = vlaneseq
    %v137 = vshrl.u32 %v136, 7
    %v138 = vsub.s32 %v135, %v137
    %v139 = vrot.slane %v132, %v138
    %vm140 = vcmask 1044484
    %v141 = vsel %vm140, %v131, %v131
    %vm142 = vcmask 1046534
    %v143 = vsel %vm142, %v131, %v141
    %v144 = vrot.slane %v139, 7
    %vm145 = vcmask 1041409
    %v146 = vsel %vm145, %v144, %v143
    %vm147 = vcmask 1043459
    %v148 = vsel %vm147, %v144, %v146
    %vm149 = vcmask 1045509
    %v150 = vsel %vm149, %v144, %v148
    %vm151 = vcmask 1047559
    %v152 = vsel %vm151, %v144, %v150
    %154 = vst [vmem:[#allocation4] sm:$0xf] %v152
    %v155 = vadd.f32 %v31, %v32
    %156 = vadd.xlane.f32.xlu0 %v155
    %v157 = vpop.xlane.xlu0 %156
    %v158 = vadd.f32 %v33, %v34
    %159 = vadd.xlane.f32.xlu0 %v158
    %v160 = vpop.xlane.xlu0 %159
    %v161 = vadd.f32 %v35, %v36
    %162 = vadd.xlane.f32.xlu0 %v161
    %v163 = vpop.xlane.xlu0 %162
    %v164 = vadd.f32 %v37, %v38
    %165 = vadd.xlane.f32.xlu0 %v164
    %v166 = vpop.xlane.xlu0 %165
    %v167 = vadd.f32 %v39, %v40
    %168 = vadd.xlane.f32.xlu0 %v167
    %v169 = vpop.xlane.xlu0 %168
    %v170 = vadd.f32 %v41, %v42
    %171 = vadd.xlane.f32.xlu0 %v170
    %v172 = vpop.xlane.xlu0 %171
    %v173 = vadd.f32 %v43, %v44
    %174 = vadd.xlane.f32.xlu0 %v173
    %v175 = vpop.xlane.xlu0 %174
    %v176 = vadd.f32 %v45, %v46
    %177 = vadd.xlane.f32.xlu0 %v176
    %v178 = vpop.xlane.xlu0 %177
    %v179 = vadd.f32 %v47, %v48
    %180 = vadd.xlane.f32.xlu0 %v179
    %v181 = vpop.xlane.xlu0 %180
    %v182 = vadd.f32 %v49, %v50
    %183 = vadd.xlane.f32.xlu0 %v182
    %v184 = vpop.xlane.xlu0 %183
    %v185 = vadd.f32 %v51, %v52
    %186 = vadd.xlane.f32.xlu0 %v185
    %v187 = vpop.xlane.xlu0 %186
    %v188 = vadd.f32 %v53, %v54
    %189 = vadd.xlane.f32.xlu0 %v188
    %v190 = vpop.xlane.xlu0 %189
    %v191 = vadd.f32 %v55, %v56
    %192 = vadd.xlane.f32.xlu0 %v191
    %v193 = vpop.xlane.xlu0 %192
    %v194 = vadd.f32 %v57, %v58
    %195 = vadd.xlane.f32.xlu0 %v194
    %v196 = vpop.xlane.xlu0 %195
    %v197 = vadd.f32 %v59, %v60
    %198 = vadd.xlane.f32.xlu0 %v197
    %v199 = vpop.xlane.xlu0 %198
    %v200 = vadd.f32 %v61, %v62
    %201 = vadd.xlane.f32.xlu0 %v200
    %v202 = vpop.xlane.xlu0 %201
    %v203 = vrcp.pop 256.0
    %v204 = vmul.f32 %v157, %v203
    %v205 = vmul.f32 %v160, %v203
    %v206 = vmul.f32 %v163, %v203
    %v207 = vmul.f32 %v166, %v203
    %v208 = vmul.f32 %v169, %v203
    %v209 = vmul.f32 %v172, %v203
    %v210 = vmul.f32 %v175, %v203
    %v211 = vmul.f32 %v178, %v203
    %v212 = vmul.f32 %v181, %v203
    %v213 = vmul.f32 %v184, %v203
    %v214 = vmul.f32 %v187, %v203
    %v215 = vmul.f32 %v190, %v203
    %v216 = vmul.f32 %v193, %v203
    %v217 = vmul.f32 %v196, %v203
    %v218 = vmul.f32 %v199, %v203
    %v219 = vmul.f32 %v202, %v203
    %v236 = vlaneseq
    %v237 = vand.u32 %v236, 127
    %v238 = vlaneseq
    %v239 = vshrl.u32 %v238, 7
    %v240 = vsub.s32 %v237, %v239
    %v241 = vrot.slane %v204, %v240
    %v242 = vadd.s32 %v237, 4294967288
    %v243 = vlaneseq
    %v244 = vshrl.u32 %v243, 7
    %v245 = vsub.s32 %v242, %v244
    %v246 = vrot.slane %v205, %v245
    %vm247 = vcmask 130112
    %v248 = vsel %vm247, %v246, %v241
    %v249 = vadd.s32 %v237, 4294967280
    %v250 = vlaneseq
    %v251 = vshrl.u32 %v250, 7
    %v252 = vsub.s32 %v249, %v251
    %v253 = vrot.slane %v206, %v252
    %vm254 = vcmask 195712
    %v255 = vsel %vm254, %v253, %v248
    %v256 = vadd.s32 %v237, 4294967272
    %v257 = vlaneseq
    %v258 = vshrl.u32 %v257, 7
    %v259 = vsub.s32 %v256, %v258
    %v260 = vrot.slane %v207, %v259
    %vm261 = vcmask 261312
    %v262 = vsel %vm261, %v260, %v255
    %v263 = vadd.s32 %v237, 4294967264
    %v264 = vlaneseq
    %v265 = vshrl.u32 %v264, 7
    %v266 = vsub.s32 %v263, %v265
    %v267 = vrot.slane %v208, %v266
    %vm268 = vcmask 326912
    %v269 = vsel %vm268, %v267, %v262
    %v270 = vadd.s32 %v237, 4294967256
    %v271 = vlaneseq
    %v272 = vshrl.u32 %v271, 7
    %v273 = vsub.s32 %v270, %v272
    %v274 = vrot.slane %v209, %v273
    %vm275 = vcmask 392512
    %v276 = vsel %vm275, %v274, %v269
    %v277 = vadd.s32 %v237, 4294967248
    %v278 = vlaneseq
    %v279 = vshrl.u32 %v278, 7
    %v280 = vsub.s32 %v277, %v279
    %v281 = vrot.slane %v210, %v280
    %vm282 = vcmask 458112
    %v283 = vsel %vm282, %v281, %v276
    %v284 = vadd.s32 %v237, 4294967240
    %v285 = vlaneseq
    %v286 = vshrl.u32 %v285, 7
    %v287 = vsub.s32 %v284, %v286
    %v288 = vrot.slane %v211, %v287
    %vm289 = vcmask 523712
    %v290 = vsel %vm289, %v288, %v283
    %v291 = vlaneseq
    %v292 = vshrl.u32 %v291, 7
    %v293 = vsub.s32 %v237, %v292
    %v294 = vrot.slane %v212, %v293
    %v295 = vlaneseq
    %v296 = vshrl.u32 %v295, 7
    %v297 = vsub.s32 %v242, %v296
    %v298 = vrot.slane %v213, %v297
    %v299 = vsel %vm247, %v298, %v294
    %v300 = vlaneseq
    %v301 = vshrl.u32 %v300, 7
    %v302 = vsub.s32 %v249, %v301
    %v303 = vrot.slane %v214, %v302
    %v304 = vsel %vm254, %v303, %v299
    %v305 = vlaneseq
    %v306 = vshrl.u32 %v305, 7
    %v307 = vsub.s32 %v256, %v306
    %v308 = vrot.slane %v215, %v307
    %v309 = vsel %vm261, %v308, %v304
    %v310 = vlaneseq
    %v311 = vshrl.u32 %v310, 7
    %v312 = vsub.s32 %v263, %v311
    %v313 = vrot.slane %v216, %v312
    %v314 = vsel %vm268, %v313, %v309
    %v315 = vlaneseq
    %v316 = vshrl.u32 %v315, 7
    %v317 = vsub.s32 %v270, %v316
    %v318 = vrot.slane %v217, %v317
    %v319 = vsel %vm275, %v318, %v314
    %v320 = vlaneseq
    %v321 = vshrl.u32 %v320, 7
    %v322 = vsub.s32 %v277, %v321
    %v323 = vrot.slane %v218, %v322
    %v324 = vsel %vm282, %v323, %v319
    %v325 = vlaneseq
    %v326 = vshrl.u32 %v325, 7
    %v327 = vsub.s32 %v284, %v326
    %v328 = vrot.slane %v219, %v327
    %v329 = vsel %vm289, %v328, %v324
    %v330 = vsel %vm145, %v329, %v290
    %vm332 = vcmask 517120
    %333 = vst.msk [vmem:[%s8] sm:$0x3] %vm332, %v330
    %v334 = vld [vmem:[%s1] sm:$0xff]
    %v335 = vld [vmem:[%s1 + $0x8] sm:$0xff]
    %v336 = vld [vmem:[%s1 + $0x10] sm:$0xff]
    %v337 = vld [vmem:[%s1 + $0x18] sm:$0xff]
    %v338 = vld [vmem:[%s1 + $0x20] sm:$0xff]
    %v339 = vld [vmem:[%s1 + $0x28] sm:$0xff]
    %v340 = vld [vmem:[%s1 + $0x30] sm:$0xff]
    %v341 = vld [vmem:[%s1 + $0x38] sm:$0xff]
    %v342 = vld [vmem:[%s1 + $0x40] sm:$0xff]
    %v343 = vld [vmem:[%s1 + $0x48] sm:$0xff]
    %v344 = vld [vmem:[%s1 + $0x50] sm:$0xff]
    %v345 = vld [vmem:[%s1 + $0x58] sm:$0xff]
    %v346 = vld [vmem:[%s1 + $0x60] sm:$0xff]
    %v347 = vld [vmem:[%s1 + $0x68] sm:$0xff]
    %v348 = vld [vmem:[%s1 + $0x70] sm:$0xff]
    %v349 = vld [vmem:[%s1 + $0x78] sm:$0xff]
    %v350 = vld [vmem:[%s1 + $0x80] sm:$0xff]
    %v351 = vld [vmem:[%s1 + $0x88] sm:$0xff]
    %v352 = vld [vmem:[%s1 + $0x90] sm:$0xff]
    %v353 = vld [vmem:[%s1 + $0x98] sm:$0xff]
    %v354 = vld [vmem:[%s1 + $0xa0] sm:$0xff]
    %v355 = vld [vmem:[%s1 + $0xa8] sm:$0xff]
    %v356 = vld [vmem:[%s1 + $0xb0] sm:$0xff]
    %v357 = vld [vmem:[%s1 + $0xb8] sm:$0xff]
    %v358 = vld [vmem:[%s1 + $0xc0] sm:$0xff]
    %v359 = vld [vmem:[%s1 + $0xc8] sm:$0xff]
    %v360 = vld [vmem:[%s1 + $0xd0] sm:$0xff]
    %v361 = vld [vmem:[%s1 + $0xd8] sm:$0xff]
    %v362 = vld [vmem:[%s1 + $0xe0] sm:$0xff]
    %v363 = vld [vmem:[%s1 + $0xe8] sm:$0xff]
    %v364 = vld [vmem:[%s1 + $0xf0] sm:$0xff]
    %v365 = vld [vmem:[%s1 + $0xf8] sm:$0xff]
    %v366 = vld [vmem:[%s2] sm:$0x1]
    %v368 = vlaneseq
    %v369 = vshrl.u32 %v368, 7
    %v370 = vsub.s32 0, %v369
    %v371 = vrot.slane %v366, %v370
    %v373 = vsel %vm145, %v118, %v116
    %v374 = vsel %vm145, %v119, %v117
    %377 = vmatprep.subr.mxu0 0.0
    %378 = vmatpush1.msra.mxu0 %v349
    %379 = vmatprep.subr.mxu0 0.0
    %380 = vmatpush1.msra.mxu0 %v348
    %381 = vmatprep.subr.mxu0 0.0
    %382 = vmatpush1.msra.mxu0 %v347
    %383 = vmatprep.subr.mxu0 0.0
    %384 = vmatpush1.msra.mxu0 %v346
    %385 = vmatprep.subr.mxu0 0.0
    %386 = vmatpush1.msra.mxu0 %v345
    %387 = vmatprep.subr.mxu0 0.0
    %388 = vmatpush1.msra.mxu0 %v344
    %389 = vmatprep.subr.mxu0 0.0
    %390 = vmatpush1.msra.mxu0 %v343
    %391 = vmatprep.subr.mxu0 0.0
    %392 = vmatpush1.msra.mxu0 %v342
    %393 = vmatprep.subr.mxu0 0.0
    %394 = vmatpush1.msra.mxu0 %v341
    %395 = vmatprep.subr.mxu0 0.0
    %396 = vmatpush1.msra.mxu0 %v340
    %397 = vmatprep.subr.mxu0 0.0
    %398 = vmatpush1.msra.mxu0 %v339
    %399 = vmatprep.subr.mxu0 0.0
    %400 = vmatpush1.msra.mxu0 %v338
    %401 = vmatprep.subr.mxu0 0.0
    %402 = vmatpush1.msra.mxu0 %v337
    %403 = vmatprep.subr.mxu0 0.0
    %404 = vmatpush1.msra.mxu0 %v336
    %405 = vmatprep.subr.mxu0 0.0
    %406 = vmatpush1.msra.mxu0 %v335
    %407 = vmatprep.subr.mxu0 0.0
    %408 = vmatpush1.msra.mxu0 %v334
    %409 = vmatprep.subr.mxu0 0.0
    %410 = vmatpush2.msra.mxu0 %v365
    %411 = vmatprep.subr.mxu0 0.0
    %412 = vmatpush2.msra.mxu0 %v364
    %413 = vmatprep.subr.mxu0 0.0
    %414 = vmatpush2.msra.mxu0 %v363
    %415 = vmatprep.subr.mxu0 0.0
    %416 = vmatpush2.msra.mxu0 %v362
    %417 = vmatprep.subr.mxu0 0.0
    %418 = vmatpush2.msra.mxu0 %v361
    %419 = vmatprep.subr.mxu0 0.0
    %420 = vmatpush2.msra.mxu0 %v360
    %421 = vmatprep.subr.mxu0 0.0
    %422 = vmatpush2.msra.mxu0 %v359
    %423 = vmatprep.subr.mxu0 0.0
    %424 = vmatpush2.msra.mxu0 %v358
    %425 = vmatprep.subr.mxu0 0.0
    %426 = vmatpush2.msra.mxu0 %v357
    %427 = vmatprep.subr.mxu0 0.0
    %428 = vmatpush2.msra.mxu0 %v356
    %429 = vmatprep.subr.mxu0 0.0
    %430 = vmatpush2.msra.mxu0 %v355
    %431 = vmatprep.subr.mxu0 0.0
    %432 = vmatpush2.msra.mxu0 %v354
    %433 = vmatprep.subr.mxu0 0.0
    %434 = vmatpush2.msra.mxu0 %v353
    %435 = vmatprep.subr.mxu0 0.0
    %436 = vmatpush2.msra.mxu0 %v352
    %437 = vmatprep.subr.mxu0 0.0
    %438 = vmatpush2.msra.mxu0 %v351
    %439 = vmatprep.subr.mxu0 0.0
    %440 = vmatpush2.msra.mxu0 %v350
    %441 = vmatprep.mubr.f32.mxu0 %v374
    %442 = vmatmul.mubr.f32.gmra.mxu0 %v373
    %v443 = vpop.f32.mrf.mxu0
    %v444 = vadd.f32 %v371, %v443
    %v445 = vpop.f32.mrf.mxu0
    %446 = vdwg.mxu0
    %v447 = vld [vmem:[%s3] sm:$0xff]
    %v448 = vld [vmem:[%s3 + $0x8] sm:$0xff]
    %v449 = vld [vmem:[%s3 + $0x10] sm:$0xff]
    %v450 = vld [vmem:[%s3 + $0x18] sm:$0xff]
    %v451 = vld [vmem:[%s3 + $0x20] sm:$0xff]
    %v452 = vld [vmem:[%s3 + $0x28] sm:$0xff]
    %v453 = vld [vmem:[%s3 + $0x30] sm:$0xff]
    %v454 = vld [vmem:[%s3 + $0x38] sm:$0xff]
    %v455 = vld [vmem:[%s4] sm:$0x1]
    %v457 = vlaneseq
    %v458 = vshrl.u32 %v457, 7
    %v459 = vsub.s32 0, %v458
    %v460 = vrot.slane %v455, %v459
    %vm462 = vcmask 523264
    %v464 = vsel %vm462, %v444, 0
    %466 = vmatprep.subr.mxu0 0.0
    %467 = vmatpush1.msra.mxu0 0.0
    %468 = vmatprep.subr.mxu0 0.0
    %469 = vmatpush1.msra.mxu0 0.0
    %470 = vmatprep.subr.mxu0 0.0
    %471 = vmatpush1.msra.mxu0 0.0
    %472 = vmatprep.subr.mxu0 0.0
    %473 = vmatpush1.msra.mxu0 0.0
    %474 = vmatprep.subr.mxu0 0.0
    %475 = vmatpush1.msra.mxu0 0.0
    %476 = vmatprep.subr.mxu0 0.0
    %477 = vmatpush1.msra.mxu0 0.0
    %478 = vmatprep.subr.mxu0 0.0
    %479 = vmatpush1.msra.mxu0 0.0
    %480 = vmatprep.subr.mxu0 0.0
    %481 = vmatpush1.msra.mxu0 0.0
    %482 = vmatprep.subr.mxu0 0.0
    %483 = vmatpush1.msra.mxu0 %v454
    %484 = vmatprep.subr.mxu0 0.0
    %485 = vmatpush1.msra.mxu0 %v453
    %486 = vmatprep.subr.mxu0 0.0
    %487 = vmatpush1.msra.mxu0 %v452
    %488 = vmatprep.subr.mxu0 0.0
    %489 = vmatpush1.msra.mxu0 %v451
    %490 = vmatprep.subr.mxu0 0.0
    %491 = vmatpush1.msra.mxu0 %v450
    %492 = vmatprep.subr.mxu0 0.0
    %493 = vmatpush1.msra.mxu0 %v449
    %494 = vmatprep.subr.mxu0 0.0
    %495 = vmatpush1.msra.mxu0 %v448
    %496 = vmatprep.subr.mxu0 0.0
    %497 = vmatpush1.msra.mxu0 %v447
    %498 = vmatprep.subr.mxu0 0.0
    %499 = vmatpush2.msra.mxu0 0.0
    %500 = vmatprep.subr.mxu0 0.0
    %501 = vmatpush2.msra.mxu0 0.0
    %502 = vmatprep.subr.mxu0 0.0
    %503 = vmatpush2.msra.mxu0 0.0
    %504 = vmatprep.subr.mxu0 0.0
    %505 = vmatpush2.msra.mxu0 0.0
    %506 = vmatprep.subr.mxu0 0.0
    %507 = vmatpush2.msra.mxu0 0.0
    %508 = vmatprep.subr.mxu0 0.0
    %509 = vmatpush2.msra.mxu0 0.0
    %510 = vmatprep.subr.mxu0 0.0
    %511 = vmatpush2.msra.mxu0 0.0
    %512 = vmatprep.subr.mxu0 0.0
    %513 = vmatpush2.msra.mxu0 0.0
    %514 = vmatprep.subr.mxu0 0.0
    %515 = vmatpush2.msra.mxu0 0.0
    %516 = vmatprep.subr.mxu0 0.0
    %517 = vmatpush2.msra.mxu0 0.0
    %518 = vmatprep.subr.mxu0 0.0
    %519 = vmatpush2.msra.mxu0 0.0
    %520 = vmatprep.subr.mxu0 0.0
    %521 = vmatpush2.msra.mxu0 0.0
    %522 = vmatprep.subr.mxu0 0.0
    %523 = vmatpush2.msra.mxu0 0.0
    %524 = vmatprep.subr.mxu0 0.0
    %525 = vmatpush2.msra.mxu0 0.0
    %526 = vmatprep.subr.mxu0 0.0
    %527 = vmatpush2.msra.mxu0 0.0
    %528 = vmatprep.subr.mxu0 0.0
    %529 = vmatpush2.msra.mxu0 0.0
    %530 = vmatprep.mubr.f32.mxu0 0.0
    %531 = vmatmul.mubr.f32.gmra.mxu0 %v464
    %v532 = vpop.f32.mrf.mxu0
    %v533 = vadd.f32 %v460, %v532
    %v534 = vpop.f32.mrf.mxu0
    %535 = vdwg.mxu0
    %v536 = vld [vmem:[%s5] sm:$0xff]
    %v537 = vld [vmem:[%s5 + $0x8] sm:$0xff]
    %v538 = vld [vmem:[%s6] sm:$0x1]
    %v540 = vlaneseq
    %v541 = vshrl.u32 %v540, 7
    %v542 = vsub.s32 0, %v541
    %v543 = vrot.slane %v538, %v542
    %vm545 = vcmask 130048
    %v547 = vsel %vm545, %v533, 0
    %549 = vmatprep.subr.mxu0 0.0
    %550 = vmatpush1.msra.mxu0 0.0
    %551 = vmatprep.subr.mxu0 0.0
    %552 = vmatpush1.msra.mxu0 0.0
    %553 = vmatprep.subr.mxu0 0.0
    %554 = vmatpush1.msra.mxu0 0.0
    %555 = vmatprep.subr.mxu0 0.0
    %556 = vmatpush1.msra.mxu0 0.0
    %557 = vmatprep.subr.mxu0 0.0
    %558 = vmatpush1.msra.mxu0 0.0
    %559 = vmatprep.subr.mxu0 0.0
    %560 = vmatpush1.msra.mxu0 0.0
    %561 = vmatprep.subr.mxu0 0.0
    %562 = vmatpush1.msra.mxu0 0.0
    %563 = vmatprep.subr.mxu0 0.0
    %564 = vmatpush1.msra.mxu0 0.0
    %565 = vmatprep.subr.mxu0 0.0
    %566 = vmatpush1.msra.mxu0 0.0
    %567 = vmatprep.subr.mxu0 0.0
    %568 = vmatpush1.msra.mxu0 0.0
    %569 = vmatprep.subr.mxu0 0.0
    %570 = vmatpush1.msra.mxu0 0.0
    %571 = vmatprep.subr.mxu0 0.0
    %572 = vmatpush1.msra.mxu0 0.0
    %573 = vmatprep.subr.mxu0 0.0
    %574 = vmatpush1.msra.mxu0 0.0
    %575 = vmatprep.subr.mxu0 0.0
    %576 = vmatpush1.msra.mxu0 0.0
    %577 = vmatprep.subr.mxu0 0.0
    %578 = vmatpush1.msra.mxu0 %v537
    %579 = vmatprep.subr.mxu0 0.0
    %580 = vmatpush1.msra.mxu0 %v536
    %581 = vmatprep.subr.mxu0 0.0
    %582 = vmatpush2.msra.mxu0 0.0
    %583 = vmatprep.subr.mxu0 0.0
    %584 = vmatpush2.msra.mxu0 0.0
    %585 = vmatprep.subr.mxu0 0.0
    %586 = vmatpush2.msra.mxu0 0.0
    %587 = vmatprep.subr.mxu0 0.0
    %588 = vmatpush2.msra.mxu0 0.0
    %589 = vmatprep.subr.mxu0 0.0
    %590 = vmatpush2.msra.mxu0 0.0
    %591 = vmatprep.subr.mxu0 0.0
    %592 = vmatpush2.msra.mxu0 0.0
    %593 = vmatprep.subr.mxu0 0.0
    %594 = vmatpush2.msra.mxu0 0.0
    %595 = vmatprep.subr.mxu0 0.0
    %596 = vmatpush2.msra.mxu0 0.0
    %597 = vmatprep.subr.mxu0 0.0
    %598 = vmatpush2.msra.mxu0 0.0
    %599 = vmatprep.subr.mxu0 0.0
    %600 = vmatpush2.msra.mxu0 0.0
    %601 = vmatprep.subr.mxu0 0.0
    %602 = vmatpush2.msra.mxu0 0.0
    %603 = vmatprep.subr.mxu0 0.0
    %604 = vmatpush2.msra.mxu0 0.0
    %605 = vmatprep.subr.mxu0 0.0
    %606 = vmatpush2.msra.mxu0 0.0
    %607 = vmatprep.subr.mxu0 0.0
    %608 = vmatpush2.msra.mxu0 0.0
    %609 = vmatprep.subr.mxu0 0.0
    %610 = vmatpush2.msra.mxu0 0.0
    %611 = vmatprep.subr.mxu0 0.0
    %612 = vmatpush2.msra.mxu0 0.0
    %613 = vmatprep.mubr.f32.mxu0 0.0
    %614 = vmatmul.mubr.f32.gmra.mxu0 %v547
    %v615 = vpop.f32.mrf.mxu0
    %v616 = vadd.f32 %v543, %v615
    %v617 = vpop.f32.mrf.mxu0
    %618 = vdwg.mxu0
    %vm619 = vcmask 9216
    %620 = vst.msk [vmem:[#allocation2] sm:$0x3] %vm619, %v616
    // Predicated region
    $region30: #{patch_convmix_convnext_forward.7} parent=1 // pred_check
      _
    $region31: #{patch_convmix_convnext_forward.7} parent=1 // pred_check_branch
      %622 = sbr.rel (0) target = $region33
    $region32: #{patch_convmix_convnext_forward.7} parent=1 // pred_region
      %s624 = ssub.s32 32, 32
      %625 = vsyncadd [#allocation3], %s624
      %s627 = sshll.u32 [#allocation2], 4
      %s628 = int_to_ptr.vmem [resolvable:$true] %s627
      %630 = dma.vmem_to_hbm [thread:$0]  %s628, 32, %s7, [#allocation3]
    $region33: #{patch_convmix_convnext_forward.7} parent=1 // pred_fallthru
      _
    // Predicated region
    $region34: #{patch_convmix_convnext_forward.7} parent=1 // pred_check
      _
    $region35: #{patch_convmix_convnext_forward.7} parent=1 // pred_check_branch
      %632 = sbr.rel (0) target = $region37
    $region36: #{patch_convmix_convnext_forward.7} parent=1 // pred_region
      _
    $region37: #{patch_convmix_convnext_forward.7} parent=1 // pred_fallthru
      _
    // Predicated region
    $region38: #{patch_convmix_convnext_forward.7} parent=1 // pred_check
      _
    $region39: #{patch_convmix_convnext_forward.7} parent=1 // pred_check_branch
      %634 = sbr.rel (0) target = $region41
    $region40: #{patch_convmix_convnext_forward.7} parent=1 // pred_region
      %s636 = ssub.s32 64, 64
      %637 = vsyncadd [#allocation5], %s636
      %s639 = sshll.u32 [#allocation4], 4
      %s640 = int_to_ptr.vmem [resolvable:$true] %s639
      %642 = dma.vmem_to_hbm [thread:$0]  %s640, 64, %s9, [#allocation5]
    $region41: #{patch_convmix_convnext_forward.7} parent=1 // pred_fallthru
      _
    // Predicated region
    $region42: #{patch_convmix_convnext_forward.7} parent=1 // pred_check
      _
    $region43: #{patch_convmix_convnext_forward.7} parent=1 // pred_check_branch
      %644 = sbr.rel (0) target = $region45
    $region44: #{patch_convmix_convnext_forward.7} parent=1 // pred_region
      %645 = dma.done [#allocation3], 32
    $region45: #{patch_convmix_convnext_forward.7} parent=1 // pred_fallthru
      _
    // Predicated region
    $region46: #{patch_convmix_convnext_forward.7} parent=1 // pred_check
      _
    $region47: #{patch_convmix_convnext_forward.7} parent=1 // pred_check_branch
      %647 = sbr.rel (0) target = $region49
    $region48: #{patch_convmix_convnext_forward.7} parent=1 // pred_region
      _
    $region49: #{patch_convmix_convnext_forward.7} parent=1 // pred_fallthru
      _
    // Predicated region
    $region50: #{patch_convmix_convnext_forward.7} parent=1 // pred_check
      _
    $region51: #{patch_convmix_convnext_forward.7} parent=1 // pred_check_branch
      %649 = sbr.rel (0) target = $region53
    $region52: #{patch_convmix_convnext_forward.7} parent=1 // pred_region
      %650 = dma.done [#allocation5], 64
    $region53: #{patch_convmix_convnext_forward.7} parent=1 // pred_fallthru
      _
    %651 = vsyncpa [#allocation3], 1
    %652 = vsyncpa [#allocation5], 1

// kernel: patch_convmix_convnext_forward.5
$region0: #{patch_convmix_convnext_forward.5}
  #allocation0 [shape = 'u32[]', space=smem, size = 0x4, offset = 0x4, fixed_abs, tag = 'smem constant byte address 0x4 - core index']
  #allocation1 [shape = 'u32[144,128]{1,0:T(1,128)}', space=vmem, size = 0x12000, scoped, tag = 'internal scratch']
  %s0 = inlined_call_operand.vmem [shape: f32[2,4,4,256], index: 0, kind: input, shape index: {}]
  %s1 = inlined_call_operand.vmem [shape: f32[9,256], index: 1, kind: input, shape index: {}]
  %s2 = inlined_call_operand.vmem [shape: f32[1,256], index: 2, kind: input, shape index: {}]
  %s3 = inlined_call_operand.vmem [shape: f32[1,256], index: 3, kind: input, shape index: {}]
  %s4 = inlined_call_operand.vmem [shape: f32[1,256], index: 4, kind: input, shape index: {}]
  %s5 = inlined_call_operand.vmem [shape: bf16[256,256], index: 5, kind: input, shape index: {}]
  %s6 = inlined_call_operand.vmem [shape: f32[1,256], index: 6, kind: input, shape index: {}]
  %s7 = inlined_call_operand.vmem [shape: f32[1,256], index: 7, kind: input, shape index: {}]
  %s8 = inlined_call_operand.vmem [shape: f32[1,256], index: 8, kind: input, shape index: {}]
  %s9 = inlined_call_operand.vmem [shape: f32[2,6,6,256], index: 9, kind: output, shape index: {}]
  %s10 = sld [smem:[#allocation0]]
  $region46: #{patch_convmix_convnext_forward.5} parent=0
    _
  %s12 = ssub.s32 1, %s10
  %s13 = scalar_select 0, %s12, %s10
  // Predicated region
  $region2: #{patch_convmix_convnext_forward.5} parent=0 // pred_check
    _
  $region3: #{patch_convmix_convnext_forward.5} parent=0 // pred_check_branch
    %15 = sbr.rel (0) target = $region5
  $region4: #{patch_convmix_convnext_forward.5} parent=0 // pred_region
    _
  $region5: #{patch_convmix_convnext_forward.5} parent=0 // pred_fallthru
    _
  // Predicated region
  $region6: #{patch_convmix_convnext_forward.5} parent=0 // pred_check
    _
  $region7: #{patch_convmix_convnext_forward.5} parent=0 // pred_check_branch
    %17 = sbr.rel (0) target = $region9
  $region8: #{patch_convmix_convnext_forward.5} parent=0 // pred_region
    _
  $region9: #{patch_convmix_convnext_forward.5} parent=0 // pred_fallthru
    _
  // Predicated region
  $region10: #{patch_convmix_convnext_forward.5} parent=0 // pred_check
    _
  $region11: #{patch_convmix_convnext_forward.5} parent=0 // pred_check_branch
    %19 = sbr.rel (0) target = $region13
  $region12: #{patch_convmix_convnext_forward.5} parent=0 // pred_region
    _
  $region13: #{patch_convmix_convnext_forward.5} parent=0 // pred_fallthru
    _
  // Predicated region
  $region14: #{patch_convmix_convnext_forward.5} parent=0 // pred_check
    _
  $region15: #{patch_convmix_convnext_forward.5} parent=0 // pred_check_branch
    %21 = sbr.rel (0) target = $region17
  $region16: #{patch_convmix_convnext_forward.5} parent=0 // pred_region
    _
  $region17: #{patch_convmix_convnext_forward.5} parent=0 // pred_fallthru
    _
  // Predicated region
  $region18: #{patch_convmix_convnext_forward.5} parent=0 // pred_check
    _
  $region19: #{patch_convmix_convnext_forward.5} parent=0 // pred_check_branch
    %23 = sbr.rel (0) target = $region21
  $region20: #{patch_convmix_convnext_forward.5} parent=0 // pred_region
    _
  $region21: #{patch_convmix_convnext_forward.5} parent=0 // pred_fallthru
    _
  // Predicated region
  $region22: #{patch_convmix_convnext_forward.5} parent=0 // pred_check
    _
  $region23: #{patch_convmix_convnext_forward.5} parent=0 // pred_check_branch
    %25 = sbr.rel (0) target = $region25
  $region24: #{patch_convmix_convnext_forward.5} parent=0 // pred_region
    _
  $region25: #{patch_convmix_convnext_forward.5} parent=0 // pred_fallthru
    _
  // Predicated region
  $region26: #{patch_convmix_convnext_forward.5} parent=0 // pred_check
    _
  $region27: #{patch_convmix_convnext_forward.5} parent=0 // pred_check_branch
    %27 = sbr.rel (0) target = $region29
  $region28: #{patch_convmix_convnext_forward.5} parent=0 // pred_region
    _
  $region29: #{patch_convmix_convnext_forward.5} parent=0 // pred_fallthru
    _
  // Predicated region
  $region30: #{patch_convmix_convnext_forward.5} parent=0 // pred_check
    _
  $region31: #{patch_convmix_convnext_forward.5} parent=0 // pred_check_branch
    %29 = sbr.rel (0) target = $region33
  $region32: #{patch_convmix_convnext_forward.5} parent=0 // pred_region
    _
  $region33: #{patch_convmix_convnext_forward.5} parent=0 // pred_fallthru
    _
  // Predicated region
  $region34: #{patch_convmix_convnext_forward.5} parent=0 // pred_check
    _
  $region35: #{patch_convmix_convnext_forward.5} parent=0 // pred_check_branch
    %31 = sbr.rel (0) target = $region37
  $region36: #{patch_convmix_convnext_forward.5} parent=0 // pred_region
    _
  $region37: #{patch_convmix_convnext_forward.5} parent=0 // pred_fallthru
    _
  %v32 = vld [vmem:[%s0] sm:$0xff]
  %v33 = vld [vmem:[%s0 + $0x8] sm:$0xff]
  %v34 = vld [vmem:[%s0 + $0x10] sm:$0xff]
  %v35 = vld [vmem:[%s0 + $0x18] sm:$0xff]
  %v36 = vld [vmem:[%s0 + $0x20] sm:$0xff]
  %v37 = vld [vmem:[%s0 + $0x28] sm:$0xff]
  %v38 = vld [vmem:[%s0 + $0x30] sm:$0xff]
  %v39 = vld [vmem:[%s0 + $0x38] sm:$0xff]
  %v48 = vcombine.high %v32, %v32
  %v49 = vcombine.high %v33, %v33
  %v50 = vcombine.high %v34, %v34
  %v51 = vcombine.high %v35, %v35
  %v52 = vcombine.high %v36, %v36
  %v53 = vcombine.high %v37, %v37
  %v54 = vcombine.high %v38, %v38
  %v55 = vcombine.high %v39, %v39
  %v56 = vrot.slane %v32, 7
  %v57 = vrot.slane %v48, 7
  %v58 = vrot.slane %v33, 7
  %v59 = vrot.slane %v49, 7
  %v60 = vrot.slane %v34, 7
  %v61 = vrot.slane %v50, 7
  %v62 = vrot.slane %v35, 7
  %v63 = vrot.slane %v51, 7
  %v64 = vrot.slane %v36, 7
  %v65 = vrot.slane %v52, 7
  %v66 = vrot.slane %v37, 7
  %v67 = vrot.slane %v53, 7
  %v68 = vrot.slane %v38, 7
  %v69 = vrot.slane %v54, 7
  %v70 = vrot.slane %v39, 7
  %v71 = vrot.slane %v55, 7
  %vm88 = vcmask 1040384
  %v89 = vsel %vm88, 0.0, %v56
  %v90 = vsel %vm88, 0.0, %v57
  %v91 = vsel %vm88, 0.0, %v58
  %v92 = vsel %vm88, 0.0, %v59
  %v93 = vsel %vm88, 0.0, %v60
  %v94 = vsel %vm88, 0.0, %v61
  %v95 = vsel %vm88, 0.0, %v62
  %v96 = vsel %vm88, 0.0, %v63
  %v97 = vsel %vm88, 0.0, %v64
  %v98 = vsel %vm88, 0.0, %v65
  %v99 = vsel %vm88, 0.0, %v66
  %v100 = vsel %vm88, 0.0, %v67
  %v101 = vsel %vm88, 0.0, %v68
  %v102 = vsel %vm88, 0.0, %v69
  %v103 = vsel %vm88, 0.0, %v70
  %v104 = vsel %vm88, 0.0, %v71
  %vm105 = vcmask 1044480
  %v106 = vsel %vm105, %v89, 0.0
  %v107 = vsel %vm105, %v90, 0.0
  %v108 = vsel %vm105, %v91, 0.0
  %v109 = vsel %vm105, %v92, 0.0
  %v110 = vsel %vm105, %v93, 0.0
  %v111 = vsel %vm105, %v94, 0.0
  %v112 = vsel %vm105, %v95, 0.0
  %v113 = vsel %vm105, %v96, 0.0
  %v114 = vsel %vm105, %v97, 0.0
  %v115 = vsel %vm105, %v98, 0.0
  %v116 = vsel %vm105, %v99, 0.0
  %v117 = vsel %vm105, %v100, 0.0
  %v118 = vsel %vm105, %v101, 0.0
  %v119 = vsel %vm105, %v102, 0.0
  %v120 = vsel %vm105, %v103, 0.0
  %v121 = vsel %vm105, %v104, 0.0
  %v138 = vrot.slane %v106, 1
  %v139 = vrot.slane %v107, 1
  %v140 = vrot.slane %v108, 1
  %v141 = vrot.slane %v109, 1
  %v142 = vrot.slane %v110, 1
  %v143 = vrot.slane %v111, 1
  %v144 = vrot.slane %v112, 1
  %v145 = vrot.slane %v113, 1
  %v146 = vrot.slane %v114, 1
  %v147 = vrot.slane %v115, 1
  %v148 = vrot.slane %v116, 1
  %v149 = vrot.slane %v117, 1
  %v150 = vrot.slane %v118, 1
  %v151 = vrot.slane %v119, 1
  %v152 = vrot.slane %v120, 1
  %v153 = vrot.slane %v121, 1
  %v170 = vrot.slane %v106, 2
  %v171 = vrot.slane %v107, 2
  %v172 = vrot.slane %v108, 2
  %v173 = vrot.slane %v109, 2
  %v174 = vrot.slane %v110, 2
  %v175 = vrot.slane %v111, 2
  %v176 = vrot.slane %v112, 2
  %v177 = vrot.slane %v113, 2
  %v178 = vrot.slane %v114, 2
  %v179 = vrot.slane %v115, 2
  %v180 = vrot.slane %v116, 2
  %v181 = vrot.slane %v117, 2
  %v182 = vrot.slane %v118, 2
  %v183 = vrot.slane %v119, 2
  %v184 = vrot.slane %v120, 2
  %v185 = vrot.slane %v121, 2
  %v202 = vld [vmem:[%s1] ss:$8 sm:$0x3]
  %v204 = vlaneseq
  %v205 = vshrl.u32 %v204, 7
  %v206 = vsub.s32 0, %v205
  %v207 = vrot.slane %v202, %v206
  %v208 = vlaneseq
  %v209 = vshrl.u32 %v208, 7
  %v210 = vsub.s32 1, %v209
  %v211 = vrot.slane %v202, %v210
  %v214 = vmul.f32 %v207, 0.0
  %v215 = vmul.f32 %v211, 0.0
  %v216 = vmul.f32 %v106, %v207
  %v217 = vmul.f32 %v107, %v211
  %v218 = vmul.f32 %v108, %v207
  %v219 = vmul.f32 %v109, %v211
  %v220 = vmul.f32 %v110, %v207
  %v221 = vmul.f32 %v111, %v211
  %v222 = vmul.f32 %v114, %v207
  %v223 = vmul.f32 %v115, %v211
  %v224 = vmul.f32 %v116, %v207
  %v225 = vmul.f32 %v117, %v211
  %v226 = vmul.f32 %v118, %v207
  %v227 = vmul.f32 %v119, %v211
  %v228 = vadd.f32 %v214, 0.0
  %v229 = vadd.f32 %v215, 0.0
  %v230 = vadd.f32 %v216, 0.0
  %v231 = vadd.f32 %v217, 0.0
  %v232 = vadd.f32 %v218, 0.0
  %v233 = vadd.f32 %v219, 0.0
  %v234 = vadd.f32 %v220, 0.0
  %v235 = vadd.f32 %v221, 0.0
  %v236 = vadd.f32 %v222, 0.0
  %v237 = vadd.f32 %v223, 0.0
  %v238 = vadd.f32 %v224, 0.0
  %v239 = vadd.f32 %v225, 0.0
  %v240 = vadd.f32 %v226, 0.0
  %v241 = vadd.f32 %v227, 0.0
  %s242 = scalar_lea.vmem %s1, 1
  %v243 = vld [vmem:[%s242] ss:$8 sm:$0x3]
  %v245 = vlaneseq
  %v246 = vshrl.u32 %v245, 7
  %v247 = vsub.s32 0, %v246
  %v248 = vrot.slane %v243, %v247
  %v249 = vlaneseq
  %v250 = vshrl.u32 %v249, 7
  %v251 = vsub.s32 1, %v250
  %v252 = vrot.slane %v243, %v251
  %v255 = vmul.f32 %v248, 0.0
  %v256 = vmul.f32 %v252, 0.0
  %v257 = vmul.f32 %v138, %v248
  %v258 = vmul.f32 %v139, %v252
  %v259 = vmul.f32 %v140, %v248
  %v260 = vmul.f32 %v141, %v252
  %v261 = vmul.f32 %v142, %v248
  %v262 = vmul.f32 %v143, %v252
  %v263 = vmul.f32 %v146, %v248
  %v264 = vmul.f32 %v147, %v252
  %v265 = vmul.f32 %v148, %v248
  %v266 = vmul.f32 %v149, %v252
  %v267 = vmul.f32 %v150, %v248
  %v268 = vmul.f32 %v151, %v252
  %v269 = vadd.f32 %v228, %v255
  %v270 = vadd.f32 %v229, %v256
  %v271 = vadd.f32 %v230, %v257
  %v272 = vadd.f32 %v231, %v258
  %v273 = vadd.f32 %v232, %v259
  %v274 = vadd.f32 %v233, %v260
  %v275 = vadd.f32 %v234, %v261
  %v276 = vadd.f32 %v235, %v262
  %v277 = vadd.f32 %v236, %v263
  %v278 = vadd.f32 %v237, %v264
  %v279 = vadd.f32 %v238, %v265
  %v280 = vadd.f32 %v239, %v266
  %v281 = vadd.f32 %v240, %v267
  %v282 = vadd.f32 %v241, %v268
  %s283 = scalar_lea.vmem %s1, 2
  %v284 = vld [vmem:[%s283] ss:$8 sm:$0x3]
  %v286 = vlaneseq
  %v287 = vshrl.u32 %v286, 7
  %v288 = vsub.s32 0, %v287
  %v289 = vrot.slane %v284, %v288
  %v290 = vlaneseq
  %v291 = vshrl.u32 %v290, 7
  %v292 = vsub.s32 1, %v291
  %v293 = vrot.slane %v284, %v292
  %v296 = vmul.f32 %v289, 0.0
  %v297 = vmul.f32 %v293, 0.0
  %v298 = vmul.f32 %v170, %v289
  %v299 = vmul.f32 %v171, %v293
  %v300 = vmul.f32 %v172, %v289
  %v301 = vmul.f32 %v173, %v293
  %v302 = vmul.f32 %v174, %v289
  %v303 = vmul.f32 %v175, %v293
  %v304 = vmul.f32 %v178, %v289
  %v305 = vmul.f32 %v179, %v293
  %v306 = vmul.f32 %v180, %v289
  %v307 = vmul.f32 %v181, %v293
  %v308 = vmul.f32 %v182, %v289
  %v309 = vmul.f32 %v183, %v293
  %v310 = vadd.f32 %v269, %v296
  %v311 = vadd.f32 %v270, %v297
  %v312 = vadd.f32 %v271, %v298
  %v313 = vadd.f32 %v272, %v299
  %v314 = vadd.f32 %v273, %v300
  %v315 = vadd.f32 %v274, %v301
  %v316 = vadd.f32 %v275, %v302
  %v317 = vadd.f32 %v276, %v303
  %v318 = vadd.f32 %v277, %v304
  %v319 = vadd.f32 %v278, %v305
  %v320 = vadd.f32 %v279, %v306
  %v321 = vadd.f32 %v280, %v307
  %v322 = vadd.f32 %v281, %v308
  %v323 = vadd.f32 %v282, %v309
  %s324 = scalar_lea.vmem %s1, 3
  %v325 = vld [vmem:[%s324] ss:$8 sm:$0x3]
  %v327 = vlaneseq
  %v328 = vshrl.u32 %v327, 7
  %v329 = vsub.s32 0, %v328
  %v330 = vrot.slane %v325, %v329
  %v331 = vlaneseq
  %v332 = vshrl.u32 %v331, 7
  %v333 = vsub.s32 1, %v332
  %v334 = vrot.slane %v325, %v333
  %v337 = vmul.f32 %v106, %v330
  %v338 = vmul.f32 %v107, %v334
  %v339 = vmul.f32 %v108, %v330
  %v340 = vmul.f32 %v109, %v334
  %v341 = vmul.f32 %v110, %v330
  %v342 = vmul.f32 %v111, %v334
  %v343 = vmul.f32 %v112, %v330
  %v344 = vmul.f32 %v113, %v334
  %v345 = vmul.f32 %v114, %v330
  %v346 = vmul.f32 %v115, %v334
  %v347 = vmul.f32 %v116, %v330
  %v348 = vmul.f32 %v117, %v334
  %v349 = vmul.f32 %v118, %v330
  %v350 = vmul.f32 %v119, %v334
  %v351 = vmul.f32 %v120, %v330
  %v352 = vmul.f32 %v121, %v334
  %v353 = vadd.f32 %v310, %v337
  %v354 = vadd.f32 %v311, %v338
  %v355 = vadd.f32 %v312, %v339
  %v356 = vadd.f32 %v313, %v340
  %v357 = vadd.f32 %v314, %v341
  %v358 = vadd.f32 %v315, %v342
  %v359 = vadd.f32 %v316, %v343
  %v360 = vadd.f32 %v317, %v344
  %v361 = vadd.f32 %v310, %v345
  %v362 = vadd.f32 %v311, %v346
  %v363 = vadd.f32 %v318, %v347
  %v364 = vadd.f32 %v319, %v348
  %v365 = vadd.f32 %v320, %v349
  %v366 = vadd.f32 %v321, %v350
  %v367 = vadd.f32 %v322, %v351
  %v368 = vadd.f32 %v323, %v352
  %s369 = scalar_lea.vmem %s1, 4
  %v370 = vld [vmem:[%s369] ss:$8 sm:$0x3]
  %v372 = vlaneseq
  %v373 = vshrl.u32 %v372, 7
  %v374 = vsub.s32 0, %v373
  %v375 = vrot.slane %v370, %v374
  %v376 = vlaneseq
  %v377 = vshrl.u32 %v376, 7
  %v378 = vsub.s32 1, %v377
  %v379 = vrot.slane %v370, %v378
  %v382 = vmul.f32 %v138, %v375
  %v383 = vmul.f32 %v139, %v379
  %v384 = vmul.f32 %v140, %v375
  %v385 = vmul.f32 %v141, %v379
  %v386 = vmul.f32 %v142, %v375
  %v387 = vmul.f32 %v143, %v379
  %v388 = vmul.f32 %v144, %v375
  %v389 = vmul.f32 %v145, %v379
  %v390 = vmul.f32 %v146, %v375
  %v391 = vmul.f32 %v147, %v379
  %v392 = vmul.f32 %v148, %v375
  %v393 = vmul.f32 %v149, %v379
  %v394 = vmul.f32 %v150, %v375
  %v395 = vmul.f32 %v151, %v379
  %v396 = vmul.f32 %v152, %v375
  %v397 = vmul.f32 %v153, %v379
  %v398 = vadd.f32 %v353, %v382
  %v399 = vadd.f32 %v354, %v383
  %v400 = vadd.f32 %v355, %v384
  %v401 = vadd.f32 %v356, %v385
  %v402 = vadd.f32 %v357, %v386
  %v403 = vadd.f32 %v358, %v387
  %v404 = vadd.f32 %v359, %v388
  %v405 = vadd.f32 %v360, %v389
  %v406 = vadd.f32 %v361, %v390
  %v407 = vadd.f32 %v362, %v391
  %v408 = vadd.f32 %v363, %v392
  %v409 = vadd.f32 %v364, %v393
  %v410 = vadd.f32 %v365, %v394
  %v411 = vadd.f32 %v366, %v395
  %v412 = vadd.f32 %v367, %v396
  %v413 = vadd.f32 %v368, %v397
  %s414 = scalar_lea.vmem %s1, 5
  %v415 = vld [vmem:[%s414] ss:$8 sm:$0x3]
  %v417 = vlaneseq
  %v418 = vshrl.u32 %v417, 7
  %v419 = vsub.s32 0, %v418
  %v420 = vrot.slane %v415, %v419
  %v421 = vlaneseq
  %v422 = vshrl.u32 %v421, 7
  %v423 = vsub.s32 1, %v422
  %v424 = vrot.slane %v415, %v423
  %v427 = vmul.f32 %v170, %v420
  %v428 = vmul.f32 %v171, %v424
  %v429 = vmul.f32 %v172, %v420
  %v430 = vmul.f32 %v173, %v424
  %v431 = vmul.f32 %v174, %v420
  %v432 = vmul.f32 %v175, %v424
  %v433 = vmul.f32 %v176, %v420
  %v434 = vmul.f32 %v177, %v424
  %v435 = vmul.f32 %v178, %v420
  %v436 = vmul.f32 %v179, %v424
  %v437 = vmul.f32 %v180, %v420
  %v438 = vmul.f32 %v181, %v424
  %v439 = vmul.f32 %v182, %v420
  %v440 = vmul.f32 %v183, %v424
  %v441 = vmul.f32 %v184, %v420
  %v442 = vmul.f32 %v185, %v424
  %v443 = vadd.f32 %v398, %v427
  %v444 = vadd.f32 %v399, %v428
  %v445 = vadd.f32 %v400, %v429
  %v446 = vadd.f32 %v401, %v430
  %v447 = vadd.f32 %v402, %v431
  %v448 = vadd.f32 %v403, %v432
  %v449 = vadd.f32 %v404, %v433
  %v450 = vadd.f32 %v405, %v434
  %v451 = vadd.f32 %v406, %v435
  %v452 = vadd.f32 %v407, %v436
  %v453 = vadd.f32 %v408, %v437
  %v454 = vadd.f32 %v409, %v438
  %v455 = vadd.f32 %v410, %v439
  %v456 = vadd.f32 %v411, %v440
  %v457 = vadd.f32 %v412, %v441
  %v458 = vadd.f32 %v413, %v442
  %s459 = scalar_lea.vmem %s1, 6
  %v460 = vld [vmem:[%s459] ss:$8 sm:$0x3]
  %v462 = vlaneseq
  %v463 = vshrl.u32 %v462, 7
  %v464 = vsub.s32 0, %v463
  %v465 = vrot.slane %v460, %v464
  %v466 = vlaneseq
  %v467 = vshrl.u32 %v466, 7
  %v468 = vsub.s32 1, %v467
  %v469 = vrot.slane %v460, %v468
  %v472 = vmul.f32 %v108, %v465
  %v473 = vmul.f32 %v109, %v469
  %v474 = vmul.f32 %v110, %v465
  %v475 = vmul.f32 %v111, %v469
  %v476 = vmul.f32 %v112, %v465
  %v477 = vmul.f32 %v113, %v469
  %v478 = vmul.f32 %v465, 0.0
  %v479 = vmul.f32 %v469, 0.0
  %v480 = vmul.f32 %v116, %v465
  %v481 = vmul.f32 %v117, %v469
  %v482 = vmul.f32 %v118, %v465
  %v483 = vmul.f32 %v119, %v469
  %v484 = vmul.f32 %v120, %v465
  %v485 = vmul.f32 %v121, %v469
  %v486 = vadd.f32 %v443, %v472
  %v487 = vadd.f32 %v444, %v473
  %v488 = vadd.f32 %v445, %v474
  %v489 = vadd.f32 %v446, %v475
  %v490 = vadd.f32 %v447, %v476
  %v491 = vadd.f32 %v448, %v477
  %v492 = vadd.f32 %v449, %v478
  %v493 = vadd.f32 %v450, %v479
  %v494 = vadd.f32 %v451, %v480
  %v495 = vadd.f32 %v452, %v481
  %v496 = vadd.f32 %v453, %v482
  %v497 = vadd.f32 %v454, %v483
  %v498 = vadd.f32 %v455, %v484
  %v499 = vadd.f32 %v456, %v485
  %v500 = vadd.f32 %v457, %v478
  %v501 = vadd.f32 %v458, %v479
  %s502 = scalar_lea.vmem %s1, 7
  %v503 = vld [vmem:[%s502] ss:$8 sm:$0x3]
  %v505 = vlaneseq
  %v506 = vshrl.u32 %v505, 7
  %v507 = vsub.s32 0, %v506
  %v508 = vrot.slane %v503, %v507
  %v509 = vlaneseq
  %v510 = vshrl.u32 %v509, 7
  %v511 = vsub.s32 1, %v510
  %v512 = vrot.slane %v503, %v511
  %v515 = vmul.f32 %v140, %v508
  %v516 = vmul.f32 %v141, %v512
  %v517 = vmul.f32 %v142, %v508
  %v518 = vmul.f32 %v143, %v512
  %v519 = vmul.f32 %v144, %v508
  %v520 = vmul.f32 %v145, %v512
  %v521 = vmul.f32 %v508, 0.0
  %v522 = vmul.f32 %v512, 0.0
  %v523 = vmul.f32 %v148, %v508
  %v524 = vmul.f32 %v149, %v512
  %v525 = vmul.f32 %v150, %v508
  %v526 = vmul.f32 %v151, %v512
  %v527 = vmul.f32 %v152, %v508
  %v528 = vmul.f32 %v153, %v512
  %v529 = vadd.f32 %v486, %v515
  %v530 = vadd.f32 %v487, %v516
  %v531 = vadd.f32 %v488, %v517
  %v532 = vadd.f32 %v489, %v518
  %v533 = vadd.f32 %v490, %v519
  %v534 = vadd.f32 %v491, %v520
  %v535 = vadd.f32 %v492, %v521
  %v536 = vadd.f32 %v493, %v522
  %v537 = vadd.f32 %v494, %v523
  %v538 = vadd.f32 %v495, %v524
  %v539 = vadd.f32 %v496, %v525
  %v540 = vadd.f32 %v497, %v526
  %v541 = vadd.f32 %v498, %v527
  %v542 = vadd.f32 %v499, %v528
  %v543 = vadd.f32 %v500, %v521
  %v544 = vadd.f32 %v501, %v522
  %s545 = scalar_lea.vmem %s1, 16
  %v546 = vld [vmem:[%s545] ss:$8 sm:$0x3]
  %v548 = vlaneseq
  %v549 = vshrl.u32 %v548, 7
  %v550 = vsub.s32 0, %v549
  %v551 = vrot.slane %v546, %v550
  %v552 = vlaneseq
  %v553 = vshrl.u32 %v552, 7
  %v554 = vsub.s32 1, %v553
  %v555 = vrot.slane %v546, %v554
  %v558 = vmul.f32 %v172, %v551
  %v559 = vmul.f32 %v173, %v555
  %v560 = vmul.f32 %v174, %v551
  %v561 = vmul.f32 %v175, %v555
  %v562 = vmul.f32 %v176, %v551
  %v563 = vmul.f32 %v177, %v555
  %v564 = vmul.f32 %v551, 0.0
  %v565 = vmul.f32 %v555, 0.0
  %v566 = vmul.f32 %v180, %v551
  %v567 = vmul.f32 %v181, %v555
  %v568 = vmul.f32 %v182, %v551
  %v569 = vmul.f32 %v183, %v555
  %v570 = vmul.f32 %v184, %v551
  %v571 = vmul.f32 %v185, %v555
  %v572 = vadd.f32 %v529, %v558
  %v573 = vadd.f32 %v530, %v559
  %v574 = vadd.f32 %v531, %v560
  %v575 = vadd.f32 %v532, %v561
  %v576 = vadd.f32 %v533, %v562
  %v577 = vadd.f32 %v534, %v563
  %v578 = vadd.f32 %v535, %v564
  %v579 = vadd.f32 %v536, %v565
  %v580 = vadd.f32 %v537, %v566
  %v581 = vadd.f32 %v538, %v567
  %v582 = vadd.f32 %v539, %v568
  %v583 = vadd.f32 %v540, %v569
  %v584 = vadd.f32 %v541, %v570
  %v585 = vadd.f32 %v542, %v571
  %v586 = vadd.f32 %v543, %v564
  %v587 = vadd.f32 %v544, %v565
  %v604 = vcombine.low %v572, %v573
  %v605 = vcombine.low %v574, %v575
  %v606 = vcombine.low %v576, %v577
  %v607 = vcombine.low %v578, %v579
  %v608 = vcombine.low %v580, %v581
  %v609 = vcombine.low %v582, %v583
  %v610 = vcombine.low %v584, %v585
  %v611 = vcombine.low %v586, %v587
  %v620 = vld [vmem:[%s2] sm:$0x3]
  %v622 = vlaneseq
  %v623 = vshrl.u32 %v622, 7
  %v624 = vsub.s32 0, %v623
  %v625 = vrot.slane %v620, %v624
  %v626 = vlaneseq
  %v627 = vshrl.u32 %v626, 7
  %v628 = vsub.s32 1, %v627
  %v629 = vrot.slane %v620, %v628
  %v630 = vcombine.low %v625, %v629
  %v631 = vcombine.high %v625, %v629
  %v634 = vadd.f32 %v604, %v630
  %v635 = vadd.f32 %v605, %v631
  %v636 = vadd.f32 %v606, %v630
  %v637 = vadd.f32 %v607, %v631
  %v638 = vadd.f32 %v608, %v630
  %v639 = vadd.f32 %v609, %v631
  %v640 = vadd.f32 %v610, %v630
  %v641 = vadd.f32 %v611, %v631
  %v642 = vmul.f32 %v634, 0.5
  %v643 = vmul.f32 %v635, 0.5
  %v644 = vmul.f32 %v636, 0.5
  %v645 = vmul.f32 %v637, 0.5
  %v646 = vmul.f32 %v638, 0.5
  %v647 = vmul.f32 %v639, 0.5
  %v648 = vmul.f32 %v640, 0.5
  %v649 = vmul.f32 %v641, 0.5
  %v650 = vmul.f32 %v634, 0.70710677
  %v651 = vmul.f32 %v635, 0.70710677
  %v652 = vmul.f32 %v636, 0.70710677
  %v653 = vmul.f32 %v637, 0.70710677
  %v654 = vmul.f32 %v638, 0.70710677
  %v655 = vmul.f32 %v639, 0.70710677
  %v656 = vmul.f32 %v640, 0.70710677
  %v657 = vmul.f32 %v641, 0.70710677
  %v658 = verf.f32.pop %v650
  %v659 = verf.f32.pop %v651
  %v660 = verf.f32.pop %v652
  %v661 = verf.f32.pop %v653
  %v662 = verf.f32.pop %v654
  %v663 = verf.f32.pop %v655
  %v664 = verf.f32.pop %v656
  %v665 = verf.f32.pop %v657
  %v666 = vadd.f32 %v658, 1.0
  %v667 = vadd.f32 %v659, 1.0
  %v668 = vadd.f32 %v660, 1.0
  %v669 = vadd.f32 %v661, 1.0
  %v670 = vadd.f32 %v662, 1.0
  %v671 = vadd.f32 %v663, 1.0
  %v672 = vadd.f32 %v664, 1.0
  %v673 = vadd.f32 %v665, 1.0
  %v674 = vmul.f32 %v642, %v666
  %v675 = vmul.f32 %v643, %v667
  %v676 = vmul.f32 %v644, %v668
  %v677 = vmul.f32 %v645, %v669
  %v678 = vmul.f32 %v646, %v670
  %v679 = vmul.f32 %v647, %v671
  %v680 = vmul.f32 %v648, %v672
  %v681 = vmul.f32 %v649, %v673
  %v690 = vcombine.low %v674, %v675
  %v691 = vcombine.high %v674, %v675
  %v692 = vcombine.low %v676, %v677
  %v693 = vcombine.high %v676, %v677
  %v694 = vcombine.low %v678, %v679
  %v695 = vcombine.high %v678, %v679
  %v696 = vcombine.low %v680, %v681
  %v697 = vcombine.high %v680, %v681
  %v706 = vadd.f32 %v690, %v692
  %v707 = vadd.f32 %v706, %v694
  %v708 = vadd.f32 %v707, %v696
  %v709 = vrot.slane %v708, 4
  %v710 = vadd.f32 %v708, %v709
  %v711 = vrot.slane %v710, 2
  %v712 = vadd.f32 %v710, %v711
  %v713 = vrot.slane %v712, 1
  %v714 = vadd.f32 %v712, %v713
  %v715 = vadd.f32 %v691, %v693
  %v716 = vadd.f32 %v715, %v695
  %v717 = vadd.f32 %v716, %v697
  %v718 = vrot.slane %v717, 4
  %v719 = vadd.f32 %v717, %v718
  %v720 = vrot.slane %v719, 2
  %v721 = vadd.f32 %v719, %v720
  %v722 = vrot.slane %v721, 1
  %v723 = vadd.f32 %v721, %v722
  %v724 = vrcp.pop 32.0
  %v725 = vmul.f32 %v714, %v724
  %v726 = vmul.f32 %v723, %v724
  %v729 = vcombine.low %v725, %v726
  %v730 = vcombine.high %v725, %v726
  %v733 = vsub.f32 %v674, %v729
  %v734 = vsub.f32 %v675, %v730
  %v735 = vsub.f32 %v676, %v729
  %v736 = vsub.f32 %v677, %v730
  %v737 = vsub.f32 %v678, %v729
  %v738 = vsub.f32 %v679, %v730
  %v739 = vsub.f32 %v680, %v729
  %v740 = vsub.f32 %v681, %v730
  %v741 = vmul.f32 %v733, %v733
  %v742 = vmul.f32 %v734, %v734
  %v743 = vmul.f32 %v735, %v735
  %v744 = vmul.f32 %v736, %v736
  %v745 = vmul.f32 %v737, %v737
  %v746 = vmul.f32 %v738, %v738
  %v747 = vmul.f32 %v739, %v739
  %v748 = vmul.f32 %v740, %v740
  %v757 = vcombine.low %v741, %v742
  %v758 = vcombine.high %v741, %v742
  %v759 = vcombine.low %v743, %v744
  %v760 = vcombine.high %v743, %v744
  %v761 = vcombine.low %v745, %v746
  %v762 = vcombine.high %v745, %v746
  %v763 = vcombine.low %v747, %v748
  %v764 = vcombine.high %v747, %v748
  %v773 = vadd.f32 %v757, %v759
  %v774 = vadd.f32 %v773, %v761
  %v775 = vadd.f32 %v774, %v763
  %v776 = vrot.slane %v775, 4
  %v777 = vadd.f32 %v775, %v776
  %v778 = vrot.slane %v777, 2
  %v779 = vadd.f32 %v777, %v778
  %v780 = vrot.slane %v779, 1
  %v781 = vadd.f32 %v779, %v780
  %v782 = vadd.f32 %v758, %v760
  %v783 = vadd.f32 %v782, %v762
  %v784 = vadd.f32 %v783, %v764
  %v785 = vrot.slane %v784, 4
  %v786 = vadd.f32 %v784, %v785
  %v787 = vrot.slane %v786, 2
  %v788 = vadd.f32 %v786, %v787
  %v789 = vrot.slane %v788, 1
  %v790 = vadd.f32 %v788, %v789
  %v791 = vmul.f32 %v781, %v724
  %v792 = vmul.f32 %v790, %v724
  %v793 = vadd.f32 %v791, 1e-05
  %v794 = vadd.f32 %v792, 1e-05
  %v795 = vrsqrt.pop %v793
  %v796 = vrsqrt.pop %v794
  %v799 = vcombine.low %v795, %v796
  %v800 = vcombine.high %v795, %v796
  %v803 = vmul.f32 %v733, %v799
  %v804 = vmul.f32 %v734, %v800
  %v805 = vmul.f32 %v735, %v799
  %v806 = vmul.f32 %v736, %v800
  %v807 = vmul.f32 %v737, %v799
  %v808 = vmul.f32 %v738, %v800
  %v809 = vmul.f32 %v739, %v799
  %v810 = vmul.f32 %v740, %v800
  %v811 = vld [vmem:[%s3] sm:$0x3]
  %v813 = vlaneseq
  %v814 = vshrl.u32 %v813, 7
  %v815 = vsub.s32 0, %v814
  %v816 = vrot.slane %v811, %v815
  %v817 = vlaneseq
  %v818 = vshrl.u32 %v817, 7
  %v819 = vsub.s32 1, %v818
  %v820 = vrot.slane %v811, %v819
  %v821 = vcombine.low %v816, %v820
  %v822 = vcombine.high %v816, %v820
  %v825 = vmul.f32 %v803, %v821
  %v826 = vmul.f32 %v804, %v822
  %v827 = vmul.f32 %v805, %v821
  %v828 = vmul.f32 %v806, %v822
  %v829 = vmul.f32 %v807, %v821
  %v830 = vmul.f32 %v808, %v822
  %v831 = vmul.f32 %v809, %v821
  %v832 = vmul.f32 %v810, %v822
  %v833 = vld [vmem:[%s4] sm:$0x3]
  %v835 = vlaneseq
  %v836 = vshrl.u32 %v835, 7
  %v837 = vsub.s32 0, %v836
  %v838 = vrot.slane %v833, %v837
  %v839 = vlaneseq
  %v840 = vshrl.u32 %v839, 7
  %v841 = vsub.s32 1, %v840
  %v842 = vrot.slane %v833, %v841
  %v843 = vcombine.low %v838, %v842
  %v844 = vcombine.high %v838, %v842
  %v847 = vadd.f32 %v825, %v843
  %v848 = vadd.f32 %v826, %v844
  %v849 = vadd.f32 %v827, %v843
  %v850 = vadd.f32 %v828, %v844
  %v851 = vadd.f32 %v829, %v843
  %v852 = vadd.f32 %v830, %v844
  %v853 = vadd.f32 %v831, %v843
  %v854 = vadd.f32 %v832, %v844
  %v855 = vadd.f32 %v847, %v32
  %v856 = vadd.f32 %v848, %v33
  %v857 = vadd.f32 %v849, %v34
  %v858 = vadd.f32 %v850, %v35
  %v859 = vadd.f32 %v851, %v36
  %v860 = vadd.f32 %v852, %v37
  %v861 = vadd.f32 %v853, %v38
  %v862 = vadd.f32 %v854, %v39
  %v871 = vcombine.low %v855, %v856
  %v872 = vcombine.high %v855, %v856
  %v873 = vcombine.low %v857, %v858
  %v874 = vcombine.high %v857, %v858
  %v875 = vcombine.low %v859, %v860
  %v876 = vcombine.high %v859, %v860
  %v877 = vcombine.low %v861, %v862
  %v878 = vcombine.high %v861, %v862
  %v887 = vpack.c.bf16 %v873, %v871
  %v888 = vpack.c.bf16 %v874, %v872
  %v889 = vpack.c.bf16 %v877, %v875
  %v890 = vpack.c.bf16 %v878, %v876
  %v891 = vld [vmem:[%s5] sm:$0xff]
  %v892 = vld [vmem:[%s5 + $0x8] sm:$0xff]
  %v893 = vld [vmem:[%s5 + $0x10] sm:$0xff]
  %v894 = vld [vmem:[%s5 + $0x18] sm:$0xff]
  %v895 = vld [vmem:[%s5 + $0x20] sm:$0xff]
  %v896 = vld [vmem:[%s5 + $0x28] sm:$0xff]
  %v897 = vld [vmem:[%s5 + $0x30] sm:$0xff]
  %v898 = vld [vmem:[%s5 + $0x38] sm:$0xff]
  %v899 = vld [vmem:[%s5 + $0x40] sm:$0xff]
  %v900 = vld [vmem:[%s5 + $0x48] sm:$0xff]
  %v901 = vld [vmem:[%s5 + $0x50] sm:$0xff]
  %v902 = vld [vmem:[%s5 + $0x58] sm:$0xff]
  %v903 = vld [vmem:[%s5 + $0x60] sm:$0xff]
  %v904 = vld [vmem:[%s5 + $0x68] sm:$0xff]
  %v905 = vld [vmem:[%s5 + $0x70] sm:$0xff]
  %v906 = vld [vmem:[%s5 + $0x78] sm:$0xff]
  %v907 = vld [vmem:[%s5 + $0x80] sm:$0xff]
  %v908 = vld [vmem:[%s5 + $0x88] sm:$0xff]
  %v909 = vld [vmem:[%s5 + $0x90] sm:$0xff]
  %v910 = vld [vmem:[%s5 + $0x98] sm:$0xff]
  %v911 = vld [vmem:[%s5 + $0xa0] sm:$0xff]
  %v912 = vld [vmem:[%s5 + $0xa8] sm:$0xff]
  %v913 = vld [vmem:[%s5 + $0xb0] sm:$0xff]
  %v914 = vld [vmem:[%s5 + $0xb8] sm:$0xff]
  %v915 = vld [vmem:[%s5 + $0xc0] sm:$0xff]
  %v916 = vld [vmem:[%s5 + $0xc8] sm:$0xff]
  %v917 = vld [vmem:[%s5 + $0xd0] sm:$0xff]
  %v918 = vld [vmem:[%s5 + $0xd8] sm:$0xff]
  %v919 = vld [vmem:[%s5 + $0xe0] sm:$0xff]
  %v920 = vld [vmem:[%s5 + $0xe8] sm:$0xff]
  %v921 = vld [vmem:[%s5 + $0xf0] sm:$0xff]
  %v922 = vld [vmem:[%s5 + $0xf8] sm:$0xff]
  %v923 = vld [vmem:[%s6] sm:$0x3]
  %v925 = vlaneseq
  %v926 = vshrl.u32 %v925, 7
  %v927 = vsub.s32 0, %v926
  %v928 = vrot.slane %v923, %v927
  %v929 = vlaneseq
  %v930 = vshrl.u32 %v929, 7
  %v931 = vsub.s32 1, %v930
  %v932 = vrot.slane %v923, %v931
  %v967 = vunpack.c.l.b16 %v891
  %v968 = vunpack.c.h.b16 %v891
  %v969 = vunpack.c.l.b16 %v892
  %v970 = vunpack.c.h.b16 %v892
  %v971 = vunpack.c.l.b16 %v893
  %v972 = vunpack.c.h.b16 %v893
  %v973 = vunpack.c.l.b16 %v894
  %v974 = vunpack.c.h.b16 %v894
  %v975 = vunpack.c.l.b16 %v895
  %v976 = vunpack.c.h.b16 %v895
  %v977 = vunpack.c.l.b16 %v896
  %v978 = vunpack.c.h.b16 %v896
  %v979 = vunpack.c.l.b16 %v897
  %v980 = vunpack.c.h.b16 %v897
  %v981 = vunpack.c.l.b16 %v898
  %v982 = vunpack.c.h.b16 %v898
  %v983 = vunpack.c.l.b16 %v899
  %v984 = vunpack.c.h.b16 %v899
  %v985 = vunpack.c.l.b16 %v900
  %v986 = vunpack.c.h.b16 %v900
  %v987 = vunpack.c.l.b16 %v901
  %v988 = vunpack.c.h.b16 %v901
  %v989 = vunpack.c.l.b16 %v902
  %v990 = vunpack.c.h.b16 %v902
  %v991 = vunpack.c.l.b16 %v903
  %v992 = vunpack.c.h.b16 %v903
  %v993 = vunpack.c.l.b16 %v904
  %v994 = vunpack.c.h.b16 %v904
  %v995 = vunpack.c.l.b16 %v905
  %v996 = vunpack.c.h.b16 %v905
  %v997 = vunpack.c.l.b16 %v906
  %v998 = vunpack.c.h.b16 %v906
  %v999 = vunpack.c.l.b16 %v907
  %v1000 = vunpack.c.h.b16 %v907
  %v1001 = vunpack.c.l.b16 %v908
  %v1002 = vunpack.c.h.b16 %v908
  %v1003 = vunpack.c.l.b16 %v909
  %v1004 = vunpack.c.h.b16 %v909
  %v1005 = vunpack.c.l.b16 %v910
  %v1006 = vunpack.c.h.b16 %v910
  %v1007 = vunpack.c.l.b16 %v911
  %v1008 = vunpack.c.h.b16 %v911
  %v1009 = vunpack.c.l.b16 %v912
  %v1010 = vunpack.c.h.b16 %v912
  %v1011 = vunpack.c.l.b16 %v913
  %v1012 = vunpack.c.h.b16 %v913
  %v1013 = vunpack.c.l.b16 %v914
  %v1014 = vunpack.c.h.b16 %v914
  %v1015 = vunpack.c.l.b16 %v915
  %v1016 = vunpack.c.h.b16 %v915
  %v1017 = vunpack.c.l.b16 %v916
  %v1018 = vunpack.c.h.b16 %v916
  %v1019 = vunpack.c.l.b16 %v917
  %v1020 = vunpack.c.h.b16 %v917
  %v1021 = vunpack.c.l.b16 %v918
  %v1022 = vunpack.c.h.b16 %v918
  %v1023 = vunpack.c.l.b16 %v919
  %v1024 = vunpack.c.h.b16 %v919
  %v1025 = vunpack.c.l.b16 %v920
  %v1026 = vunpack.c.h.b16 %v920
  %v1027 = vunpack.c.l.b16 %v921
  %v1028 = vunpack.c.h.b16 %v921
  %v1029 = vunpack.c.l.b16 %v922
  %v1030 = vunpack.c.h.b16 %v922
  %v1031 = vpack.c.b16 %v969, %v967
  %v1032 = vpack.c.b16 %v970, %v968
  %v1033 = vpack.c.b16 %v973, %v971
  %v1034 = vpack.c.b16 %v974, %v972
  %v1035 = vpack.c.b16 %v977, %v975
  %v1036 = vpack.c.b16 %v978, %v976
  %v1037 = vpack.c.b16 %v981, %v979
  %v1038 = vpack.c.b16 %v982, %v980
  %v1039 = vpack.c.b16 %v985, %v983
  %v1040 = vpack.c.b16 %v986, %v984
  %v1041 = vpack.c.b16 %v989, %v987
  %v1042 = vpack.c.b16 %v990, %v988
  %v1043 = vpack.c.b16 %v993, %v991
  %v1044 = vpack.c.b16 %v994, %v992
  %v1045 = vpack.c.b16 %v997, %v995
  %v1046 = vpack.c.b16 %v998, %v996
  %v1047 = vpack.c.b16 %v1001, %v999
  %v1048 = vpack.c.b16 %v1002, %v1000
  %v1049 = vpack.c.b16 %v1005, %v1003
  %v1050 = vpack.c.b16 %v1006, %v1004
  %v1051 = vpack.c.b16 %v1009, %v1007
  %v1052 = vpack.c.b16 %v1010, %v1008
  %v1053 = vpack.c.b16 %v1013, %v1011
  %v1054 = vpack.c.b16 %v1014, %v1012
  %v1055 = vpack.c.b16 %v1017, %v1015
  %v1056 = vpack.c.b16 %v1018, %v1016
  %v1057 = vpack.c.b16 %v1021, %v1019
  %v1058 = vpack.c.b16 %v1022, %v1020
  %v1059 = vpack.c.b16 %v1025, %v1023
  %v1060 = vpack.c.b16 %v1026, %v1024
  %v1061 = vpack.c.b16 %v1029, %v1027
  %v1062 = vpack.c.b16 %v1030, %v1028
  %1095 = vmatprep.subr.bf16.mxu0 %v1046
  %1096 = vmatpush1.bf16.msra.mxu0 %v1045
  %1097 = vmatprep.subr.bf16.mxu0 %v1044
  %1098 = vmatpush1.bf16.msra.mxu0 %v1043
  %1099 = vmatprep.subr.bf16.mxu0 %v1042
  %1100 = vmatpush1.bf16.msra.mxu0 %v1041
  %1101 = vmatprep.subr.bf16.mxu0 %v1040
  %1102 = vmatpush1.bf16.msra.mxu0 %v1039
  %1103 = vmatprep.subr.bf16.mxu0 %v1038
  %1104 = vmatpush1.bf16.msra.mxu0 %v1037
  %1105 = vmatprep.subr.bf16.mxu0 %v1036
  %1106 = vmatpush1.bf16.msra.mxu0 %v1035
  %1107 = vmatprep.subr.bf16.mxu0 %v1034
  %1108 = vmatpush1.bf16.msra.mxu0 %v1033
  %1109 = vmatprep.subr.bf16.mxu0 %v1032
  %1110 = vmatpush1.bf16.msra.mxu0 %v1031
  %1111 = vmatprep.subr.bf16.mxu0 %v1062
  %1112 = vmatpush2.bf16.msra.mxu0 %v1061
  %1113 = vmatprep.subr.bf16.mxu0 %v1060
  %1114 = vmatpush2.bf16.msra.mxu0 %v1059
  %1115 = vmatprep.subr.bf16.mxu0 %v1058
  %1116 = vmatpush2.bf16.msra.mxu0 %v1057
  %1117 = vmatprep.subr.bf16.mxu0 %v1056
  %1118 = vmatpush2.bf16.msra.mxu0 %v1055
  %1119 = vmatprep.subr.bf16.mxu0 %v1054
  %1120 = vmatpush2.bf16.msra.mxu0 %v1053
  %1121 = vmatprep.subr.bf16.mxu0 %v1052
  %1122 = vmatpush2.bf16.msra.mxu0 %v1051
  %1123 = vmatprep.subr.bf16.mxu0 %v1050
  %1124 = vmatpush2.bf16.msra.mxu0 %v1049
  %1125 = vmatprep.subr.bf16.mxu0 %v1048
  %1126 = vmatpush2.bf16.msra.mxu0 %v1047
  %1127 = vmatprep.mubr.bf16.mxu0 %v888
  %1128 = vmatmul.mubr.bf16.gmra.mxu0 %v887
  %v1129 = vpop.f32.mrf.mxu0
  %v1130 = vadd.f32 %v928, %v1129
  %v1131 = vpop.f32.mrf.mxu0
  %v1132 = vadd.f32 %v932, %v1131
  %v1133 = vpop.f32.mrf.mxu0
  %v1134 = vadd.f32 %v928, %v1133
  %v1135 = vpop.f32.mrf.mxu0
  %v1136 = vadd.f32 %v932, %v1135
  %1137 = vmatprep.mubr.bf16.mxu0 %v890
  %1138 = vmatmul.mubr.bf16.gmra.mxu0 %v889
  %v1139 = vpop.f32.mrf.mxu0
  %v1140 = vadd.f32 %v928, %v1139
  %v1141 = vpop.f32.mrf.mxu0
  %v1142 = vadd.f32 %v932, %v1141
  %v1143 = vpop.f32.mrf.mxu0
  %v1144 = vadd.f32 %v928, %v1143
  %v1145 = vpop.f32.mrf.mxu0
  %v1146 = vadd.f32 %v932, %v1145
  %1147 = vdwg.mxu0
  %v1148 = vmul.f32 %v1130, 0.5
  %v1149 = vmul.f32 %v1132, 0.5
  %v1150 = vmul.f32 %v1134, 0.5
  %v1151 = vmul.f32 %v1136, 0.5
  %v1152 = vmul.f32 %v1140, 0.5
  %v1153 = vmul.f32 %v1142, 0.5
  %v1154 = vmul.f32 %v1144, 0.5
  %v1155 = vmul.f32 %v1146, 0.5
  %v1156 = vmul.f32 %v1130, 0.70710677
  %v1157 = vmul.f32 %v1132, 0.70710677
  %v1158 = vmul.f32 %v1134, 0.70710677
  %v1159 = vmul.f32 %v1136, 0.70710677
  %v1160 = vmul.f32 %v1140, 0.70710677
  %v1161 = vmul.f32 %v1142, 0.70710677
  %v1162 = vmul.f32 %v1144, 0.70710677
  %v1163 = vmul.f32 %v1146, 0.70710677
  %v1164 = verf.f32.pop %v1156
  %v1165 = verf.f32.pop %v1157
  %v1166 = verf.f32.pop %v1158
  %v1167 = verf.f32.pop %v1159
  %v1168 = verf.f32.pop %v1160
  %v1169 = verf.f32.pop %v1161
  %v1170 = verf.f32.pop %v1162
  %v1171 = verf.f32.pop %v1163
  %v1172 = vadd.f32 %v1164, 1.0
  %v1173 = vadd.f32 %v1165, 1.0
  %v1174 = vadd.f32 %v1166, 1.0
  %v1175 = vadd.f32 %v1167, 1.0
  %v1176 = vadd.f32 %v1168, 1.0
  %v1177 = vadd.f32 %v1169, 1.0
  %v1178 = vadd.f32 %v1170, 1.0
  %v1179 = vadd.f32 %v1171, 1.0
  %v1180 = vmul.f32 %v1148, %v1172
  %v1181 = vmul.f32 %v1149, %v1173
  %v1182 = vmul.f32 %v1150, %v1174
  %v1183 = vmul.f32 %v1151, %v1175
  %v1184 = vmul.f32 %v1152, %v1176
  %v1185 = vmul.f32 %v1153, %v1177
  %v1186 = vmul.f32 %v1154, %v1178
  %v1187 = vmul.f32 %v1155, %v1179
  %v1188 = vmul.f32 %v923, 0.5
  %v1189 = vmul.f32 %v923, 0.70710677
  %v1190 = verf.f32.pop %v1189
  %v1191 = vadd.f32 %v1190, 1.0
  %v1192 = vmul.f32 %v1188, %v1191
  %v1193 = vadd.f32 %v1180, %v1182
  %v1194 = vadd.f32 %v1193, %v1184
  %v1195 = vadd.f32 %v1194, %v1186
  %v1196 = vrot.slane %v1195, 4
  %v1197 = vadd.f32 %v1195, %v1196
  %v1198 = vrot.slane %v1197, 2
  %v1199 = vadd.f32 %v1197, %v1198
  %v1200 = vrot.slane %v1199, 1
  %v1201 = vadd.f32 %v1199, %v1200
  %v1202 = vadd.f32 %v1181, %v1183
  %v1203 = vadd.f32 %v1202, %v1185
  %v1204 = vadd.f32 %v1203, %v1187
  %v1205 = vrot.slane %v1204, 4
  %v1206 = vadd.f32 %v1204, %v1205
  %v1207 = vrot.slane %v1206, 2
  %v1208 = vadd.f32 %v1206, %v1207
  %v1209 = vrot.slane %v1208, 1
  %v1210 = vadd.f32 %v1208, %v1209
  %v1211 = vmul.f32 %v1192, 40.0
  %v1213 = vlaneseq
  %v1214 = vshrl.u32 %v1213, 7
  %v1215 = vsub.s32 0, %v1214
  %v1216 = vrot.slane %v1211, %v1215
  %v1217 = vlaneseq
  %v1218 = vshrl.u32 %v1217, 7
  %v1219 = vsub.s32 1, %v1218
  %v1220 = vrot.slane %v1211, %v1219
  %v1223 = vadd.f32 %v1201, %v1216
  %v1224 = vadd.f32 %v1210, %v1220
  %v1225 = vrcp.pop 72.0
  %v1226 = vmul.f32 %v1223, %v1225
  %v1227 = vmul.f32 %v1224, %v1225
  %v1228 = vlaneseq
  %v1229 = vshrl.u32 %v1228, 7
  %v1230 = vsub.s32 0, %v1229
  %v1231 = vrot.slane %v1226, %v1230
  %v1232 = vlaneseq
  %v1233 = vshrl.u32 %v1232, 7
  %v1234 = vsub.s32 0, %v1233
  %v1235 = vrot.slane %v1227, %v1234
  %v1236 = vsub.f32 %v1180, %v1231
  %v1237 = vsub.f32 %v1181, %v1235
  %v1238 = vsub.f32 %v1182, %v1231
  %v1239 = vsub.f32 %v1183, %v1235
  %v1240 = vsub.f32 %v1184, %v1231
  %v1241 = vsub.f32 %v1185, %v1235
  %v1242 = vsub.f32 %v1186, %v1231
  %v1243 = vsub.f32 %v1187, %v1235
  %v1246 = vcombine.low %v1226, %v1227
  %v1248 = vunpack.c.l.s4 1966171168
  %v1249 = vunpack.c.0.s8 %v1248
  %v1250 = vlaneseq
  %v1251 = vshrl.u32 %v1250, 7
  %v1252 = vsub.s32 %v1249, %v1251
  %v1253 = vrot.slane %v1246, %v1252
  %v1255 = vunpack.c.l.s4 1966171168
  %v1256 = vunpack.c.0.s8 %v1255
  %v1257 = vlaneseq
  %v1258 = vshrl.u32 %v1257, 7
  %v1259 = vsub.s32 %v1256, %v1258
  %v1260 = vrot.slane %v1253, %v1259
  %v1262 = vsub.f32 %v1192, %v1260
  %v1263 = vmul.f32 %v1236, %v1236
  %v1264 = vmul.f32 %v1237, %v1237
  %v1265 = vmul.f32 %v1238, %v1238
  %v1266 = vmul.f32 %v1239, %v1239
  %v1267 = vmul.f32 %v1240, %v1240
  %v1268 = vmul.f32 %v1241, %v1241
  %v1269 = vmul.f32 %v1242, %v1242
  %v1270 = vmul.f32 %v1243, %v1243
  %v1271 = vadd.f32 %v1263, %v1265
  %v1272 = vadd.f32 %v1271, %v1267
  %v1273 = vadd.f32 %v1272, %v1269
  %v1274 = vrot.slane %v1273, 4
  %v1275 = vadd.f32 %v1273, %v1274
  %v1276 = vrot.slane %v1275, 2
  %v1277 = vadd.f32 %v1275, %v1276
  %v1278 = vrot.slane %v1277, 1
  %v1279 = vadd.f32 %v1277, %v1278
  %v1280 = vadd.f32 %v1264, %v1266
  %v1281 = vadd.f32 %v1280, %v1268
  %v1282 = vadd.f32 %v1281, %v1270
  %v1283 = vrot.slane %v1282, 4
  %v1284 = vadd.f32 %v1282, %v1283
  %v1285 = vrot.slane %v1284, 2
  %v1286 = vadd.f32 %v1284, %v1285
  %v1287 = vrot.slane %v1286, 1
  %v1288 = vadd.f32 %v1286, %v1287
  %v1289 = vmul.f32 %v1262, %v1262
  %v1290 = vmul.f32 %v1289, 40.0
  %v1292 = vlaneseq
  %v1293 = vshrl.u32 %v1292, 7
  %v1294 = vsub.s32 0, %v1293
  %v1295 = vrot.slane %v1290, %v1294
  %v1296 = vlaneseq
  %v1297 = vshrl.u32 %v1296, 7
  %v1298 = vsub.s32 1, %v1297
  %v1299 = vrot.slane %v1290, %v1298
  %v1302 = vadd.f32 %v1279, %v1295
  %v1303 = vadd.f32 %v1288, %v1299
  %v1304 = vmul.f32 %v1302, %v1225
  %v1305 = vmul.f32 %v1303, %v1225
  %v1306 = vadd.f32 %v1304, 1e-05
  %v1307 = vadd.f32 %v1305, 1e-05
  %v1308 = vrsqrt.pop %v1306
  %v1309 = vrsqrt.pop %v1307
  %v1310 = vlaneseq
  %v1311 = vshrl.u32 %v1310, 7
  %v1312 = vsub.s32 0, %v1311
  %v1313 = vrot.slane %v1308, %v1312
  %v1314 = vlaneseq
  %v1315 = vshrl.u32 %v1314, 7
  %v1316 = vsub.s32 0, %v1315
  %v1317 = vrot.slane %v1309, %v1316
  %v1318 = vmul.f32 %v1236, %v1313
  %v1319 = vmul.f32 %v1237, %v1317
  %v1320 = vmul.f32 %v1238, %v1313
  %v1321 = vmul.f32 %v1239, %v1317
  %v1322 = vmul.f32 %v1240, %v1313
  %v1323 = vmul.f32 %v1241, %v1317
  %v1324 = vmul.f32 %v1242, %v1313
  %v1325 = vmul.f32 %v1243, %v1317
  %v1326 = vld [vmem:[%s7] sm:$0x3]
  %v1328 = vlaneseq
  %v1329 = vshrl.u32 %v1328, 7
  %v1330 = vsub.s32 0, %v1329
  %v1331 = vrot.slane %v1326, %v1330
  %v1332 = vlaneseq
  %v1333 = vshrl.u32 %v1332, 7
  %v1334 = vsub.s32 1, %v1333
  %v1335 = vrot.slane %v1326, %v1334
  %v1338 = vmul.f32 %v1318, %v1331
  %v1339 = vmul.f32 %v1319, %v1335
  %v1340 = vmul.f32 %v1320, %v1331
  %v1341 = vmul.f32 %v1321, %v1335
  %v1342 = vmul.f32 %v1322, %v1331
  %v1343 = vmul.f32 %v1323, %v1335
  %v1344 = vmul.f32 %v1324, %v1331
  %v1345 = vmul.f32 %v1325, %v1335
  %v1346 = vld [vmem:[%s8] sm:$0x3]
  %v1348 = vlaneseq
  %v1349 = vshrl.u32 %v1348, 7
  %v1350 = vsub.s32 0, %v1349
  %v1351 = vrot.slane %v1346, %v1350
  %v1352 = vlaneseq
  %v1353 = vshrl.u32 %v1352, 7
  %v1354 = vsub.s32 1, %v1353
  %v1355 = vrot.slane %v1346, %v1354
  %v1358 = vadd.f32 %v1338, %v1351
  %v1359 = vadd.f32 %v1339, %v1355
  %v1360 = vadd.f32 %v1340, %v1351
  %v1361 = vadd.f32 %v1341, %v1355
  %v1362 = vadd.f32 %v1342, %v1351
  %v1363 = vadd.f32 %v1343, %v1355
  %v1364 = vadd.f32 %v1344, %v1351
  %v1365 = vadd.f32 %v1345, %v1355
  %v1374 = vcombine.low %v1358, %v1359
  %v1375 = vcombine.high %v1358, %v1359
  %v1376 = vcombine.low %v1360, %v1361
  %v1377 = vcombine.high %v1360, %v1361
  %v1378 = vcombine.low %v1362, %v1363
  %v1379 = vcombine.high %v1362, %v1363
  %v1380 = vcombine.low %v1364, %v1365
  %v1381 = vcombine.high %v1364, %v1365
  %v1384 = vcombine.low %v1308, %v1309
  %v1386 = vunpack.c.l.s4 1966171168
  %v1387 = vunpack.c.0.s8 %v1386
  %v1388 = vlaneseq
  %v1389 = vshrl.u32 %v1388, 7
  %v1390 = vsub.s32 %v1387, %v1389
  %v1391 = vrot.slane %v1384, %v1390
  %v1393 = vunpack.c.l.s4 1966171168
  %v1394 = vunpack.c.0.s8 %v1393
  %v1395 = vlaneseq
  %v1396 = vshrl.u32 %v1395, 7
  %v1397 = vsub.s32 %v1394, %v1396
  %v1398 = vrot.slane %v1391, %v1397
  %v1400 = vmul.f32 %v1262, %v1398
  %v1401 = vmul.f32 %v1400, %v1326
  %v1402 = vadd.f32 %v1401, %v1346
  %v1404 = vlaneseq
  %v1405 = vshrl.u32 %v1404, 7
  %v1406 = vsub.s32 0, %v1405
  %v1407 = vrot.slane %v1402, %v1406
  %v1408 = vlaneseq
  %v1409 = vshrl.u32 %v1408, 7
  %v1410 = vsub.s32 1, %v1409
  %v1411 = vrot.slane %v1402, %v1410
  %v1414 = vcombine.high %v1374, %v1374
  %v1415 = vcombine.high %v1375, %v1375
  %v1416 = vcombine.high %v1376, %v1376
  %v1417 = vcombine.high %v1377, %v1377
  %v1418 = vcombine.high %v1378, %v1378
  %v1419 = vcombine.high %v1379, %v1379
  %v1420 = vcombine.high %v1380, %v1380
  %v1421 = vcombine.high %v1381, %v1381
  %v1422 = vrot.slane %v1374, 7
  %v1423 = vrot.slane %v1414, 7
  %v1424 = vrot.slane %v1375, 7
  %v1425 = vrot.slane %v1415, 7
  %v1426 = vrot.slane %v1376, 7
  %v1427 = vrot.slane %v1416, 7
  %v1428 = vrot.slane %v1377, 7
  %v1429 = vrot.slane %v1417, 7
  %v1430 = vrot.slane %v1378, 7
  %v1431 = vrot.slane %v1418, 7
  %v1432 = vrot.slane %v1379, 7
  %v1433 = vrot.slane %v1419, 7
  %v1434 = vrot.slane %v1380, 7
  %v1435 = vrot.slane %v1420, 7
  %v1436 = vrot.slane %v1381, 7
  %v1437 = vrot.slane %v1421, 7
  %v1454 = vsel %vm88, %v1407, %v1422
  %v1455 = vsel %vm88, %v1411, %v1423
  %v1456 = vsel %vm88, %v1407, %v1424
  %v1457 = vsel %vm88, %v1411, %v1425
  %v1458 = vsel %vm88, %v1407, %v1426
  %v1459 = vsel %vm88, %v1411, %v1427
  %v1460 = vsel %vm88, %v1407, %v1428
  %v1461 = vsel %vm88, %v1411, %v1429
  %v1462 = vsel %vm88, %v1407, %v1430
  %v1463 = vsel %vm88, %v1411, %v1431
  %v1464 = vsel %vm88, %v1407, %v1432
  %v1465 = vsel %vm88, %v1411, %v1433
  %v1466 = vsel %vm88, %v1407, %v1434
  %v1467 = vsel %vm88, %v1411, %v1435
  %v1468 = vsel %vm88, %v1407, %v1436
  %v1469 = vsel %vm88, %v1411, %v1437
  %v1470 = vsel %vm105, %v1454, %v1407
  %v1471 = vsel %vm105, %v1455, %v1411
  %v1472 = vsel %vm105, %v1456, %v1407
  %v1473 = vsel %vm105, %v1457, %v1411
  %v1474 = vsel %vm105, %v1458, %v1407
  %v1475 = vsel %vm105, %v1459, %v1411
  %v1476 = vsel %vm105, %v1460, %v1407
  %v1477 = vsel %vm105, %v1461, %v1411
  %v1478 = vsel %vm105, %v1462, %v1407
  %v1479 = vsel %vm105, %v1463, %v1411
  %v1480 = vsel %vm105, %v1464, %v1407
  %v1481 = vsel %vm105, %v1465, %v1411
  %v1482 = vsel %vm105, %v1466, %v1407
  %v1483 = vsel %vm105, %v1467, %v1411
  %v1484 = vsel %vm105, %v1468, %v1407
  %v1485 = vsel %vm105, %v1469, %v1411
  %1486 = vst [vmem:[%s9] sm:$0x3f] %v1407
  %1487 = vst [vmem:[%s9 + $0x8] sm:$0x3f] %v1411
  %1488 = vst [vmem:[%s9 + $0x10] sm:$0x3f] %v1470
  %1489 = vst [vmem:[%s9 + $0x18] sm:$0x3f] %v1471
  %1490 = vst [vmem:[%s9 + $0x20] sm:$0x3f] %v1472
  %1491 = vst [vmem:[%s9 + $0x28] sm:$0x3f] %v1473
  %1492 = vst [vmem:[%s9 + $0x30] sm:$0x3f] %v1474
  %1493 = vst [vmem:[%s9 + $0x38] sm:$0x3f] %v1475
  %1494 = vst [vmem:[%s9 + $0x40] sm:$0x3f] %v1476
  %1495 = vst [vmem:[%s9 + $0x48] sm:$0x3f] %v1477
  %1496 = vst [vmem:[%s9 + $0x50] sm:$0x3f] %v1407
  %1497 = vst [vmem:[%s9 + $0x58] sm:$0x3f] %v1411
  %1498 = vst [vmem:[%s9 + $0x60] sm:$0x3f] %v1407
  %1499 = vst [vmem:[%s9 + $0x68] sm:$0x3f] %v1411
  %1500 = vst [vmem:[%s9 + $0x70] sm:$0x3f] %v1478
  %1501 = vst [vmem:[%s9 + $0x78] sm:$0x3f] %v1479
  %1502 = vst [vmem:[%s9 + $0x80] sm:$0x3f] %v1480
  %1503 = vst [vmem:[%s9 + $0x88] sm:$0x3f] %v1481
  %1504 = vst [vmem:[%s9 + $0x90] sm:$0x3f] %v1482
  %1505 = vst [vmem:[%s9 + $0x98] sm:$0x3f] %v1483
  %1506 = vst [vmem:[%s9 + $0xa0] sm:$0x3f] %v1484
  %1507 = vst [vmem:[%s9 + $0xa8] sm:$0x3f] %v1485
  %1508 = vst [vmem:[%s9 + $0xb0] sm:$0x3f] %v1407
  %1509 = vst [vmem:[%s9 + $0xb8] sm:$0x3f] %v1411
  // Predicated region
  $region38: #{patch_convmix_convnext_forward.5} parent=0 // pred_check
    _
  $region39: #{patch_convmix_convnext_forward.5} parent=0 // pred_check_branch
    %1511 = sbr.rel (0) target = $region41
  $region40: #{patch_convmix_convnext_forward.5} parent=0 // pred_region
    _
  $region41: #{patch_convmix_convnext_forward.5} parent=0 // pred_fallthru
    _
  // Predicated region
  $region42: #{patch_convmix_convnext_forward.5} parent=0 // pred_check
    _
  $region43: #{patch_convmix_convnext_forward.5} parent=0 // pred_check_branch
    %1513 = sbr.rel (0) target = $region45
  $region44: #{patch_convmix_convnext_forward.5} parent=0 // pred_region
    _
  $region45: #{patch_convmix_convnext_forward.5} parent=0 // pred_fallthru
    _

// kernel: patch_convmix_convnext_forward.6
$region0: #{patch_convmix_convnext_forward.6}
  #allocation0 [shape = 'u32[]', space=smem, size = 0x4, offset = 0x4, fixed_abs, tag = 'smem constant byte address 0x4 - core index']
  #allocation1 [shape = 'u32[144,128]{1,0:T(1,128)}', space=vmem, size = 0x12000, scoped, tag = 'internal scratch']
  %s0 = inlined_call_operand.vmem [shape: f32[2,6,6,256], index: 0, kind: input, shape index: {}]
  %s1 = inlined_call_operand.vmem [shape: f32[9,256], index: 1, kind: input, shape index: {}]
  %s2 = inlined_call_operand.vmem [shape: f32[1,256], index: 2, kind: input, shape index: {}]
  %s3 = inlined_call_operand.vmem [shape: f32[1,256], index: 3, kind: input, shape index: {}]
  %s4 = inlined_call_operand.vmem [shape: f32[1,256], index: 4, kind: input, shape index: {}]
  %s5 = inlined_call_operand.vmem [shape: bf16[256,256], index: 5, kind: input, shape index: {}]
  %s6 = inlined_call_operand.vmem [shape: f32[1,256], index: 6, kind: input, shape index: {}]
  %s7 = inlined_call_operand.vmem [shape: f32[1,256], index: 7, kind: input, shape index: {}]
  %s8 = inlined_call_operand.vmem [shape: f32[1,256], index: 8, kind: input, shape index: {}]
  %s9 = inlined_call_operand.vmem [shape: f32[2,8,8,256], index: 9, kind: output, shape index: {}]
  %s10 = sld [smem:[#allocation0]]
  $region46: #{patch_convmix_convnext_forward.6} parent=0
    _
  %s12 = ssub.s32 1, %s10
  %s13 = scalar_select 0, %s12, %s10
  // Predicated region
  $region2: #{patch_convmix_convnext_forward.6} parent=0 // pred_check
    _
  $region3: #{patch_convmix_convnext_forward.6} parent=0 // pred_check_branch
    %15 = sbr.rel (0) target = $region5
  $region4: #{patch_convmix_convnext_forward.6} parent=0 // pred_region
    _
  $region5: #{patch_convmix_convnext_forward.6} parent=0 // pred_fallthru
    _
  // Predicated region
  $region6: #{patch_convmix_convnext_forward.6} parent=0 // pred_check
    _
  $region7: #{patch_convmix_convnext_forward.6} parent=0 // pred_check_branch
    %17 = sbr.rel (0) target = $region9
  $region8: #{patch_convmix_convnext_forward.6} parent=0 // pred_region
    _
  $region9: #{patch_convmix_convnext_forward.6} parent=0 // pred_fallthru
    _
  // Predicated region
  $region10: #{patch_convmix_convnext_forward.6} parent=0 // pred_check
    _
  $region11: #{patch_convmix_convnext_forward.6} parent=0 // pred_check_branch
    %19 = sbr.rel (0) target = $region13
  $region12: #{patch_convmix_convnext_forward.6} parent=0 // pred_region
    _
  $region13: #{patch_convmix_convnext_forward.6} parent=0 // pred_fallthru
    _
  // Predicated region
  $region14: #{patch_convmix_convnext_forward.6} parent=0 // pred_check
    _
  $region15: #{patch_convmix_convnext_forward.6} parent=0 // pred_check_branch
    %21 = sbr.rel (0) target = $region17
  $region16: #{patch_convmix_convnext_forward.6} parent=0 // pred_region
    _
  $region17: #{patch_convmix_convnext_forward.6} parent=0 // pred_fallthru
    _
  // Predicated region
  $region18: #{patch_convmix_convnext_forward.6} parent=0 // pred_check
    _
  $region19: #{patch_convmix_convnext_forward.6} parent=0 // pred_check_branch
    %23 = sbr.rel (0) target = $region21
  $region20: #{patch_convmix_convnext_forward.6} parent=0 // pred_region
    _
  $region21: #{patch_convmix_convnext_forward.6} parent=0 // pred_fallthru
    _
  // Predicated region
  $region22: #{patch_convmix_convnext_forward.6} parent=0 // pred_check
    _
  $region23: #{patch_convmix_convnext_forward.6} parent=0 // pred_check_branch
    %25 = sbr.rel (0) target = $region25
  $region24: #{patch_convmix_convnext_forward.6} parent=0 // pred_region
    _
  $region25: #{patch_convmix_convnext_forward.6} parent=0 // pred_fallthru
    _
  // Predicated region
  $region26: #{patch_convmix_convnext_forward.6} parent=0 // pred_check
    _
  $region27: #{patch_convmix_convnext_forward.6} parent=0 // pred_check_branch
    %27 = sbr.rel (0) target = $region29
  $region28: #{patch_convmix_convnext_forward.6} parent=0 // pred_region
    _
  $region29: #{patch_convmix_convnext_forward.6} parent=0 // pred_fallthru
    _
  // Predicated region
  $region30: #{patch_convmix_convnext_forward.6} parent=0 // pred_check
    _
  $region31: #{patch_convmix_convnext_forward.6} parent=0 // pred_check_branch
    %29 = sbr.rel (0) target = $region33
  $region32: #{patch_convmix_convnext_forward.6} parent=0 // pred_region
    _
  $region33: #{patch_convmix_convnext_forward.6} parent=0 // pred_fallthru
    _
  // Predicated region
  $region34: #{patch_convmix_convnext_forward.6} parent=0 // pred_check
    _
  $region35: #{patch_convmix_convnext_forward.6} parent=0 // pred_check_branch
    %31 = sbr.rel (0) target = $region37
  $region36: #{patch_convmix_convnext_forward.6} parent=0 // pred_region
    _
  $region37: #{patch_convmix_convnext_forward.6} parent=0 // pred_fallthru
    _
  %v32 = vld [vmem:[%s0] sm:$0x3f]
  %v33 = vld [vmem:[%s0 + $0x8] sm:$0x3f]
  %v34 = vld [vmem:[%s0 + $0x10] sm:$0x3f]
  %v35 = vld [vmem:[%s0 + $0x18] sm:$0x3f]
  %v36 = vld [vmem:[%s0 + $0x20] sm:$0x3f]
  %v37 = vld [vmem:[%s0 + $0x28] sm:$0x3f]
  %v38 = vld [vmem:[%s0 + $0x30] sm:$0x3f]
  %v39 = vld [vmem:[%s0 + $0x38] sm:$0x3f]
  %v40 = vld [vmem:[%s0 + $0x40] sm:$0x3f]
  %v41 = vld [vmem:[%s0 + $0x48] sm:$0x3f]
  %v42 = vld [vmem:[%s0 + $0x50] sm:$0x3f]
  %v43 = vld [vmem:[%s0 + $0x58] sm:$0x3f]
  %v44 = vld [vmem:[%s0 + $0x60] sm:$0x3f]
  %v45 = vld [vmem:[%s0 + $0x68] sm:$0x3f]
  %v46 = vld [vmem:[%s0 + $0x70] sm:$0x3f]
  %v47 = vld [vmem:[%s0 + $0x78] sm:$0x3f]
  %v48 = vld [vmem:[%s0 + $0x80] sm:$0x3f]
  %v49 = vld [vmem:[%s0 + $0x88] sm:$0x3f]
  %v50 = vld [vmem:[%s0 + $0x90] sm:$0x3f]
  %v51 = vld [vmem:[%s0 + $0x98] sm:$0x3f]
  %v52 = vld [vmem:[%s0 + $0xa0] sm:$0x3f]
  %v53 = vld [vmem:[%s0 + $0xa8] sm:$0x3f]
  %v54 = vld [vmem:[%s0 + $0xb0] sm:$0x3f]
  %v55 = vld [vmem:[%s0 + $0xb8] sm:$0x3f]
  %v80 = vrot.slane %v32, 7
  %v81 = vrot.slane %v33, 7
  %v82 = vrot.slane %v34, 7
  %v83 = vrot.slane %v35, 7
  %v84 = vrot.slane %v36, 7
  %v85 = vrot.slane %v37, 7
  %v86 = vrot.slane %v38, 7
  %v87 = vrot.slane %v39, 7
  %v88 = vrot.slane %v40, 7
  %v89 = vrot.slane %v41, 7
  %v90 = vrot.slane %v42, 7
  %v91 = vrot.slane %v43, 7
  %v92 = vrot.slane %v44, 7
  %v93 = vrot.slane %v45, 7
  %v94 = vrot.slane %v46, 7
  %v95 = vrot.slane %v47, 7
  %v96 = vrot.slane %v48, 7
  %v97 = vrot.slane %v49, 7
  %v98 = vrot.slane %v50, 7
  %v99 = vrot.slane %v51, 7
  %v100 = vrot.slane %v52, 7
  %v101 = vrot.slane %v53, 7
  %v102 = vrot.slane %v54, 7
  %v103 = vrot.slane %v55, 7
  %vm128 = vcmask 1040384
  %v129 = vsel %vm128, 0.0, %v80
  %v130 = vsel %vm128, 0.0, %v81
  %v131 = vsel %vm128, 0.0, %v82
  %v132 = vsel %vm128, 0.0, %v83
  %v133 = vsel %vm128, 0.0, %v84
  %v134 = vsel %vm128, 0.0, %v85
  %v135 = vsel %vm128, 0.0, %v86
  %v136 = vsel %vm128, 0.0, %v87
  %v137 = vsel %vm128, 0.0, %v88
  %v138 = vsel %vm128, 0.0, %v89
  %v139 = vsel %vm128, 0.0, %v90
  %v140 = vsel %vm128, 0.0, %v91
  %v141 = vsel %vm128, 0.0, %v92
  %v142 = vsel %vm128, 0.0, %v93
  %v143 = vsel %vm128, 0.0, %v94
  %v144 = vsel %vm128, 0.0, %v95
  %v145 = vsel %vm128, 0.0, %v96
  %v146 = vsel %vm128, 0.0, %v97
  %v147 = vsel %vm128, 0.0, %v98
  %v148 = vsel %vm128, 0.0, %v99
  %v149 = vsel %vm128, 0.0, %v100
  %v150 = vsel %vm128, 0.0, %v101
  %v151 = vsel %vm128, 0.0, %v102
  %v152 = vsel %vm128, 0.0, %v103
  %vm153 = vcmask 1046528
  %v154 = vsel %vm153, %v129, 0.0
  %v155 = vsel %vm153, %v130, 0.0
  %v156 = vsel %vm153, %v131, 0.0
  %v157 = vsel %vm153, %v132, 0.0
  %v158 = vsel %vm153, %v133, 0.0
  %v159 = vsel %vm153, %v134, 0.0
  %v160 = vsel %vm153, %v135, 0.0
  %v161 = vsel %vm153, %v136, 0.0
  %v162 = vsel %vm153, %v137, 0.0
  %v163 = vsel %vm153, %v138, 0.0
  %v164 = vsel %vm153, %v139, 0.0
  %v165 = vsel %vm153, %v140, 0.0
  %v166 = vsel %vm153, %v141, 0.0
  %v167 = vsel %vm153, %v142, 0.0
  %v168 = vsel %vm153, %v143, 0.0
  %v169 = vsel %vm153, %v144, 0.0
  %v170 = vsel %vm153, %v145, 0.0
  %v171 = vsel %vm153, %v146, 0.0
  %v172 = vsel %vm153, %v147, 0.0
  %v173 = vsel %vm153, %v148, 0.0
  %v174 = vsel %vm153, %v149, 0.0
  %v175 = vsel %vm153, %v150, 0.0
  %v176 = vsel %vm153, %v151, 0.0
  %v177 = vsel %vm153, %v152, 0.0
  %v202 = vrot.slane %v154, 1
  %v203 = vrot.slane %v155, 1
  %v204 = vrot.slane %v156, 1
  %v205 = vrot.slane %v157, 1
  %v206 = vrot.slane %v158, 1
  %v207 = vrot.slane %v159, 1
  %v208 = vrot.slane %v160, 1
  %v209 = vrot.slane %v161, 1
  %v210 = vrot.slane %v162, 1
  %v211 = vrot.slane %v163, 1
  %v212 = vrot.slane %v164, 1
  %v213 = vrot.slane %v165, 1
  %v214 = vrot.slane %v166, 1
  %v215 = vrot.slane %v167, 1
  %v216 = vrot.slane %v168, 1
  %v217 = vrot.slane %v169, 1
  %v218 = vrot.slane %v170, 1
  %v219 = vrot.slane %v171, 1
  %v220 = vrot.slane %v172, 1
  %v221 = vrot.slane %v173, 1
  %v222 = vrot.slane %v174, 1
  %v223 = vrot.slane %v175, 1
  %v224 = vrot.slane %v176, 1
  %v225 = vrot.slane %v177, 1
  %v250 = vrot.slane %v154, 2
  %v251 = vrot.slane %v155, 2
  %v252 = vrot.slane %v156, 2
  %v253 = vrot.slane %v157, 2
  %v254 = vrot.slane %v158, 2
  %v255 = vrot.slane %v159, 2
  %v256 = vrot.slane %v160, 2
  %v257 = vrot.slane %v161, 2
  %v258 = vrot.slane %v162, 2
  %v259 = vrot.slane %v163, 2
  %v260 = vrot.slane %v164, 2
  %v261 = vrot.slane %v165, 2
  %v262 = vrot.slane %v166, 2
  %v263 = vrot.slane %v167, 2
  %v264 = vrot.slane %v168, 2
  %v265 = vrot.slane %v169, 2
  %v266 = vrot.slane %v170, 2
  %v267 = vrot.slane %v171, 2
  %v268 = vrot.slane %v172, 2
  %v269 = vrot.slane %v173, 2
  %v270 = vrot.slane %v174, 2
  %v271 = vrot.slane %v175, 2
  %v272 = vrot.slane %v176, 2
  %v273 = vrot.slane %v177, 2
  %v298 = vld [vmem:[%s1] ss:$8 sm:$0x3]
  %v300 = vlaneseq
  %v301 = vshrl.u32 %v300, 7
  %v302 = vsub.s32 0, %v301
  %v303 = vrot.slane %v298, %v302
  %v304 = vlaneseq
  %v305 = vshrl.u32 %v304, 7
  %v306 = vsub.s32 1, %v305
  %v307 = vrot.slane %v298, %v306
  %v310 = vmul.f32 %v303, 0.0
  %v311 = vmul.f32 %v307, 0.0
  %v312 = vmul.f32 %v154, %v303
  %v313 = vmul.f32 %v155, %v307
  %v314 = vmul.f32 %v156, %v303
  %v315 = vmul.f32 %v157, %v307
  %v316 = vmul.f32 %v158, %v303
  %v317 = vmul.f32 %v159, %v307
  %v318 = vmul.f32 %v160, %v303
  %v319 = vmul.f32 %v161, %v307
  %v320 = vmul.f32 %v162, %v303
  %v321 = vmul.f32 %v163, %v307
  %v322 = vmul.f32 %v166, %v303
  %v323 = vmul.f32 %v167, %v307
  %v324 = vmul.f32 %v168, %v303
  %v325 = vmul.f32 %v169, %v307
  %v326 = vmul.f32 %v170, %v303
  %v327 = vmul.f32 %v171, %v307
  %v328 = vmul.f32 %v172, %v303
  %v329 = vmul.f32 %v173, %v307
  %v330 = vmul.f32 %v174, %v303
  %v331 = vmul.f32 %v175, %v307
  %v332 = vadd.f32 %v310, 0.0
  %v333 = vadd.f32 %v311, 0.0
  %v334 = vadd.f32 %v312, 0.0
  %v335 = vadd.f32 %v313, 0.0
  %v336 = vadd.f32 %v314, 0.0
  %v337 = vadd.f32 %v315, 0.0
  %v338 = vadd.f32 %v316, 0.0
  %v339 = vadd.f32 %v317, 0.0
  %v340 = vadd.f32 %v318, 0.0
  %v341 = vadd.f32 %v319, 0.0
  %v342 = vadd.f32 %v320, 0.0
  %v343 = vadd.f32 %v321, 0.0
  %v344 = vadd.f32 %v322, 0.0
  %v345 = vadd.f32 %v323, 0.0
  %v346 = vadd.f32 %v324, 0.0
  %v347 = vadd.f32 %v325, 0.0
  %v348 = vadd.f32 %v326, 0.0
  %v349 = vadd.f32 %v327, 0.0
  %v350 = vadd.f32 %v328, 0.0
  %v351 = vadd.f32 %v329, 0.0
  %v352 = vadd.f32 %v330, 0.0
  %v353 = vadd.f32 %v331, 0.0
  %s354 = scalar_lea.vmem %s1, 1
  %v355 = vld [vmem:[%s354] ss:$8 sm:$0x3]
  %v357 = vlaneseq
  %v358 = vshrl.u32 %v357, 7
  %v359 = vsub.s32 0, %v358
  %v360 = vrot.slane %v355, %v359
  %v361 = vlaneseq
  %v362 = vshrl.u32 %v361, 7
  %v363 = vsub.s32 1, %v362
  %v364 = vrot.slane %v355, %v363
  %v367 = vmul.f32 %v360, 0.0
  %v368 = vmul.f32 %v364, 0.0
  %v369 = vmul.f32 %v202, %v360
  %v370 = vmul.f32 %v203, %v364
  %v371 = vmul.f32 %v204, %v360
  %v372 = vmul.f32 %v205, %v364
  %v373 = vmul.f32 %v206, %v360
  %v374 = vmul.f32 %v207, %v364
  %v375 = vmul.f32 %v208, %v360
  %v376 = vmul.f32 %v209, %v364
  %v377 = vmul.f32 %v210, %v360
  %v378 = vmul.f32 %v211, %v364
  %v379 = vmul.f32 %v214, %v360
  %v380 = vmul.f32 %v215, %v364
  %v381 = vmul.f32 %v216, %v360
  %v382 = vmul.f32 %v217, %v364
  %v383 = vmul.f32 %v218, %v360
  %v384 = vmul.f32 %v219, %v364
  %v385 = vmul.f32 %v220, %v360
  %v386 = vmul.f32 %v221, %v364
  %v387 = vmul.f32 %v222, %v360
  %v388 = vmul.f32 %v223, %v364
  %v389 = vadd.f32 %v332, %v367
  %v390 = vadd.f32 %v333, %v368
  %v391 = vadd.f32 %v334, %v369
  %v392 = vadd.f32 %v335, %v370
  %v393 = vadd.f32 %v336, %v371
  %v394 = vadd.f32 %v337, %v372
  %v395 = vadd.f32 %v338, %v373
  %v396 = vadd.f32 %v339, %v374
  %v397 = vadd.f32 %v340, %v375
  %v398 = vadd.f32 %v341, %v376
  %v399 = vadd.f32 %v342, %v377
  %v400 = vadd.f32 %v343, %v378
  %v401 = vadd.f32 %v344, %v379
  %v402 = vadd.f32 %v345, %v380
  %v403 = vadd.f32 %v346, %v381
  %v404 = vadd.f32 %v347, %v382
  %v405 = vadd.f32 %v348, %v383
  %v406 = vadd.f32 %v349, %v384
  %v407 = vadd.f32 %v350, %v385
  %v408 = vadd.f32 %v351, %v386
  %v409 = vadd.f32 %v352, %v387
  %v410 = vadd.f32 %v353, %v388
  %s411 = scalar_lea.vmem %s1, 2
  %v412 = vld [vmem:[%s411] ss:$8 sm:$0x3]
  %v414 = vlaneseq
  %v415 = vshrl.u32 %v414, 7
  %v416 = vsub.s32 0, %v415
  %v417 = vrot.slane %v412, %v416
  %v418 = vlaneseq
  %v419 = vshrl.u32 %v418, 7
  %v420 = vsub.s32 1, %v419
  %v421 = vrot.slane %v412, %v420
  %v424 = vmul.f32 %v417, 0.0
  %v425 = vmul.f32 %v421, 0.0
  %v426 = vmul.f32 %v250, %v417
  %v427 = vmul.f32 %v251, %v421
  %v428 = vmul.f32 %v252, %v417
  %v429 = vmul.f32 %v253, %v421
  %v430 = vmul.f32 %v254, %v417
  %v431 = vmul.f32 %v255, %v421
  %v432 = vmul.f32 %v256, %v417
  %v433 = vmul.f32 %v257, %v421
  %v434 = vmul.f32 %v258, %v417
  %v435 = vmul.f32 %v259, %v421
  %v436 = vmul.f32 %v262, %v417
  %v437 = vmul.f32 %v263, %v421
  %v438 = vmul.f32 %v264, %v417
  %v439 = vmul.f32 %v265, %v421
  %v440 = vmul.f32 %v266, %v417
  %v441 = vmul.f32 %v267, %v421
  %v442 = vmul.f32 %v268, %v417
  %v443 = vmul.f32 %v269, %v421
  %v444 = vmul.f32 %v270, %v417
  %v445 = vmul.f32 %v271, %v421
  %v446 = vadd.f32 %v389, %v424
  %v447 = vadd.f32 %v390, %v425
  %v448 = vadd.f32 %v391, %v426
  %v449 = vadd.f32 %v392, %v427
  %v450 = vadd.f32 %v393, %v428
  %v451 = vadd.f32 %v394, %v429
  %v452 = vadd.f32 %v395, %v430
  %v453 = vadd.f32 %v396, %v431
  %v454 = vadd.f32 %v397, %v432
  %v455 = vadd.f32 %v398, %v433
  %v456 = vadd.f32 %v399, %v434
  %v457 = vadd.f32 %v400, %v435
  %v458 = vadd.f32 %v401, %v436
  %v459 = vadd.f32 %v402, %v437
  %v460 = vadd.f32 %v403, %v438
  %v461 = vadd.f32 %v404, %v439
  %v462 = vadd.f32 %v405, %v440
  %v463 = vadd.f32 %v406, %v441
  %v464 = vadd.f32 %v407, %v442
  %v465 = vadd.f32 %v408, %v443
  %v466 = vadd.f32 %v409, %v444
  %v467 = vadd.f32 %v410, %v445
  %s468 = scalar_lea.vmem %s1, 3
  %v469 = vld [vmem:[%s468] ss:$8 sm:$0x3]
  %v471 = vlaneseq
  %v472 = vshrl.u32 %v471, 7
  %v473 = vsub.s32 0, %v472
  %v474 = vrot.slane %v469, %v473
  %v475 = vlaneseq
  %v476 = vshrl.u32 %v475, 7
  %v477 = vsub.s32 1, %v476
  %v478 = vrot.slane %v469, %v477
  %v481 = vmul.f32 %v154, %v474
  %v482 = vmul.f32 %v155, %v478
  %v483 = vmul.f32 %v156, %v474
  %v484 = vmul.f32 %v157, %v478
  %v485 = vmul.f32 %v158, %v474
  %v486 = vmul.f32 %v159, %v478
  %v487 = vmul.f32 %v160, %v474
  %v488 = vmul.f32 %v161, %v478
  %v489 = vmul.f32 %v162, %v474
  %v490 = vmul.f32 %v163, %v478
  %v491 = vmul.f32 %v164, %v474
  %v492 = vmul.f32 %v165, %v478
  %v493 = vmul.f32 %v166, %v474
  %v494 = vmul.f32 %v167, %v478
  %v495 = vmul.f32 %v168, %v474
  %v496 = vmul.f32 %v169, %v478
  %v497 = vmul.f32 %v170, %v474
  %v498 = vmul.f32 %v171, %v478
  %v499 = vmul.f32 %v172, %v474
  %v500 = vmul.f32 %v173, %v478
  %v501 = vmul.f32 %v174, %v474
  %v502 = vmul.f32 %v175, %v478
  %v503 = vmul.f32 %v176, %v474
  %v504 = vmul.f32 %v177, %v478
  %v505 = vadd.f32 %v446, %v481
  %v506 = vadd.f32 %v447, %v482
  %v507 = vadd.f32 %v448, %v483
  %v508 = vadd.f32 %v449, %v484
  %v509 = vadd.f32 %v450, %v485
  %v510 = vadd.f32 %v451, %v486
  %v511 = vadd.f32 %v452, %v487
  %v512 = vadd.f32 %v453, %v488
  %v513 = vadd.f32 %v454, %v489
  %v514 = vadd.f32 %v455, %v490
  %v515 = vadd.f32 %v456, %v491
  %v516 = vadd.f32 %v457, %v492
  %v517 = vadd.f32 %v446, %v493
  %v518 = vadd.f32 %v447, %v494
  %v519 = vadd.f32 %v458, %v495
  %v520 = vadd.f32 %v459, %v496
  %v521 = vadd.f32 %v460, %v497
  %v522 = vadd.f32 %v461, %v498
  %v523 = vadd.f32 %v462, %v499
  %v524 = vadd.f32 %v463, %v500
  %v525 = vadd.f32 %v464, %v501
  %v526 = vadd.f32 %v465, %v502
  %v527 = vadd.f32 %v466, %v503
  %v528 = vadd.f32 %v467, %v504
  %s529 = scalar_lea.vmem %s1, 4
  %v530 = vld [vmem:[%s529] ss:$8 sm:$0x3]
  %v532 = vlaneseq
  %v533 = vshrl.u32 %v532, 7
  %v534 = vsub.s32 0, %v533
  %v535 = vrot.slane %v530, %v534
  %v536 = vlaneseq
  %v537 = vshrl.u32 %v536, 7
  %v538 = vsub.s32 1, %v537
  %v539 = vrot.slane %v530, %v538
  %v542 = vmul.f32 %v202, %v535
  %v543 = vmul.f32 %v203, %v539
  %v544 = vmul.f32 %v204, %v535
  %v545 = vmul.f32 %v205, %v539
  %v546 = vmul.f32 %v206, %v535
  %v547 = vmul.f32 %v207, %v539
  %v548 = vmul.f32 %v208, %v535
  %v549 = vmul.f32 %v209, %v539
  %v550 = vmul.f32 %v210, %v535
  %v551 = vmul.f32 %v211, %v539
  %v552 = vmul.f32 %v212, %v535
  %v553 = vmul.f32 %v213, %v539
  %v554 = vmul.f32 %v214, %v535
  %v555 = vmul.f32 %v215, %v539
  %v556 = vmul.f32 %v216, %v535
  %v557 = vmul.f32 %v217, %v539
  %v558 = vmul.f32 %v218, %v535
  %v559 = vmul.f32 %v219, %v539
  %v560 = vmul.f32 %v220, %v535
  %v561 = vmul.f32 %v221, %v539
  %v562 = vmul.f32 %v222, %v535
  %v563 = vmul.f32 %v223, %v539
  %v564 = vmul.f32 %v224, %v535
  %v565 = vmul.f32 %v225, %v539
  %v566 = vadd.f32 %v505, %v542
  %v567 = vadd.f32 %v506, %v543
  %v568 = vadd.f32 %v507, %v544
  %v569 = vadd.f32 %v508, %v545
  %v570 = vadd.f32 %v509, %v546
  %v571 = vadd.f32 %v510, %v547
  %v572 = vadd.f32 %v511, %v548
  %v573 = vadd.f32 %v512, %v549
  %v574 = vadd.f32 %v513, %v550
  %v575 = vadd.f32 %v514, %v551
  %v576 = vadd.f32 %v515, %v552
  %v577 = vadd.f32 %v516, %v553
  %v578 = vadd.f32 %v517, %v554
  %v579 = vadd.f32 %v518, %v555
  %v580 = vadd.f32 %v519, %v556
  %v581 = vadd.f32 %v520, %v557
  %v582 = vadd.f32 %v521, %v558
  %v583 = vadd.f32 %v522, %v559
  %v584 = vadd.f32 %v523, %v560
  %v585 = vadd.f32 %v524, %v561
  %v586 = vadd.f32 %v525, %v562
  %v587 = vadd.f32 %v526, %v563
  %v588 = vadd.f32 %v527, %v564
  %v589 = vadd.f32 %v528, %v565
  %s590 = scalar_lea.vmem %s1, 5
  %v591 = vld [vmem:[%s590] ss:$8 sm:$0x3]
  %v593 = vlaneseq
  %v594 = vshrl.u32 %v593, 7
  %v595 = vsub.s32 0, %v594
  %v596 = vrot.slane %v591, %v595
  %v597 = vlaneseq
  %v598 = vshrl.u32 %v597, 7
  %v599 = vsub.s32 1, %v598
  %v600 = vrot.slane %v591, %v599
  %v603 = vmul.f32 %v250, %v596
  %v604 = vmul.f32 %v251, %v600
  %v605 = vmul.f32 %v252, %v596
  %v606 = vmul.f32 %v253, %v600
  %v607 = vmul.f32 %v254, %v596
  %v608 = vmul.f32 %v255, %v600
  %v609 = vmul.f32 %v256, %v596
  %v610 = vmul.f32 %v257, %v600
  %v611 = vmul.f32 %v258, %v596
  %v612 = vmul.f32 %v259, %v600
  %v613 = vmul.f32 %v260, %v596
  %v614 = vmul.f32 %v261, %v600
  %v615 = vmul.f32 %v262, %v596
  %v616 = vmul.f32 %v263, %v600
  %v617 = vmul.f32 %v264, %v596
  %v618 = vmul.f32 %v265, %v600
  %v619 = vmul.f32 %v266, %v596
  %v620 = vmul.f32 %v267, %v600
  %v621 = vmul.f32 %v268, %v596
  %v622 = vmul.f32 %v269, %v600
  %v623 = vmul.f32 %v270, %v596
  %v624 = vmul.f32 %v271, %v600
  %v625 = vmul.f32 %v272, %v596
  %v626 = vmul.f32 %v273, %v600
  %v627 = vadd.f32 %v566, %v603
  %v628 = vadd.f32 %v567, %v604
  %v629 = vadd.f32 %v568, %v605
  %v630 = vadd.f32 %v569, %v606
  %v631 = vadd.f32 %v570, %v607
  %v632 = vadd.f32 %v571, %v608
  %v633 = vadd.f32 %v572, %v609
  %v634 = vadd.f32 %v573, %v610
  %v635 = vadd.f32 %v574, %v611
  %v636 = vadd.f32 %v575, %v612
  %v637 = vadd.f32 %v576, %v613
  %v638 = vadd.f32 %v577, %v614
  %v639 = vadd.f32 %v578, %v615
  %v640 = vadd.f32 %v579, %v616
  %v641 = vadd.f32 %v580, %v617
  %v642 = vadd.f32 %v581, %v618
  %v643 = vadd.f32 %v582, %v619
  %v644 = vadd.f32 %v583, %v620
  %v645 = vadd.f32 %v584, %v621
  %v646 = vadd.f32 %v585, %v622
  %v647 = vadd.f32 %v586, %v623
  %v648 = vadd.f32 %v587, %v624
  %v649 = vadd.f32 %v588, %v625
  %v650 = vadd.f32 %v589, %v626
  %s651 = scalar_lea.vmem %s1, 6
  %v652 = vld [vmem:[%s651] ss:$8 sm:$0x3]
  %v654 = vlaneseq
  %v655 = vshrl.u32 %v654, 7
  %v656 = vsub.s32 0, %v655
  %v657 = vrot.slane %v652, %v656
  %v658 = vlaneseq
  %v659 = vshrl.u32 %v658, 7
  %v660 = vsub.s32 1, %v659
  %v661 = vrot.slane %v652, %v660
  %v664 = vmul.f32 %v156, %v657
  %v665 = vmul.f32 %v157, %v661
  %v666 = vmul.f32 %v158, %v657
  %v667 = vmul.f32 %v159, %v661
  %v668 = vmul.f32 %v160, %v657
  %v669 = vmul.f32 %v161, %v661
  %v670 = vmul.f32 %v162, %v657
  %v671 = vmul.f32 %v163, %v661
  %v672 = vmul.f32 %v164, %v657
  %v673 = vmul.f32 %v165, %v661
  %v674 = vmul.f32 %v657, 0.0
  %v675 = vmul.f32 %v661, 0.0
  %v676 = vmul.f32 %v168, %v657
  %v677 = vmul.f32 %v169, %v661
  %v678 = vmul.f32 %v170, %v657
  %v679 = vmul.f32 %v171, %v661
  %v680 = vmul.f32 %v172, %v657
  %v681 = vmul.f32 %v173, %v661
  %v682 = vmul.f32 %v174, %v657
  %v683 = vmul.f32 %v175, %v661
  %v684 = vmul.f32 %v176, %v657
  %v685 = vmul.f32 %v177, %v661
  %v686 = vadd.f32 %v627, %v664
  %v687 = vadd.f32 %v628, %v665
  %v688 = vadd.f32 %v629, %v666
  %v689 = vadd.f32 %v630, %v667
  %v690 = vadd.f32 %v631, %v668
  %v691 = vadd.f32 %v632, %v669
  %v692 = vadd.f32 %v633, %v670
  %v693 = vadd.f32 %v634, %v671
  %v694 = vadd.f32 %v635, %v672
  %v695 = vadd.f32 %v636, %v673
  %v696 = vadd.f32 %v637, %v674
  %v697 = vadd.f32 %v638, %v675
  %v698 = vadd.f32 %v639, %v676
  %v699 = vadd.f32 %v640, %v677
  %v700 = vadd.f32 %v641, %v678
  %v701 = vadd.f32 %v642, %v679
  %v702 = vadd.f32 %v643, %v680
  %v703 = vadd.f32 %v644, %v681
  %v704 = vadd.f32 %v645, %v682
  %v705 = vadd.f32 %v646, %v683
  %v706 = vadd.f32 %v647, %v684
  %v707 = vadd.f32 %v648, %v685
  %v708 = vadd.f32 %v649, %v674
  %v709 = vadd.f32 %v650, %v675
  %s710 = scalar_lea.vmem %s1, 7
  %v711 = vld [vmem:[%s710] ss:$8 sm:$0x3]
  %v713 = vlaneseq
  %v714 = vshrl.u32 %v713, 7
  %v715 = vsub.s32 0, %v714
  %v716 = vrot.slane %v711, %v715
  %v717 = vlaneseq
  %v718 = vshrl.u32 %v717, 7
  %v719 = vsub.s32 1, %v718
  %v720 = vrot.slane %v711, %v719
  %v723 = vmul.f32 %v204, %v716
  %v724 = vmul.f32 %v205, %v720
  %v725 = vmul.f32 %v206, %v716
  %v726 = vmul.f32 %v207, %v720
  %v727 = vmul.f32 %v208, %v716
  %v728 = vmul.f32 %v209, %v720
  %v729 = vmul.f32 %v210, %v716
  %v730 = vmul.f32 %v211, %v720
  %v731 = vmul.f32 %v212, %v716
  %v732 = vmul.f32 %v213, %v720
  %v733 = vmul.f32 %v716, 0.0
  %v734 = vmul.f32 %v720, 0.0
  %v735 = vmul.f32 %v216, %v716
  %v736 = vmul.f32 %v217, %v720
  %v737 = vmul.f32 %v218, %v716
  %v738 = vmul.f32 %v219, %v720
  %v739 = vmul.f32 %v220, %v716
  %v740 = vmul.f32 %v221, %v720
  %v741 = vmul.f32 %v222, %v716
  %v742 = vmul.f32 %v223, %v720
  %v743 = vmul.f32 %v224, %v716
  %v744 = vmul.f32 %v225, %v720
  %v745 = vadd.f32 %v686, %v723
  %v746 = vadd.f32 %v687, %v724
  %v747 = vadd.f32 %v688, %v725
  %v748 = vadd.f32 %v689, %v726
  %v749 = vadd.f32 %v690, %v727
  %v750 = vadd.f32 %v691, %v728
  %v751 = vadd.f32 %v692, %v729
  %v752 = vadd.f32 %v693, %v730
  %v753 = vadd.f32 %v694, %v731
  %v754 = vadd.f32 %v695, %v732
  %v755 = vadd.f32 %v696, %v733
  %v756 = vadd.f32 %v697, %v734
  %v757 = vadd.f32 %v698, %v735
  %v758 = vadd.f32 %v699, %v736
  %v759 = vadd.f32 %v700, %v737
  %v760 = vadd.f32 %v701, %v738
  %v761 = vadd.f32 %v702, %v739
  %v762 = vadd.f32 %v703, %v740
  %v763 = vadd.f32 %v704, %v741
  %v764 = vadd.f32 %v705, %v742
  %v765 = vadd.f32 %v706, %v743
  %v766 = vadd.f32 %v707, %v744
  %v767 = vadd.f32 %v708, %v733
  %v768 = vadd.f32 %v709, %v734
  %s769 = scalar_lea.vmem %s1, 16
  %v770 = vld [vmem:[%s769] ss:$8 sm:$0x3]
  %v772 = vlaneseq
  %v773 = vshrl.u32 %v772, 7
  %v774 = vsub.s32 0, %v773
  %v775 = vrot.slane %v770, %v774
  %v776 = vlaneseq
  %v777 = vshrl.u32 %v776, 7
  %v778 = vsub.s32 1, %v777
  %v779 = vrot.slane %v770, %v778
  %v782 = vmul.f32 %v252, %v775
  %v783 = vmul.f32 %v253, %v779
  %v784 = vmul.f32 %v254, %v775
  %v785 = vmul.f32 %v255, %v779
  %v786 = vmul.f32 %v256, %v775
  %v787 = vmul.f32 %v257, %v779
  %v788 = vmul.f32 %v258, %v775
  %v789 = vmul.f32 %v259, %v779
  %v790 = vmul.f32 %v260, %v775
  %v791 = vmul.f32 %v261, %v779
  %v792 = vmul.f32 %v775, 0.0
  %v793 = vmul.f32 %v779, 0.0
  %v794 = vmul.f32 %v264, %v775
  %v795 = vmul.f32 %v265, %v779
  %v796 = vmul.f32 %v266, %v775
  %v797 = vmul.f32 %v267, %v779
  %v798 = vmul.f32 %v268, %v775
  %v799 = vmul.f32 %v269, %v779
  %v800 = vmul.f32 %v270, %v775
  %v801 = vmul.f32 %v271, %v779
  %v802 = vmul.f32 %v272, %v775
  %v803 = vmul.f32 %v273, %v779
  %v804 = vadd.f32 %v745, %v782
  %v805 = vadd.f32 %v746, %v783
  %v806 = vadd.f32 %v747, %v784
  %v807 = vadd.f32 %v748, %v785
  %v808 = vadd.f32 %v749, %v786
  %v809 = vadd.f32 %v750, %v787
  %v810 = vadd.f32 %v751, %v788
  %v811 = vadd.f32 %v752, %v789
  %v812 = vadd.f32 %v753, %v790
  %v813 = vadd.f32 %v754, %v791
  %v814 = vadd.f32 %v755, %v792
  %v815 = vadd.f32 %v756, %v793
  %v816 = vadd.f32 %v757, %v794
  %v817 = vadd.f32 %v758, %v795
  %v818 = vadd.f32 %v759, %v796
  %v819 = vadd.f32 %v760, %v797
  %v820 = vadd.f32 %v761, %v798
  %v821 = vadd.f32 %v762, %v799
  %v822 = vadd.f32 %v763, %v800
  %v823 = vadd.f32 %v764, %v801
  %v824 = vadd.f32 %v765, %v802
  %v825 = vadd.f32 %v766, %v803
  %v826 = vadd.f32 %v767, %v792
  %v827 = vadd.f32 %v768, %v793
  %v852 = vcombine.low %v804, %v805
  %v853 = vcombine.high %v804, %v805
  %v855 = vunpack.c.l.s4 1983009808
  %v856 = vunpack.c.0.s8 %v855
  %v857 = vlaneseq
  %v858 = vshrl.u32 %v857, 7
  %v859 = vsub.s32 %v856, %v858
  %v860 = vrot.slane %v852, %v859
  %v862 = vunpack.c.l.s4 1983009808
  %v863 = vunpack.c.0.s8 %v862
  %v864 = vlaneseq
  %v865 = vshrl.u32 %v864, 7
  %v866 = vsub.s32 %v863, %v865
  %v867 = vrot.slane %v853, %v866
  %v868 = vcombine.high %v860, %v860
  %v869 = vcombine.low %v806, %v807
  %v870 = vcombine.high %v806, %v807
  %v872 = vunpack.c.l.s4 1983009808
  %v873 = vunpack.c.0.s8 %v872
  %v874 = vlaneseq
  %v875 = vshrl.u32 %v874, 7
  %v876 = vsub.s32 %v873, %v875
  %v877 = vrot.slane %v869, %v876
  %v879 = vunpack.c.l.s4 1983009808
  %v880 = vunpack.c.0.s8 %v879
  %v881 = vlaneseq
  %v882 = vshrl.u32 %v881, 7
  %v883 = vsub.s32 %v880, %v882
  %v884 = vrot.slane %v870, %v883
  %v885 = vcombine.high %v877, %v877
  %v886 = vcombine.low %v808, %v809
  %v887 = vcombine.high %v808, %v809
  %v889 = vunpack.c.l.s4 1983009808
  %v890 = vunpack.c.0.s8 %v889
  %v891 = vlaneseq
  %v892 = vshrl.u32 %v891, 7
  %v893 = vsub.s32 %v890, %v892
  %v894 = vrot.slane %v886, %v893
  %v896 = vunpack.c.l.s4 1983009808
  %v897 = vunpack.c.0.s8 %v896
  %v898 = vlaneseq
  %v899 = vshrl.u32 %v898, 7
  %v900 = vsub.s32 %v897, %v899
  %v901 = vrot.slane %v887, %v900
  %v902 = vcombine.high %v894, %v894
  %v903 = vcombine.low %v810, %v811
  %v904 = vcombine.high %v810, %v811
  %v906 = vunpack.c.l.s4 1983009808
  %v907 = vunpack.c.0.s8 %v906
  %v908 = vlaneseq
  %v909 = vshrl.u32 %v908, 7
  %v910 = vsub.s32 %v907, %v909
  %v911 = vrot.slane %v903, %v910
  %v913 = vunpack.c.l.s4 1983009808
  %v914 = vunpack.c.0.s8 %v913
  %v915 = vlaneseq
  %v916 = vshrl.u32 %v915, 7
  %v917 = vsub.s32 %v914, %v916
  %v918 = vrot.slane %v904, %v917
  %v919 = vcombine.high %v911, %v911
  %v920 = vcombine.low %v812, %v813
  %v921 = vcombine.high %v812, %v813
  %v923 = vunpack.c.l.s4 1983009808
  %v924 = vunpack.c.0.s8 %v923
  %v925 = vlaneseq
  %v926 = vshrl.u32 %v925, 7
  %v927 = vsub.s32 %v924, %v926
  %v928 = vrot.slane %v920, %v927
  %v930 = vunpack.c.l.s4 1983009808
  %v931 = vunpack.c.0.s8 %v930
  %v932 = vlaneseq
  %v933 = vshrl.u32 %v932, 7
  %v934 = vsub.s32 %v931, %v933
  %v935 = vrot.slane %v921, %v934
  %v936 = vcombine.high %v928, %v928
  %v937 = vcombine.low %v814, %v815
  %v938 = vcombine.high %v814, %v815
  %v940 = vunpack.c.l.s4 1983009808
  %v941 = vunpack.c.0.s8 %v940
  %v942 = vlaneseq
  %v943 = vshrl.u32 %v942, 7
  %v944 = vsub.s32 %v941, %v943
  %v945 = vrot.slane %v937, %v944
  %v947 = vunpack.c.l.s4 1983009808
  %v948 = vunpack.c.0.s8 %v947
  %v949 = vlaneseq
  %v950 = vshrl.u32 %v949, 7
  %v951 = vsub.s32 %v948, %v950
  %v952 = vrot.slane %v938, %v951
  %v953 = vcombine.high %v945, %v945
  %v954 = vcombine.low %v816, %v817
  %v955 = vcombine.high %v816, %v817
  %v957 = vunpack.c.l.s4 1983009808
  %v958 = vunpack.c.0.s8 %v957
  %v959 = vlaneseq
  %v960 = vshrl.u32 %v959, 7
  %v961 = vsub.s32 %v958, %v960
  %v962 = vrot.slane %v954, %v961
  %v964 = vunpack.c.l.s4 1983009808
  %v965 = vunpack.c.0.s8 %v964
  %v966 = vlaneseq
  %v967 = vshrl.u32 %v966, 7
  %v968 = vsub.s32 %v965, %v967
  %v969 = vrot.slane %v955, %v968
  %v970 = vcombine.high %v962, %v962
  %v971 = vcombine.low %v818, %v819
  %v972 = vcombine.high %v818, %v819
  %v974 = vunpack.c.l.s4 1983009808
  %v975 = vunpack.c.0.s8 %v974
  %v976 = vlaneseq
  %v977 = vshrl.u32 %v976, 7
  %v978 = vsub.s32 %v975, %v977
  %v979 = vrot.slane %v971, %v978
  %v981 = vunpack.c.l.s4 1983009808
  %v982 = vunpack.c.0.s8 %v981
  %v983 = vlaneseq
  %v984 = vshrl.u32 %v983, 7
  %v985 = vsub.s32 %v982, %v984
  %v986 = vrot.slane %v972, %v985
  %v987 = vcombine.high %v979, %v979
  %v988 = vcombine.low %v820, %v821
  %v989 = vcombine.high %v820, %v821
  %v991 = vunpack.c.l.s4 1983009808
  %v992 = vunpack.c.0.s8 %v991
  %v993 = vlaneseq
  %v994 = vshrl.u32 %v993, 7
  %v995 = vsub.s32 %v992, %v994
  %v996 = vrot.slane %v988, %v995
  %v998 = vunpack.c.l.s4 1983009808
  %v999 = vunpack.c.0.s8 %v998
  %v1000 = vlaneseq
  %v1001 = vshrl.u32 %v1000, 7
  %v1002 = vsub.s32 %v999, %v1001
  %v1003 = vrot.slane %v989, %v1002
  %v1004 = vcombine.high %v996, %v996
  %v1005 = vcombine.low %v822, %v823
  %v1006 = vcombine.high %v822, %v823
  %v1008 = vunpack.c.l.s4 1983009808
  %v1009 = vunpack.c.0.s8 %v1008
  %v1010 = vlaneseq
  %v1011 = vshrl.u32 %v1010, 7
  %v1012 = vsub.s32 %v1009, %v1011
  %v1013 = vrot.slane %v1005, %v1012
  %v1015 = vunpack.c.l.s4 1983009808
  %v1016 = vunpack.c.0.s8 %v1015
  %v1017 = vlaneseq
  %v1018 = vshrl.u32 %v1017, 7
  %v1019 = vsub.s32 %v1016, %v1018
  %v1020 = vrot.slane %v1006, %v1019
  %v1021 = vcombine.high %v1013, %v1013
  %v1022 = vcombine.low %v824, %v825
  %v1023 = vcombine.high %v824, %v825
  %v1025 = vunpack.c.l.s4 1983009808
  %v1026 = vunpack.c.0.s8 %v1025
  %v1027 = vlaneseq
  %v1028 = vshrl.u32 %v1027, 7
  %v1029 = vsub.s32 %v1026, %v1028
  %v1030 = vrot.slane %v1022, %v1029
  %v1032 = vunpack.c.l.s4 1983009808
  %v1033 = vunpack.c.0.s8 %v1032
  %v1034 = vlaneseq
  %v1035 = vshrl.u32 %v1034, 7
  %v1036 = vsub.s32 %v1033, %v1035
  %v1037 = vrot.slane %v1023, %v1036
  %v1038 = vcombine.high %v1030, %v1030
  %v1039 = vcombine.low %v826, %v827
  %v1040 = vcombine.high %v826, %v827
  %v1042 = vunpack.c.l.s4 1983009808
  %v1043 = vunpack.c.0.s8 %v1042
  %v1044 = vlaneseq
  %v1045 = vshrl.u32 %v1044, 7
  %v1046 = vsub.s32 %v1043, %v1045
  %v1047 = vrot.slane %v1039, %v1046
  %v1049 = vunpack.c.l.s4 1983009808
  %v1050 = vunpack.c.0.s8 %v1049
  %v1051 = vlaneseq
  %v1052 = vshrl.u32 %v1051, 7
  %v1053 = vsub.s32 %v1050, %v1052
  %v1054 = vrot.slane %v1040, %v1053
  %v1055 = vcombine.high %v1047, %v1047
  %v1092 = vld [vmem:[%s2] sm:$0x3]
  %v1094 = vlaneseq
  %v1095 = vshrl.u32 %v1094, 7
  %v1096 = vsub.s32 0, %v1095
  %v1097 = vrot.slane %v1092, %v1096
  %v1098 = vlaneseq
  %v1099 = vshrl.u32 %v1098, 7
  %v1100 = vsub.s32 1, %v1099
  %v1101 = vrot.slane %v1092, %v1100
  %v1102 = vcombine.low %v1097, %v1101
  %v1103 = vcombine.high %v1097, %v1101
  %v1105 = vunpack.c.l.s4 1983009808
  %v1106 = vunpack.c.0.s8 %v1105
  %v1107 = vlaneseq
  %v1108 = vshrl.u32 %v1107, 7
  %v1109 = vsub.s32 %v1106, %v1108
  %v1110 = vrot.slane %v1102, %v1109
  %v1112 = vunpack.c.l.s4 1983009808
  %v1113 = vunpack.c.0.s8 %v1112
  %v1114 = vlaneseq
  %v1115 = vshrl.u32 %v1114, 7
  %v1116 = vsub.s32 %v1113, %v1115
  %v1117 = vrot.slane %v1103, %v1116
  %v1118 = vcombine.high %v1110, %v1110
  %v1119 = vcombine.high %v1117, %v1117
  %v1124 = vadd.f32 %v860, %v1110
  %v1125 = vadd.f32 %v868, %v1118
  %v1126 = vadd.f32 %v867, %v1117
  %v1127 = vadd.f32 %v877, %v1119
  %v1128 = vadd.f32 %v885, %v1110
  %v1129 = vadd.f32 %v884, %v1118
  %v1130 = vadd.f32 %v894, %v1117
  %v1131 = vadd.f32 %v902, %v1119
  %v1132 = vadd.f32 %v901, %v1110
  %v1133 = vadd.f32 %v911, %v1118
  %v1134 = vadd.f32 %v919, %v1117
  %v1135 = vadd.f32 %v918, %v1119
  %v1136 = vadd.f32 %v928, %v1110
  %v1137 = vadd.f32 %v936, %v1118
  %v1138 = vadd.f32 %v935, %v1117
  %v1139 = vadd.f32 %v945, %v1119
  %v1140 = vadd.f32 %v953, %v1110
  %v1141 = vadd.f32 %v952, %v1118
  %v1142 = vadd.f32 %v962, %v1117
  %v1143 = vadd.f32 %v970, %v1119
  %v1144 = vadd.f32 %v969, %v1110
  %v1145 = vadd.f32 %v979, %v1118
  %v1146 = vadd.f32 %v987, %v1117
  %v1147 = vadd.f32 %v986, %v1119
  %v1148 = vadd.f32 %v996, %v1110
  %v1149 = vadd.f32 %v1004, %v1118
  %v1150 = vadd.f32 %v1003, %v1117
  %v1151 = vadd.f32 %v1013, %v1119
  %v1152 = vadd.f32 %v1021, %v1110
  %v1153 = vadd.f32 %v1020, %v1118
  %v1154 = vadd.f32 %v1030, %v1117
  %v1155 = vadd.f32 %v1038, %v1119
  %v1156 = vadd.f32 %v1037, %v1110
  %v1157 = vadd.f32 %v1047, %v1118
  %v1158 = vadd.f32 %v1055, %v1117
  %v1159 = vadd.f32 %v1054, %v1119
  %v1160 = vmul.f32 %v1124, 0.5
  %v1161 = vmul.f32 %v1125, 0.5
  %v1162 = vmul.f32 %v1126, 0.5
  %v1163 = vmul.f32 %v1127, 0.5
  %v1164 = vmul.f32 %v1128, 0.5
  %v1165 = vmul.f32 %v1129, 0.5
  %v1166 = vmul.f32 %v1130, 0.5
  %v1167 = vmul.f32 %v1131, 0.5
  %v1168 = vmul.f32 %v1132, 0.5
  %v1169 = vmul.f32 %v1133, 0.5
  %v1170 = vmul.f32 %v1134, 0.5
  %v1171 = vmul.f32 %v1135, 0.5
  %v1172 = vmul.f32 %v1136, 0.5
  %v1173 = vmul.f32 %v1137, 0.5
  %v1174 = vmul.f32 %v1138, 0.5
  %v1175 = vmul.f32 %v1139, 0.5
  %v1176 = vmul.f32 %v1140, 0.5
  %v1177 = vmul.f32 %v1141, 0.5
  %v1178 = vmul.f32 %v1142, 0.5
  %v1179 = vmul.f32 %v1143, 0.5
  %v1180 = vmul.f32 %v1144, 0.5
  %v1181 = vmul.f32 %v1145, 0.5
  %v1182 = vmul.f32 %v1146, 0.5
  %v1183 = vmul.f32 %v1147, 0.5
  %v1184 = vmul.f32 %v1148, 0.5
  %v1185 = vmul.f32 %v1149, 0.5
  %v1186 = vmul.f32 %v1150, 0.5
  %v1187 = vmul.f32 %v1151, 0.5
  %v1188 = vmul.f32 %v1152, 0.5
  %v1189 = vmul.f32 %v1153, 0.5
  %v1190 = vmul.f32 %v1154, 0.5
  %v1191 = vmul.f32 %v1155, 0.5
  %v1192 = vmul.f32 %v1156, 0.5
  %v1193 = vmul.f32 %v1157, 0.5
  %v1194 = vmul.f32 %v1158, 0.5
  %v1195 = vmul.f32 %v1159, 0.5
  %v1196 = vmul.f32 %v1124, 0.70710677
  %v1197 = vmul.f32 %v1125, 0.70710677
  %v1198 = vmul.f32 %v1126, 0.70710677
  %v1199 = vmul.f32 %v1127, 0.70710677
  %v1200 = vmul.f32 %v1128, 0.70710677
  %v1201 = vmul.f32 %v1129, 0.70710677
  %v1202 = vmul.f32 %v1130, 0.70710677
  %v1203 = vmul.f32 %v1131, 0.70710677
  %v1204 = vmul.f32 %v1132, 0.70710677
  %v1205 = vmul.f32 %v1133, 0.70710677
  %v1206 = vmul.f32 %v1134, 0.70710677
  %v1207 = vmul.f32 %v1135, 0.70710677
  %v1208 = vmul.f32 %v1136, 0.70710677
  %v1209 = vmul.f32 %v1137, 0.70710677
  %v1210 = vmul.f32 %v1138, 0.70710677
  %v1211 = vmul.f32 %v1139, 0.70710677
  %v1212 = vmul.f32 %v1140, 0.70710677
  %v1213 = vmul.f32 %v1141, 0.70710677
  %v1214 = vmul.f32 %v1142, 0.70710677
  %v1215 = vmul.f32 %v1143, 0.70710677
  %v1216 = vmul.f32 %v1144, 0.70710677
  %v1217 = vmul.f32 %v1145, 0.70710677
  %v1218 = vmul.f32 %v1146, 0.70710677
  %v1219 = vmul.f32 %v1147, 0.70710677
  %v1220 = vmul.f32 %v1148, 0.70710677
  %v1221 = vmul.f32 %v1149, 0.70710677
  %v1222 = vmul.f32 %v1150, 0.70710677
  %v1223 = vmul.f32 %v1151, 0.70710677
  %v1224 = vmul.f32 %v1152, 0.70710677
  %v1225 = vmul.f32 %v1153, 0.70710677
  %v1226 = vmul.f32 %v1154, 0.70710677
  %v1227 = vmul.f32 %v1155, 0.70710677
  %v1228 = vmul.f32 %v1156, 0.70710677
  %v1229 = vmul.f32 %v1157, 0.70710677
  %v1230 = vmul.f32 %v1158, 0.70710677
  %v1231 = vmul.f32 %v1159, 0.70710677
  %v1232 = verf.f32.pop %v1196
  %v1233 = verf.f32.pop %v1197
  %v1234 = verf.f32.pop %v1198
  %v1235 = verf.f32.pop %v1199
  %v1236 = verf.f32.pop %v1200
  %v1237 = verf.f32.pop %v1201
  %v1238 = verf.f32.pop %v1202
  %v1239 = verf.f32.pop %v1203
  %v1240 = verf.f32.pop %v1204
  %v1241 = verf.f32.pop %v1205
  %v1242 = verf.f32.pop %v1206
  %v1243 = verf.f32.pop %v1207
  %v1244 = verf.f32.pop %v1208
  %v1245 = verf.f32.pop %v1209
  %v1246 = verf.f32.pop %v1210
  %v1247 = verf.f32.pop %v1211
  %v1248 = verf.f32.pop %v1212
  %v1249 = verf.f32.pop %v1213
  %v1250 = verf.f32.pop %v1214
  %v1251 = verf.f32.pop %v1215
  %v1252 = verf.f32.pop %v1216
  %v1253 = verf.f32.pop %v1217
  %v1254 = verf.f32.pop %v1218
  %v1255 = verf.f32.pop %v1219
  %v1256 = verf.f32.pop %v1220
  %v1257 = verf.f32.pop %v1221
  %v1258 = verf.f32.pop %v1222
  %v1259 = verf.f32.pop %v1223
  %v1260 = verf.f32.pop %v1224
  %v1261 = verf.f32.pop %v1225
  %v1262 = verf.f32.pop %v1226
  %v1263 = verf.f32.pop %v1227
  %v1264 = verf.f32.pop %v1228
  %v1265 = verf.f32.pop %v1229
  %v1266 = verf.f32.pop %v1230
  %v1267 = verf.f32.pop %v1231
  %v1268 = vadd.f32 %v1232, 1.0
  %v1269 = vadd.f32 %v1233, 1.0
  %v1270 = vadd.f32 %v1234, 1.0
  %v1271 = vadd.f32 %v1235, 1.0
  %v1272 = vadd.f32 %v1236, 1.0
  %v1273 = vadd.f32 %v1237, 1.0
  %v1274 = vadd.f32 %v1238, 1.0
  %v1275 = vadd.f32 %v1239, 1.0
  %v1276 = vadd.f32 %v1240, 1.0
  %v1277 = vadd.f32 %v1241, 1.0
  %v1278 = vadd.f32 %v1242, 1.0
  %v1279 = vadd.f32 %v1243, 1.0
  %v1280 = vadd.f32 %v1244, 1.0
  %v1281 = vadd.f32 %v1245, 1.0
  %v1282 = vadd.f32 %v1246, 1.0
  %v1283 = vadd.f32 %v1247, 1.0
  %v1284 = vadd.f32 %v1248, 1.0
  %v1285 = vadd.f32 %v1249, 1.0
  %v1286 = vadd.f32 %v1250, 1.0
  %v1287 = vadd.f32 %v1251, 1.0
  %v1288 = vadd.f32 %v1252, 1.0
  %v1289 = vadd.f32 %v1253, 1.0
  %v1290 = vadd.f32 %v1254, 1.0
  %v1291 = vadd.f32 %v1255, 1.0
  %v1292 = vadd.f32 %v1256, 1.0
  %v1293 = vadd.f32 %v1257, 1.0
  %v1294 = vadd.f32 %v1258, 1.0
  %v1295 = vadd.f32 %v1259, 1.0
  %v1296 = vadd.f32 %v1260, 1.0
  %v1297 = vadd.f32 %v1261, 1.0
  %v1298 = vadd.f32 %v1262, 1.0
  %v1299 = vadd.f32 %v1263, 1.0
  %v1300 = vadd.f32 %v1264, 1.0
  %v1301 = vadd.f32 %v1265, 1.0
  %v1302 = vadd.f32 %v1266, 1.0
  %v1303 = vadd.f32 %v1267, 1.0
  %v1304 = vmul.f32 %v1160, %v1268
  %v1305 = vmul.f32 %v1161, %v1269
  %v1306 = vmul.f32 %v1162, %v1270
  %v1307 = vmul.f32 %v1163, %v1271
  %v1308 = vmul.f32 %v1164, %v1272
  %v1309 = vmul.f32 %v1165, %v1273
  %v1310 = vmul.f32 %v1166, %v1274
  %v1311 = vmul.f32 %v1167, %v1275
  %v1312 = vmul.f32 %v1168, %v1276
  %v1313 = vmul.f32 %v1169, %v1277
  %v1314 = vmul.f32 %v1170, %v1278
  %v1315 = vmul.f32 %v1171, %v1279
  %v1316 = vmul.f32 %v1172, %v1280
  %v1317 = vmul.f32 %v1173, %v1281
  %v1318 = vmul.f32 %v1174, %v1282
  %v1319 = vmul.f32 %v1175, %v1283
  %v1320 = vmul.f32 %v1176, %v1284
  %v1321 = vmul.f32 %v1177, %v1285
  %v1322 = vmul.f32 %v1178, %v1286
  %v1323 = vmul.f32 %v1179, %v1287
  %v1324 = vmul.f32 %v1180, %v1288
  %v1325 = vmul.f32 %v1181, %v1289
  %v1326 = vmul.f32 %v1182, %v1290
  %v1327 = vmul.f32 %v1183, %v1291
  %v1328 = vmul.f32 %v1184, %v1292
  %v1329 = vmul.f32 %v1185, %v1293
  %v1330 = vmul.f32 %v1186, %v1294
  %v1331 = vmul.f32 %v1187, %v1295
  %v1332 = vmul.f32 %v1188, %v1296
  %v1333 = vmul.f32 %v1189, %v1297
  %v1334 = vmul.f32 %v1190, %v1298
  %v1335 = vmul.f32 %v1191, %v1299
  %v1336 = vmul.f32 %v1192, %v1300
  %v1337 = vmul.f32 %v1193, %v1301
  %v1338 = vmul.f32 %v1194, %v1302
  %v1339 = vmul.f32 %v1195, %v1303
  %v1376 = vcombine.low %v1304, %v1305
  %v1377 = vcombine.low %v1306, %v1307
  %v1379 = vunpack.c.l.s4 1983009808
  %v1380 = vunpack.c.0.s8 %v1379
  %v1381 = vlaneseq
  %v1382 = vshrl.u32 %v1381, 7
  %v1383 = vsub.s32 %v1380, %v1382
  %v1384 = vrot.slane %v1376, %v1383
  %v1386 = vunpack.c.l.s4 1983009808
  %v1387 = vunpack.c.0.s8 %v1386
  %v1388 = vlaneseq
  %v1389 = vshrl.u32 %v1388, 7
  %v1390 = vsub.s32 %v1387, %v1389
  %v1391 = vrot.slane %v1377, %v1390
  %v1392 = vcombine.low %v1384, %v1391
  %v1393 = vcombine.high %v1384, %v1391
  %v1394 = vcombine.low %v1308, %v1309
  %v1395 = vcombine.low %v1310, %v1311
  %v1397 = vunpack.c.l.s4 1983009808
  %v1398 = vunpack.c.0.s8 %v1397
  %v1399 = vlaneseq
  %v1400 = vshrl.u32 %v1399, 7
  %v1401 = vsub.s32 %v1398, %v1400
  %v1402 = vrot.slane %v1394, %v1401
  %v1404 = vunpack.c.l.s4 1983009808
  %v1405 = vunpack.c.0.s8 %v1404
  %v1406 = vlaneseq
  %v1407 = vshrl.u32 %v1406, 7
  %v1408 = vsub.s32 %v1405, %v1407
  %v1409 = vrot.slane %v1395, %v1408
  %v1410 = vcombine.low %v1402, %v1409
  %v1411 = vcombine.high %v1402, %v1409
  %v1412 = vcombine.low %v1312, %v1313
  %v1413 = vcombine.low %v1314, %v1315
  %v1415 = vunpack.c.l.s4 1983009808
  %v1416 = vunpack.c.0.s8 %v1415
  %v1417 = vlaneseq
  %v1418 = vshrl.u32 %v1417, 7
  %v1419 = vsub.s32 %v1416, %v1418
  %v1420 = vrot.slane %v1412, %v1419
  %v1422 = vunpack.c.l.s4 1983009808
  %v1423 = vunpack.c.0.s8 %v1422
  %v1424 = vlaneseq
  %v1425 = vshrl.u32 %v1424, 7
  %v1426 = vsub.s32 %v1423, %v1425
  %v1427 = vrot.slane %v1413, %v1426
  %v1428 = vcombine.low %v1420, %v1427
  %v1429 = vcombine.high %v1420, %v1427
  %v1430 = vcombine.low %v1316, %v1317
  %v1431 = vcombine.low %v1318, %v1319
  %v1433 = vunpack.c.l.s4 1983009808
  %v1434 = vunpack.c.0.s8 %v1433
  %v1435 = vlaneseq
  %v1436 = vshrl.u32 %v1435, 7
  %v1437 = vsub.s32 %v1434, %v1436
  %v1438 = vrot.slane %v1430, %v1437
  %v1440 = vunpack.c.l.s4 1983009808
  %v1441 = vunpack.c.0.s8 %v1440
  %v1442 = vlaneseq
  %v1443 = vshrl.u32 %v1442, 7
  %v1444 = vsub.s32 %v1441, %v1443
  %v1445 = vrot.slane %v1431, %v1444
  %v1446 = vcombine.low %v1438, %v1445
  %v1447 = vcombine.high %v1438, %v1445
  %v1448 = vcombine.low %v1320, %v1321
  %v1449 = vcombine.low %v1322, %v1323
  %v1451 = vunpack.c.l.s4 1983009808
  %v1452 = vunpack.c.0.s8 %v1451
  %v1453 = vlaneseq
  %v1454 = vshrl.u32 %v1453, 7
  %v1455 = vsub.s32 %v1452, %v1454
  %v1456 = vrot.slane %v1448, %v1455
  %v1458 = vunpack.c.l.s4 1983009808
  %v1459 = vunpack.c.0.s8 %v1458
  %v1460 = vlaneseq
  %v1461 = vshrl.u32 %v1460, 7
  %v1462 = vsub.s32 %v1459, %v1461
  %v1463 = vrot.slane %v1449, %v1462
  %v1464 = vcombine.low %v1456, %v1463
  %v1465 = vcombine.high %v1456, %v1463
  %v1466 = vcombine.low %v1324, %v1325
  %v1467 = vcombine.low %v1326, %v1327
  %v1469 = vunpack.c.l.s4 1983009808
  %v1470 = vunpack.c.0.s8 %v1469
  %v1471 = vlaneseq
  %v1472 = vshrl.u32 %v1471, 7
  %v1473 = vsub.s32 %v1470, %v1472
  %v1474 = vrot.slane %v1466, %v1473
  %v1476 = vunpack.c.l.s4 1983009808
  %v1477 = vunpack.c.0.s8 %v1476
  %v1478 = vlaneseq
  %v1479 = vshrl.u32 %v1478, 7
  %v1480 = vsub.s32 %v1477, %v1479
  %v1481 = vrot.slane %v1467, %v1480
  %v1482 = vcombine.low %v1474, %v1481
  %v1483 = vcombine.high %v1474, %v1481
  %v1484 = vcombine.low %v1328, %v1329
  %v1485 = vcombine.low %v1330, %v1331
  %v1487 = vunpack.c.l.s4 1983009808
  %v1488 = vunpack.c.0.s8 %v1487
  %v1489 = vlaneseq
  %v1490 = vshrl.u32 %v1489, 7
  %v1491 = vsub.s32 %v1488, %v1490
  %v1492 = vrot.slane %v1484, %v1491
  %v1494 = vunpack.c.l.s4 1983009808
  %v1495 = vunpack.c.0.s8 %v1494
  %v1496 = vlaneseq
  %v1497 = vshrl.u32 %v1496, 7
  %v1498 = vsub.s32 %v1495, %v1497
  %v1499 = vrot.slane %v1485, %v1498
  %v1500 = vcombine.low %v1492, %v1499
  %v1501 = vcombine.high %v1492, %v1499
  %v1502 = vcombine.low %v1332, %v1333
  %v1503 = vcombine.low %v1334, %v1335
  %v1505 = vunpack.c.l.s4 1983009808
  %v1506 = vunpack.c.0.s8 %v1505
  %v1507 = vlaneseq
  %v1508 = vshrl.u32 %v1507, 7
  %v1509 = vsub.s32 %v1506, %v1508
  %v1510 = vrot.slane %v1502, %v1509
  %v1512 = vunpack.c.l.s4 1983009808
  %v1513 = vunpack.c.0.s8 %v1512
  %v1514 = vlaneseq
  %v1515 = vshrl.u32 %v1514, 7
  %v1516 = vsub.s32 %v1513, %v1515
  %v1517 = vrot.slane %v1503, %v1516
  %v1518 = vcombine.low %v1510, %v1517
  %v1519 = vcombine.high %v1510, %v1517
  %v1520 = vcombine.low %v1336, %v1337
  %v1521 = vcombine.low %v1338, %v1339
  %v1523 = vunpack.c.l.s4 1983009808
  %v1524 = vunpack.c.0.s8 %v1523
  %v1525 = vlaneseq
  %v1526 = vshrl.u32 %v1525, 7
  %v1527 = vsub.s32 %v1524, %v1526
  %v1528 = vrot.slane %v1520, %v1527
  %v1530 = vunpack.c.l.s4 1983009808
  %v1531 = vunpack.c.0.s8 %v1530
  %v1532 = vlaneseq
  %v1533 = vshrl.u32 %v1532, 7
  %v1534 = vsub.s32 %v1531, %v1533
  %v1535 = vrot.slane %v1521, %v1534
  %v1536 = vcombine.low %v1528, %v1535
  %v1537 = vcombine.high %v1528, %v1535
  %v1556 = vadd.f32 %v1392, %v1410
  %v1557 = vadd.f32 %v1556, %v1428
  %v1558 = vadd.f32 %v1557, %v1446
  %v1559 = vadd.f32 %v1558, %v1464
  %v1560 = vadd.f32 %v1559, %v1482
  %v1561 = vadd.f32 %v1560, %v1500
  %v1562 = vadd.f32 %v1561, %v1518
  %v1563 = vadd.f32 %v1562, %v1536
  %v1564 = vrot.slane %v1563, 4
  %v1565 = vadd.f32 %v1563, %v1564
  %v1566 = vrot.slane %v1565, 2
  %v1567 = vadd.f32 %v1565, %v1566
  %v1568 = vrot.slane %v1567, 1
  %v1569 = vadd.f32 %v1567, %v1568
  %v1570 = vadd.f32 %v1393, %v1411
  %v1571 = vadd.f32 %v1570, %v1429
  %v1572 = vadd.f32 %v1571, %v1447
  %v1573 = vadd.f32 %v1572, %v1465
  %v1574 = vadd.f32 %v1573, %v1483
  %v1575 = vadd.f32 %v1574, %v1501
  %v1576 = vadd.f32 %v1575, %v1519
  %v1577 = vadd.f32 %v1576, %v1537
  %v1578 = vrot.slane %v1577, 4
  %v1579 = vadd.f32 %v1577, %v1578
  %v1580 = vrot.slane %v1579, 2
  %v1581 = vadd.f32 %v1579, %v1580
  %v1582 = vrot.slane %v1581, 1
  %v1583 = vadd.f32 %v1581, %v1582
  %v1584 = vrcp.pop 72.0
  %v1585 = vmul.f32 %v1569, %v1584
  %v1586 = vmul.f32 %v1583, %v1584
  %v1589 = vcombine.low %v1585, %v1586
  %v1590 = vcombine.high %v1585, %v1586
  %v1592 = vunpack.c.l.s4 1983009808
  %v1593 = vunpack.c.0.s8 %v1592
  %v1594 = vlaneseq
  %v1595 = vshrl.u32 %v1594, 7
  %v1596 = vsub.s32 %v1593, %v1595
  %v1597 = vrot.slane %v1589, %v1596
  %v1599 = vunpack.c.l.s4 1983009808
  %v1600 = vunpack.c.0.s8 %v1599
  %v1601 = vlaneseq
  %v1602 = vshrl.u32 %v1601, 7
  %v1603 = vsub.s32 %v1600, %v1602
  %v1604 = vrot.slane %v1590, %v1603
  %v1605 = vcombine.high %v1597, %v1597
  %v1606 = vcombine.high %v1604, %v1604
  %v1611 = vsub.f32 %v1304, %v1597
  %v1612 = vsub.f32 %v1305, %v1605
  %v1613 = vsub.f32 %v1306, %v1604
  %v1614 = vsub.f32 %v1307, %v1606
  %v1615 = vsub.f32 %v1308, %v1597
  %v1616 = vsub.f32 %v1309, %v1605
  %v1617 = vsub.f32 %v1310, %v1604
  %v1618 = vsub.f32 %v1311, %v1606
  %v1619 = vsub.f32 %v1312, %v1597
  %v1620 = vsub.f32 %v1313, %v1605
  %v1621 = vsub.f32 %v1314, %v1604
  %v1622 = vsub.f32 %v1315, %v1606
  %v1623 = vsub.f32 %v1316, %v1597
  %v1624 = vsub.f32 %v1317, %v1605
  %v1625 = vsub.f32 %v1318, %v1604
  %v1626 = vsub.f32 %v1319, %v1606
  %v1627 = vsub.f32 %v1320, %v1597
  %v1628 = vsub.f32 %v1321, %v1605
  %v1629 = vsub.f32 %v1322, %v1604
  %v1630 = vsub.f32 %v1323, %v1606
  %v1631 = vsub.f32 %v1324, %v1597
  %v1632 = vsub.f32 %v1325, %v1605
  %v1633 = vsub.f32 %v1326, %v1604
  %v1634 = vsub.f32 %v1327, %v1606
  %v1635 = vsub.f32 %v1328, %v1597
  %v1636 = vsub.f32 %v1329, %v1605
  %v1637 = vsub.f32 %v1330, %v1604
  %v1638 = vsub.f32 %v1331, %v1606
  %v1639 = vsub.f32 %v1332, %v1597
  %v1640 = vsub.f32 %v1333, %v1605
  %v1641 = vsub.f32 %v1334, %v1604
  %v1642 = vsub.f32 %v1335, %v1606
  %v1643 = vsub.f32 %v1336, %v1597
  %v1644 = vsub.f32 %v1337, %v1605
  %v1645 = vsub.f32 %v1338, %v1604
  %v1646 = vsub.f32 %v1339, %v1606
  %v1647 = vmul.f32 %v1611, %v1611
  %v1648 = vmul.f32 %v1612, %v1612
  %v1649 = vmul.f32 %v1613, %v1613
  %v1650 = vmul.f32 %v1614, %v1614
  %v1651 = vmul.f32 %v1615, %v1615
  %v1652 = vmul.f32 %v1616, %v1616
  %v1653 = vmul.f32 %v1617, %v1617
  %v1654 = vmul.f32 %v1618, %v1618
  %v1655 = vmul.f32 %v1619, %v1619
  %v1656 = vmul.f32 %v1620, %v1620
  %v1657 = vmul.f32 %v1621, %v1621
  %v1658 = vmul.f32 %v1622, %v1622
  %v1659 = vmul.f32 %v1623, %v1623
  %v1660 = vmul.f32 %v1624, %v1624
  %v1661 = vmul.f32 %v1625, %v1625
  %v1662 = vmul.f32 %v1626, %v1626
  %v1663 = vmul.f32 %v1627, %v1627
  %v1664 = vmul.f32 %v1628, %v1628
  %v1665 = vmul.f32 %v1629, %v1629
  %v1666 = vmul.f32 %v1630, %v1630
  %v1667 = vmul.f32 %v1631, %v1631
  %v1668 = vmul.f32 %v1632, %v1632
  %v1669 = vmul.f32 %v1633, %v1633
  %v1670 = vmul.f32 %v1634, %v1634
  %v1671 = vmul.f32 %v1635, %v1635
  %v1672 = vmul.f32 %v1636, %v1636
  %v1673 = vmul.f32 %v1637, %v1637
  %v1674 = vmul.f32 %v1638, %v1638
  %v1675 = vmul.f32 %v1639, %v1639
  %v1676 = vmul.f32 %v1640, %v1640
  %v1677 = vmul.f32 %v1641, %v1641
  %v1678 = vmul.f32 %v1642, %v1642
  %v1679 = vmul.f32 %v1643, %v1643
  %v1680 = vmul.f32 %v1644, %v1644
  %v1681 = vmul.f32 %v1645, %v1645
  %v1682 = vmul.f32 %v1646, %v1646
  %v1719 = vcombine.low %v1647, %v1648
  %v1720 = vcombine.low %v1649, %v1650
  %v1722 = vunpack.c.l.s4 1983009808
  %v1723 = vunpack.c.0.s8 %v1722
  %v1724 = vlaneseq
  %v1725 = vshrl.u32 %v1724, 7
  %v1726 = vsub.s32 %v1723, %v1725
  %v1727 = vrot.slane %v1719, %v1726
  %v1729 = vunpack.c.l.s4 1983009808
  %v1730 = vunpack.c.0.s8 %v1729
  %v1731 = vlaneseq
  %v1732 = vshrl.u32 %v1731, 7
  %v1733 = vsub.s32 %v1730, %v1732
  %v1734 = vrot.slane %v1720, %v1733
  %v1735 = vcombine.low %v1727, %v1734
  %v1736 = vcombine.high %v1727, %v1734
  %v1737 = vcombine.low %v1651, %v1652
  %v1738 = vcombine.low %v1653, %v1654
  %v1740 = vunpack.c.l.s4 1983009808
  %v1741 = vunpack.c.0.s8 %v1740
  %v1742 = vlaneseq
  %v1743 = vshrl.u32 %v1742, 7
  %v1744 = vsub.s32 %v1741, %v1743
  %v1745 = vrot.slane %v1737, %v1744
  %v1747 = vunpack.c.l.s4 1983009808
  %v1748 = vunpack.c.0.s8 %v1747
  %v1749 = vlaneseq
  %v1750 = vshrl.u32 %v1749, 7
  %v1751 = vsub.s32 %v1748, %v1750
  %v1752 = vrot.slane %v1738, %v1751
  %v1753 = vcombine.low %v1745, %v1752
  %v1754 = vcombine.high %v1745, %v1752
  %v1755 = vcombine.low %v1655, %v1656
  %v1756 = vcombine.low %v1657, %v1658
  %v1758 = vunpack.c.l.s4 1983009808
  %v1759 = vunpack.c.0.s8 %v1758
  %v1760 = vlaneseq
  %v1761 = vshrl.u32 %v1760, 7
  %v1762 = vsub.s32 %v1759, %v1761
  %v1763 = vrot.slane %v1755, %v1762
  %v1765 = vunpack.c.l.s4 1983009808
  %v1766 = vunpack.c.0.s8 %v1765
  %v1767 = vlaneseq
  %v1768 = vshrl.u32 %v1767, 7
  %v1769 = vsub.s32 %v1766, %v1768
  %v1770 = vrot.slane %v1756, %v1769
  %v1771 = vcombine.low %v1763, %v1770
  %v1772 = vcombine.high %v1763, %v1770
  %v1773 = vcombine.low %v1659, %v1660
  %v1774 = vcombine.low %v1661, %v1662
  %v1776 = vunpack.c.l.s4 1983009808
  %v1777 = vunpack.c.0.s8 %v1776
  %v1778 = vlaneseq
  %v1779 = vshrl.u32 %v1778, 7
  %v1780 = vsub.s32 %v1777, %v1779
  %v1781 = vrot.slane %v1773, %v1780
  %v1783 = vunpack.c.l.s4 1983009808
  %v1784 = vunpack.c.0.s8 %v1783
  %v1785 = vlaneseq
  %v1786 = vshrl.u32 %v1785, 7
  %v1787 = vsub.s32 %v1784, %v1786
  %v1788 = vrot.slane %v1774, %v1787
  %v1789 = vcombine.low %v1781, %v1788
  %v1790 = vcombine.high %v1781, %v1788
  %v1791 = vcombine.low %v1663, %v1664
  %v1792 = vcombine.low %v1665, %v1666
  %v1794 = vunpack.c.l.s4 1983009808
  %v1795 = vunpack.c.0.s8 %v1794
  %v1796 = vlaneseq
  %v1797 = vshrl.u32 %v1796, 7
  %v1798 = vsub.s32 %v1795, %v1797
  %v1799 = vrot.slane %v1791, %v1798
  %v1801 = vunpack.c.l.s4 1983009808
  %v1802 = vunpack.c.0.s8 %v1801
  %v1803 = vlaneseq
  %v1804 = vshrl.u32 %v1803, 7
  %v1805 = vsub.s32 %v1802, %v1804
  %v1806 = vrot.slane %v1792, %v1805
  %v1807 = vcombine.low %v1799, %v1806
  %v1808 = vcombine.high %v1799, %v1806
  %v1809 = vcombine.low %v1667, %v1668
  %v1810 = vcombine.low %v1669, %v1670
  %v1812 = vunpack.c.l.s4 1983009808
  %v1813 = vunpack.c.0.s8 %v1812
  %v1814 = vlaneseq
  %v1815 = vshrl.u32 %v1814, 7
  %v1816 = vsub.s32 %v1813, %v1815
  %v1817 = vrot.slane %v1809, %v1816
  %v1819 = vunpack.c.l.s4 1983009808
  %v1820 = vunpack.c.0.s8 %v1819
  %v1821 = vlaneseq
  %v1822 = vshrl.u32 %v1821, 7
  %v1823 = vsub.s32 %v1820, %v1822
  %v1824 = vrot.slane %v1810, %v1823
  %v1825 = vcombine.low %v1817, %v1824
  %v1826 = vcombine.high %v1817, %v1824
  %v1827 = vcombine.low %v1671, %v1672
  %v1828 = vcombine.low %v1673, %v1674
  %v1830 = vunpack.c.l.s4 1983009808
  %v1831 = vunpack.c.0.s8 %v1830
  %v1832 = vlaneseq
  %v1833 = vshrl.u32 %v1832, 7
  %v1834 = vsub.s32 %v1831, %v1833
  %v1835 = vrot.slane %v1827, %v1834
  %v1837 = vunpack.c.l.s4 1983009808
  %v1838 = vunpack.c.0.s8 %v1837
  %v1839 = vlaneseq
  %v1840 = vshrl.u32 %v1839, 7
  %v1841 = vsub.s32 %v1838, %v1840
  %v1842 = vrot.slane %v1828, %v1841
  %v1843 = vcombine.low %v1835, %v1842
  %v1844 = vcombine.high %v1835, %v1842
  %v1845 = vcombine.low %v1675, %v1676
  %v1846 = vcombine.low %v1677, %v1678
  %v1848 = vunpack.c.l.s4 1983009808
  %v1849 = vunpack.c.0.s8 %v1848
  %v1850 = vlaneseq
  %v1851 = vshrl.u32 %v1850, 7
  %v1852 = vsub.s32 %v1849, %v1851
  %v1853 = vrot.slane %v1845, %v1852
  %v1855 = vunpack.c.l.s4 1983009808
  %v1856 = vunpack.c.0.s8 %v1855
  %v1857 = vlaneseq
  %v1858 = vshrl.u32 %v1857, 7
  %v1859 = vsub.s32 %v1856, %v1858
  %v1860 = vrot.slane %v1846, %v1859
  %v1861 = vcombine.low %v1853, %v1860
  %v1862 = vcombine.high %v1853, %v1860
  %v1863 = vcombine.low %v1679, %v1680
  %v1864 = vcombine.low %v1681, %v1682
  %v1866 = vunpack.c.l.s4 1983009808
  %v1867 = vunpack.c.0.s8 %v1866
  %v1868 = vlaneseq
  %v1869 = vshrl.u32 %v1868, 7
  %v1870 = vsub.s32 %v1867, %v1869
  %v1871 = vrot.slane %v1863, %v1870
  %v1873 = vunpack.c.l.s4 1983009808
  %v1874 = vunpack.c.0.s8 %v1873
  %v1875 = vlaneseq
  %v1876 = vshrl.u32 %v1875, 7
  %v1877 = vsub.s32 %v1874, %v1876
  %v1878 = vrot.slane %v1864, %v1877
  %v1879 = vcombine.low %v1871, %v1878
  %v1880 = vcombine.high %v1871, %v1878
  %v1899 = vadd.f32 %v1735, %v1753
  %v1900 = vadd.f32 %v1899, %v1771
  %v1901 = vadd.f32 %v1900, %v1789
  %v1902 = vadd.f32 %v1901, %v1807
  %v1903 = vadd.f32 %v1902, %v1825
  %v1904 = vadd.f32 %v1903, %v1843
  %v1905 = vadd.f32 %v1904, %v1861
  %v1906 = vadd.f32 %v1905, %v1879
  %v1907 = vrot.slane %v1906, 4
  %v1908 = vadd.f32 %v1906, %v1907
  %v1909 = vrot.slane %v1908, 2
  %v1910 = vadd.f32 %v1908, %v1909
  %v1911 = vrot.slane %v1910, 1
  %v1912 = vadd.f32 %v1910, %v1911
  %v1913 = vadd.f32 %v1736, %v1754
  %v1914 = vadd.f32 %v1913, %v1772
  %v1915 = vadd.f32 %v1914, %v1790
  %v1916 = vadd.f32 %v1915, %v1808
  %v1917 = vadd.f32 %v1916, %v1826
  %v1918 = vadd.f32 %v1917, %v1844
  %v1919 = vadd.f32 %v1918, %v1862
  %v1920 = vadd.f32 %v1919, %v1880
  %v1921 = vrot.slane %v1920, 4
  %v1922 = vadd.f32 %v1920, %v1921
  %v1923 = vrot.slane %v1922, 2
  %v1924 = vadd.f32 %v1922, %v1923
  %v1925 = vrot.slane %v1924, 1
  %v1926 = vadd.f32 %v1924, %v1925
  %v1927 = vmul.f32 %v1912, %v1584
  %v1928 = vmul.f32 %v1926, %v1584
  %v1929 = vadd.f32 %v1927, 1e-05
  %v1930 = vadd.f32 %v1928, 1e-05
  %v1931 = vrsqrt.pop %v1929
  %v1932 = vrsqrt.pop %v1930
  %v1935 = vcombine.low %v1931, %v1932
  %v1936 = vcombine.high %v1931, %v1932
  %v1938 = vunpack.c.l.s4 1983009808
  %v1939 = vunpack.c.0.s8 %v1938
  %v1940 = vlaneseq
  %v1941 = vshrl.u32 %v1940, 7
  %v1942 = vsub.s32 %v1939, %v1941
  %v1943 = vrot.slane %v1935, %v1942
  %v1945 = vunpack.c.l.s4 1983009808
  %v1946 = vunpack.c.0.s8 %v1945
  %v1947 = vlaneseq
  %v1948 = vshrl.u32 %v1947, 7
  %v1949 = vsub.s32 %v1946, %v1948
  %v1950 = vrot.slane %v1936, %v1949
  %v1951 = vcombine.high %v1943, %v1943
  %v1952 = vcombine.high %v1950, %v1950
  %v1957 = vmul.f32 %v1611, %v1943
  %v1958 = vmul.f32 %v1612, %v1951
  %v1959 = vmul.f32 %v1613, %v1950
  %v1960 = vmul.f32 %v1614, %v1952
  %v1961 = vmul.f32 %v1615, %v1943
  %v1962 = vmul.f32 %v1616, %v1951
  %v1963 = vmul.f32 %v1617, %v1950
  %v1964 = vmul.f32 %v1618, %v1952
  %v1965 = vmul.f32 %v1619, %v1943
  %v1966 = vmul.f32 %v1620, %v1951
  %v1967 = vmul.f32 %v1621, %v1950
  %v1968 = vmul.f32 %v1622, %v1952
  %v1969 = vmul.f32 %v1623, %v1943
  %v1970 = vmul.f32 %v1624, %v1951
  %v1971 = vmul.f32 %v1625, %v1950
  %v1972 = vmul.f32 %v1626, %v1952
  %v1973 = vmul.f32 %v1627, %v1943
  %v1974 = vmul.f32 %v1628, %v1951
  %v1975 = vmul.f32 %v1629, %v1950
  %v1976 = vmul.f32 %v1630, %v1952
  %v1977 = vmul.f32 %v1631, %v1943
  %v1978 = vmul.f32 %v1632, %v1951
  %v1979 = vmul.f32 %v1633, %v1950
  %v1980 = vmul.f32 %v1634, %v1952
  %v1981 = vmul.f32 %v1635, %v1943
  %v1982 = vmul.f32 %v1636, %v1951
  %v1983 = vmul.f32 %v1637, %v1950
  %v1984 = vmul.f32 %v1638, %v1952
  %v1985 = vmul.f32 %v1639, %v1943
  %v1986 = vmul.f32 %v1640, %v1951
  %v1987 = vmul.f32 %v1641, %v1950
  %v1988 = vmul.f32 %v1642, %v1952
  %v1989 = vmul.f32 %v1643, %v1943
  %v1990 = vmul.f32 %v1644, %v1951
  %v1991 = vmul.f32 %v1645, %v1950
  %v1992 = vmul.f32 %v1646, %v1952
  %v1993 = vld [vmem:[%s3] sm:$0x3]
  %v1995 = vlaneseq
  %v1996 = vshrl.u32 %v1995, 7
  %v1997 = vsub.s32 0, %v1996
  %v1998 = vrot.slane %v1993, %v1997
  %v1999 = vlaneseq
  %v2000 = vshrl.u32 %v1999, 7
  %v2001 = vsub.s32 1, %v2000
  %v2002 = vrot.slane %v1993, %v2001
  %v2003 = vcombine.low %v1998, %v2002
  %v2004 = vcombine.high %v1998, %v2002
  %v2006 = vunpack.c.l.s4 1983009808
  %v2007 = vunpack.c.0.s8 %v2006
  %v2008 = vlaneseq
  %v2009 = vshrl.u32 %v2008, 7
  %v2010 = vsub.s32 %v2007, %v2009
  %v2011 = vrot.slane %v2003, %v2010
  %v2013 = vunpack.c.l.s4 1983009808
  %v2014 = vunpack.c.0.s8 %v2013
  %v2015 = vlaneseq
  %v2016 = vshrl.u32 %v2015, 7
  %v2017 = vsub.s32 %v2014, %v2016
  %v2018 = vrot.slane %v2004, %v2017
  %v2019 = vcombine.high %v2011, %v2011
  %v2020 = vcombine.high %v2018, %v2018
  %v2025 = vmul.f32 %v1957, %v2011
  %v2026 = vmul.f32 %v1958, %v2019
  %v2027 = vmul.f32 %v1959, %v2018
  %v2028 = vmul.f32 %v1960, %v2020
  %v2029 = vmul.f32 %v1961, %v2011
  %v2030 = vmul.f32 %v1962, %v2019
  %v2031 = vmul.f32 %v1963, %v2018
  %v2032 = vmul.f32 %v1964, %v2020
  %v2033 = vmul.f32 %v1965, %v2011
  %v2034 = vmul.f32 %v1966, %v2019
  %v2035 = vmul.f32 %v1967, %v2018
  %v2036 = vmul.f32 %v1968, %v2020
  %v2037 = vmul.f32 %v1969, %v2011
  %v2038 = vmul.f32 %v1970, %v2019
  %v2039 = vmul.f32 %v1971, %v2018
  %v2040 = vmul.f32 %v1972, %v2020
  %v2041 = vmul.f32 %v1973, %v2011
  %v2042 = vmul.f32 %v1974, %v2019
  %v2043 = vmul.f32 %v1975, %v2018
  %v2044 = vmul.f32 %v1976, %v2020
  %v2045 = vmul.f32 %v1977, %v2011
  %v2046 = vmul.f32 %v1978, %v2019
  %v2047 = vmul.f32 %v1979, %v2018
  %v2048 = vmul.f32 %v1980, %v2020
  %v2049 = vmul.f32 %v1981, %v2011
  %v2050 = vmul.f32 %v1982, %v2019
  %v2051 = vmul.f32 %v1983, %v2018
  %v2052 = vmul.f32 %v1984, %v2020
  %v2053 = vmul.f32 %v1985, %v2011
  %v2054 = vmul.f32 %v1986, %v2019
  %v2055 = vmul.f32 %v1987, %v2018
  %v2056 = vmul.f32 %v1988, %v2020
  %v2057 = vmul.f32 %v1989, %v2011
  %v2058 = vmul.f32 %v1990, %v2019
  %v2059 = vmul.f32 %v1991, %v2018
  %v2060 = vmul.f32 %v1992, %v2020
  %v2061 = vld [vmem:[%s4] sm:$0x3]
  %v2063 = vlaneseq
  %v2064 = vshrl.u32 %v2063, 7
  %v2065 = vsub.s32 0, %v2064
  %v2066 = vrot.slane %v2061, %v2065
  %v2067 = vlaneseq
  %v2068 = vshrl.u32 %v2067, 7
  %v2069 = vsub.s32 1, %v2068
  %v2070 = vrot.slane %v2061, %v2069
  %v2071 = vcombine.low %v2066, %v2070
  %v2072 = vcombine.high %v2066, %v2070
  %v2074 = vunpack.c.l.s4 1983009808
  %v2075 = vunpack.c.0.s8 %v2074
  %v2076 = vlaneseq
  %v2077 = vshrl.u32 %v2076, 7
  %v2078 = vsub.s32 %v2075, %v2077
  %v2079 = vrot.slane %v2071, %v2078
  %v2081 = vunpack.c.l.s4 1983009808
  %v2082 = vunpack.c.0.s8 %v2081
  %v2083 = vlaneseq
  %v2084 = vshrl.u32 %v2083, 7
  %v2085 = vsub.s32 %v2082, %v2084
  %v2086 = vrot.slane %v2072, %v2085
  %v2087 = vcombine.high %v2079, %v2079
  %v2088 = vcombine.high %v2086, %v2086
  %v2093 = vadd.f32 %v2025, %v2079
  %v2094 = vadd.f32 %v2026, %v2087
  %v2095 = vadd.f32 %v2027, %v2086
  %v2096 = vadd.f32 %v2028, %v2088
  %v2097 = vadd.f32 %v2029, %v2079
  %v2098 = vadd.f32 %v2030, %v2087
  %v2099 = vadd.f32 %v2031, %v2086
  %v2100 = vadd.f32 %v2032, %v2088
  %v2101 = vadd.f32 %v2033, %v2079
  %v2102 = vadd.f32 %v2034, %v2087
  %v2103 = vadd.f32 %v2035, %v2086
  %v2104 = vadd.f32 %v2036, %v2088
  %v2105 = vadd.f32 %v2037, %v2079
  %v2106 = vadd.f32 %v2038, %v2087
  %v2107 = vadd.f32 %v2039, %v2086
  %v2108 = vadd.f32 %v2040, %v2088
  %v2109 = vadd.f32 %v2041, %v2079
  %v2110 = vadd.f32 %v2042, %v2087
  %v2111 = vadd.f32 %v2043, %v2086
  %v2112 = vadd.f32 %v2044, %v2088
  %v2113 = vadd.f32 %v2045, %v2079
  %v2114 = vadd.f32 %v2046, %v2087
  %v2115 = vadd.f32 %v2047, %v2086
  %v2116 = vadd.f32 %v2048, %v2088
  %v2117 = vadd.f32 %v2049, %v2079
  %v2118 = vadd.f32 %v2050, %v2087
  %v2119 = vadd.f32 %v2051, %v2086
  %v2120 = vadd.f32 %v2052, %v2088
  %v2121 = vadd.f32 %v2053, %v2079
  %v2122 = vadd.f32 %v2054, %v2087
  %v2123 = vadd.f32 %v2055, %v2086
  %v2124 = vadd.f32 %v2056, %v2088
  %v2125 = vadd.f32 %v2057, %v2079
  %v2126 = vadd.f32 %v2058, %v2087
  %v2127 = vadd.f32 %v2059, %v2086
  %v2128 = vadd.f32 %v2060, %v2088
  %v2129 = vcombine.low %v32, %v33
  %v2130 = vcombine.high %v32, %v33
  %v2132 = vunpack.c.l.s4 1983009808
  %v2133 = vunpack.c.0.s8 %v2132
  %v2134 = vlaneseq
  %v2135 = vshrl.u32 %v2134, 7
  %v2136 = vsub.s32 %v2133, %v2135
  %v2137 = vrot.slane %v2129, %v2136
  %v2139 = vunpack.c.l.s4 1983009808
  %v2140 = vunpack.c.0.s8 %v2139
  %v2141 = vlaneseq
  %v2142 = vshrl.u32 %v2141, 7
  %v2143 = vsub.s32 %v2140, %v2142
  %v2144 = vrot.slane %v2130, %v2143
  %v2145 = vcombine.high %v2137, %v2137
  %v2146 = vcombine.low %v34, %v35
  %v2147 = vcombine.high %v34, %v35
  %v2149 = vunpack.c.l.s4 1983009808
  %v2150 = vunpack.c.0.s8 %v2149
  %v2151 = vlaneseq
  %v2152 = vshrl.u32 %v2151, 7
  %v2153 = vsub.s32 %v2150, %v2152
  %v2154 = vrot.slane %v2146, %v2153
  %v2156 = vunpack.c.l.s4 1983009808
  %v2157 = vunpack.c.0.s8 %v2156
  %v2158 = vlaneseq
  %v2159 = vshrl.u32 %v2158, 7
  %v2160 = vsub.s32 %v2157, %v2159
  %v2161 = vrot.slane %v2147, %v2160
  %v2162 = vcombine.high %v2154, %v2154
  %v2163 = vcombine.low %v36, %v37
  %v2164 = vcombine.high %v36, %v37
  %v2166 = vunpack.c.l.s4 1983009808
  %v2167 = vunpack.c.0.s8 %v2166
  %v2168 = vlaneseq
  %v2169 = vshrl.u32 %v2168, 7
  %v2170 = vsub.s32 %v2167, %v2169
  %v2171 = vrot.slane %v2163, %v2170
  %v2173 = vunpack.c.l.s4 1983009808
  %v2174 = vunpack.c.0.s8 %v2173
  %v2175 = vlaneseq
  %v2176 = vshrl.u32 %v2175, 7
  %v2177 = vsub.s32 %v2174, %v2176
  %v2178 = vrot.slane %v2164, %v2177
  %v2179 = vcombine.high %v2171, %v2171
  %v2180 = vcombine.low %v38, %v39
  %v2181 = vcombine.high %v38, %v39
  %v2183 = vunpack.c.l.s4 1983009808
  %v2184 = vunpack.c.0.s8 %v2183
  %v2185 = vlaneseq
  %v2186 = vshrl.u32 %v2185, 7
  %v2187 = vsub.s32 %v2184, %v2186
  %v2188 = vrot.slane %v2180, %v2187
  %v2190 = vunpack.c.l.s4 1983009808
  %v2191 = vunpack.c.0.s8 %v2190
  %v2192 = vlaneseq
  %v2193 = vshrl.u32 %v2192, 7
  %v2194 = vsub.s32 %v2191, %v2193
  %v2195 = vrot.slane %v2181, %v2194
  %v2196 = vcombine.high %v2188, %v2188
  %v2197 = vcombine.low %v40, %v41
  %v2198 = vcombine.high %v40, %v41
  %v2200 = vunpack.c.l.s4 1983009808
  %v2201 = vunpack.c.0.s8 %v2200
  %v2202 = vlaneseq
  %v2203 = vshrl.u32 %v2202, 7
  %v2204 = vsub.s32 %v2201, %v2203
  %v2205 = vrot.slane %v2197, %v2204
  %v2207 = vunpack.c.l.s4 1983009808
  %v2208 = vunpack.c.0.s8 %v2207
  %v2209 = vlaneseq
  %v2210 = vshrl.u32 %v2209, 7
  %v2211 = vsub.s32 %v2208, %v2210
  %v2212 = vrot.slane %v2198, %v2211
  %v2213 = vcombine.high %v2205, %v2205
  %v2214 = vcombine.low %v42, %v43
  %v2215 = vcombine.high %v42, %v43
  %v2217 = vunpack.c.l.s4 1983009808
  %v2218 = vunpack.c.0.s8 %v2217
  %v2219 = vlaneseq
  %v2220 = vshrl.u32 %v2219, 7
  %v2221 = vsub.s32 %v2218, %v2220
  %v2222 = vrot.slane %v2214, %v2221
  %v2224 = vunpack.c.l.s4 1983009808
  %v2225 = vunpack.c.0.s8 %v2224
  %v2226 = vlaneseq
  %v2227 = vshrl.u32 %v2226, 7
  %v2228 = vsub.s32 %v2225, %v2227
  %v2229 = vrot.slane %v2215, %v2228
  %v2230 = vcombine.high %v2222, %v2222
  %v2231 = vcombine.low %v44, %v45
  %v2232 = vcombine.high %v44, %v45
  %v2234 = vunpack.c.l.s4 1983009808
  %v2235 = vunpack.c.0.s8 %v2234
  %v2236 = vlaneseq
  %v2237 = vshrl.u32 %v2236, 7
  %v2238 = vsub.s32 %v2235, %v2237
  %v2239 = vrot.slane %v2231, %v2238
  %v2241 = vunpack.c.l.s4 1983009808
  %v2242 = vunpack.c.0.s8 %v2241
  %v2243 = vlaneseq
  %v2244 = vshrl.u32 %v2243, 7
  %v2245 = vsub.s32 %v2242, %v2244
  %v2246 = vrot.slane %v2232, %v2245
  %v2247 = vcombine.high %v2239, %v2239
  %v2248 = vcombine.low %v46, %v47
  %v2249 = vcombine.high %v46, %v47
  %v2251 = vunpack.c.l.s4 1983009808
  %v2252 = vunpack.c.0.s8 %v2251
  %v2253 = vlaneseq
  %v2254 = vshrl.u32 %v2253, 7
  %v2255 = vsub.s32 %v2252, %v2254
  %v2256 = vrot.slane %v2248, %v2255
  %v2258 = vunpack.c.l.s4 1983009808
  %v2259 = vunpack.c.0.s8 %v2258
  %v2260 = vlaneseq
  %v2261 = vshrl.u32 %v2260, 7
  %v2262 = vsub.s32 %v2259, %v2261
  %v2263 = vrot.slane %v2249, %v2262
  %v2264 = vcombine.high %v2256, %v2256
  %v2265 = vcombine.low %v48, %v49
  %v2266 = vcombine.high %v48, %v49
  %v2268 = vunpack.c.l.s4 1983009808
  %v2269 = vunpack.c.0.s8 %v2268
  %v2270 = vlaneseq
  %v2271 = vshrl.u32 %v2270, 7
  %v2272 = vsub.s32 %v2269, %v2271
  %v2273 = vrot.slane %v2265, %v2272
  %v2275 = vunpack.c.l.s4 1983009808
  %v2276 = vunpack.c.0.s8 %v2275
  %v2277 = vlaneseq
  %v2278 = vshrl.u32 %v2277, 7
  %v2279 = vsub.s32 %v2276, %v2278
  %v2280 = vrot.slane %v2266, %v2279
  %v2281 = vcombine.high %v2273, %v2273
  %v2282 = vcombine.low %v50, %v51
  %v2283 = vcombine.high %v50, %v51
  %v2285 = vunpack.c.l.s4 1983009808
  %v2286 = vunpack.c.0.s8 %v2285
  %v2287 = vlaneseq
  %v2288 = vshrl.u32 %v2287, 7
  %v2289 = vsub.s32 %v2286, %v2288
  %v2290 = vrot.slane %v2282, %v2289
  %v2292 = vunpack.c.l.s4 1983009808
  %v2293 = vunpack.c.0.s8 %v2292
  %v2294 = vlaneseq
  %v2295 = vshrl.u32 %v2294, 7
  %v2296 = vsub.s32 %v2293, %v2295
  %v2297 = vrot.slane %v2283, %v2296
  %v2298 = vcombine.high %v2290, %v2290
  %v2299 = vcombine.low %v52, %v53
  %v2300 = vcombine.high %v52, %v53
  %v2302 = vunpack.c.l.s4 1983009808
  %v2303 = vunpack.c.0.s8 %v2302
  %v2304 = vlaneseq
  %v2305 = vshrl.u32 %v2304, 7
  %v2306 = vsub.s32 %v2303, %v2305
  %v2307 = vrot.slane %v2299, %v2306
  %v2309 = vunpack.c.l.s4 1983009808
  %v2310 = vunpack.c.0.s8 %v2309
  %v2311 = vlaneseq
  %v2312 = vshrl.u32 %v2311, 7
  %v2313 = vsub.s32 %v2310, %v2312
  %v2314 = vrot.slane %v2300, %v2313
  %v2315 = vcombine.high %v2307, %v2307
  %v2316 = vcombine.low %v54, %v55
  %v2317 = vcombine.high %v54, %v55
  %v2319 = vunpack.c.l.s4 1983009808
  %v2320 = vunpack.c.0.s8 %v2319
  %v2321 = vlaneseq
  %v2322 = vshrl.u32 %v2321, 7
  %v2323 = vsub.s32 %v2320, %v2322
  %v2324 = vrot.slane %v2316, %v2323
  %v2326 = vunpack.c.l.s4 1983009808
  %v2327 = vunpack.c.0.s8 %v2326
  %v2328 = vlaneseq
  %v2329 = vshrl.u32 %v2328, 7
  %v2330 = vsub.s32 %v2327, %v2329
  %v2331 = vrot.slane %v2317, %v2330
  %v2332 = vcombine.high %v2324, %v2324
  %v2369 = vadd.f32 %v2093, %v2137
  %v2370 = vadd.f32 %v2094, %v2145
  %v2371 = vadd.f32 %v2095, %v2144
  %v2372 = vadd.f32 %v2096, %v2154
  %v2373 = vadd.f32 %v2097, %v2162
  %v2374 = vadd.f32 %v2098, %v2161
  %v2375 = vadd.f32 %v2099, %v2171
  %v2376 = vadd.f32 %v2100, %v2179
  %v2377 = vadd.f32 %v2101, %v2178
  %v2378 = vadd.f32 %v2102, %v2188
  %v2379 = vadd.f32 %v2103, %v2196
  %v2380 = vadd.f32 %v2104, %v2195
  %v2381 = vadd.f32 %v2105, %v2205
  %v2382 = vadd.f32 %v2106, %v2213
  %v2383 = vadd.f32 %v2107, %v2212
  %v2384 = vadd.f32 %v2108, %v2222
  %v2385 = vadd.f32 %v2109, %v2230
  %v2386 = vadd.f32 %v2110, %v2229
  %v2387 = vadd.f32 %v2111, %v2239
  %v2388 = vadd.f32 %v2112, %v2247
  %v2389 = vadd.f32 %v2113, %v2246
  %v2390 = vadd.f32 %v2114, %v2256
  %v2391 = vadd.f32 %v2115, %v2264
  %v2392 = vadd.f32 %v2116, %v2263
  %v2393 = vadd.f32 %v2117, %v2273
  %v2394 = vadd.f32 %v2118, %v2281
  %v2395 = vadd.f32 %v2119, %v2280
  %v2396 = vadd.f32 %v2120, %v2290
  %v2397 = vadd.f32 %v2121, %v2298
  %v2398 = vadd.f32 %v2122, %v2297
  %v2399 = vadd.f32 %v2123, %v2307
  %v2400 = vadd.f32 %v2124, %v2315
  %v2401 = vadd.f32 %v2125, %v2314
  %v2402 = vadd.f32 %v2126, %v2324
  %v2403 = vadd.f32 %v2127, %v2332
  %v2404 = vadd.f32 %v2128, %v2331
  %v2441 = vcombine.low %v2369, %v2370
  %v2442 = vcombine.low %v2371, %v2372
  %v2444 = vunpack.c.l.s4 1983009808
  %v2445 = vunpack.c.0.s8 %v2444
  %v2446 = vlaneseq
  %v2447 = vshrl.u32 %v2446, 7
  %v2448 = vsub.s32 %v2445, %v2447
  %v2449 = vrot.slane %v2441, %v2448
  %v2451 = vunpack.c.l.s4 1983009808
  %v2452 = vunpack.c.0.s8 %v2451
  %v2453 = vlaneseq
  %v2454 = vshrl.u32 %v2453, 7
  %v2455 = vsub.s32 %v2452, %v2454
  %v2456 = vrot.slane %v2442, %v2455
  %v2457 = vcombine.low %v2449, %v2456
  %v2458 = vcombine.high %v2449, %v2456
  %v2459 = vcombine.low %v2373, %v2374
  %v2460 = vcombine.low %v2375, %v2376
  %v2462 = vunpack.c.l.s4 1983009808
  %v2463 = vunpack.c.0.s8 %v2462
  %v2464 = vlaneseq
  %v2465 = vshrl.u32 %v2464, 7
  %v2466 = vsub.s32 %v2463, %v2465
  %v2467 = vrot.slane %v2459, %v2466
  %v2469 = vunpack.c.l.s4 1983009808
  %v2470 = vunpack.c.0.s8 %v2469
  %v2471 = vlaneseq
  %v2472 = vshrl.u32 %v2471, 7
  %v2473 = vsub.s32 %v2470, %v2472
  %v2474 = vrot.slane %v2460, %v2473
  %v2475 = vcombine.low %v2467, %v2474
  %v2476 = vcombine.high %v2467, %v2474
  %v2477 = vcombine.low %v2377, %v2378
  %v2478 = vcombine.low %v2379, %v2380
  %v2480 = vunpack.c.l.s4 1983009808
  %v2481 = vunpack.c.0.s8 %v2480
  %v2482 = vlaneseq
  %v2483 = vshrl.u32 %v2482, 7
  %v2484 = vsub.s32 %v2481, %v2483
  %v2485 = vrot.slane %v2477, %v2484
  %v2487 = vunpack.c.l.s4 1983009808
  %v2488 = vunpack.c.0.s8 %v2487
  %v2489 = vlaneseq
  %v2490 = vshrl.u32 %v2489, 7
  %v2491 = vsub.s32 %v2488, %v2490
  %v2492 = vrot.slane %v2478, %v2491
  %v2493 = vcombine.low %v2485, %v2492
  %v2494 = vcombine.high %v2485, %v2492
  %v2495 = vcombine.low %v2381, %v2382
  %v2496 = vcombine.low %v2383, %v2384
  %v2498 = vunpack.c.l.s4 1983009808
  %v2499 = vunpack.c.0.s8 %v2498
  %v2500 = vlaneseq
  %v2501 = vshrl.u32 %v2500, 7
  %v2502 = vsub.s32 %v2499, %v2501
  %v2503 = vrot.slane %v2495, %v2502
  %v2505 = vunpack.c.l.s4 1983009808
  %v2506 = vunpack.c.0.s8 %v2505
  %v2507 = vlaneseq
  %v2508 = vshrl.u32 %v2507, 7
  %v2509 = vsub.s32 %v2506, %v2508
  %v2510 = vrot.slane %v2496, %v2509
  %v2511 = vcombine.low %v2503, %v2510
  %v2512 = vcombine.high %v2503, %v2510
  %v2513 = vcombine.low %v2385, %v2386
  %v2514 = vcombine.low %v2387, %v2388
  %v2516 = vunpack.c.l.s4 1983009808
  %v2517 = vunpack.c.0.s8 %v2516
  %v2518 = vlaneseq
  %v2519 = vshrl.u32 %v2518, 7
  %v2520 = vsub.s32 %v2517, %v2519
  %v2521 = vrot.slane %v2513, %v2520
  %v2523 = vunpack.c.l.s4 1983009808
  %v2524 = vunpack.c.0.s8 %v2523
  %v2525 = vlaneseq
  %v2526 = vshrl.u32 %v2525, 7
  %v2527 = vsub.s32 %v2524, %v2526
  %v2528 = vrot.slane %v2514, %v2527
  %v2529 = vcombine.low %v2521, %v2528
  %v2530 = vcombine.high %v2521, %v2528
  %v2531 = vcombine.low %v2389, %v2390
  %v2532 = vcombine.low %v2391, %v2392
  %v2534 = vunpack.c.l.s4 1983009808
  %v2535 = vunpack.c.0.s8 %v2534
  %v2536 = vlaneseq
  %v2537 = vshrl.u32 %v2536, 7
  %v2538 = vsub.s32 %v2535, %v2537
  %v2539 = vrot.slane %v2531, %v2538
  %v2541 = vunpack.c.l.s4 1983009808
  %v2542 = vunpack.c.0.s8 %v2541
  %v2543 = vlaneseq
  %v2544 = vshrl.u32 %v2543, 7
  %v2545 = vsub.s32 %v2542, %v2544
  %v2546 = vrot.slane %v2532, %v2545
  %v2547 = vcombine.low %v2539, %v2546
  %v2548 = vcombine.high %v2539, %v2546
  %v2549 = vcombine.low %v2393, %v2394
  %v2550 = vcombine.low %v2395, %v2396
  %v2552 = vunpack.c.l.s4 1983009808
  %v2553 = vunpack.c.0.s8 %v2552
  %v2554 = vlaneseq
  %v2555 = vshrl.u32 %v2554, 7
  %v2556 = vsub.s32 %v2553, %v2555
  %v2557 = vrot.slane %v2549, %v2556
  %v2559 = vunpack.c.l.s4 1983009808
  %v2560 = vunpack.c.0.s8 %v2559
  %v2561 = vlaneseq
  %v2562 = vshrl.u32 %v2561, 7
  %v2563 = vsub.s32 %v2560, %v2562
  %v2564 = vrot.slane %v2550, %v2563
  %v2565 = vcombine.low %v2557, %v2564
  %v2566 = vcombine.high %v2557, %v2564
  %v2567 = vcombine.low %v2397, %v2398
  %v2568 = vcombine.low %v2399, %v2400
  %v2570 = vunpack.c.l.s4 1983009808
  %v2571 = vunpack.c.0.s8 %v2570
  %v2572 = vlaneseq
  %v2573 = vshrl.u32 %v2572, 7
  %v2574 = vsub.s32 %v2571, %v2573
  %v2575 = vrot.slane %v2567, %v2574
  %v2577 = vunpack.c.l.s4 1983009808
  %v2578 = vunpack.c.0.s8 %v2577
  %v2579 = vlaneseq
  %v2580 = vshrl.u32 %v2579, 7
  %v2581 = vsub.s32 %v2578, %v2580
  %v2582 = vrot.slane %v2568, %v2581
  %v2583 = vcombine.low %v2575, %v2582
  %v2584 = vcombine.high %v2575, %v2582
  %v2585 = vcombine.low %v2401, %v2402
  %v2586 = vcombine.low %v2403, %v2404
  %v2588 = vunpack.c.l.s4 1983009808
  %v2589 = vunpack.c.0.s8 %v2588
  %v2590 = vlaneseq
  %v2591 = vshrl.u32 %v2590, 7
  %v2592 = vsub.s32 %v2589, %v2591
  %v2593 = vrot.slane %v2585, %v2592
  %v2595 = vunpack.c.l.s4 1983009808
  %v2596 = vunpack.c.0.s8 %v2595
  %v2597 = vlaneseq
  %v2598 = vshrl.u32 %v2597, 7
  %v2599 = vsub.s32 %v2596, %v2598
  %v2600 = vrot.slane %v2586, %v2599
  %v2601 = vcombine.low %v2593, %v2600
  %v2602 = vcombine.high %v2593, %v2600
  %v2621 = vpack.c.bf16 %v2475, %v2457
  %v2622 = vpack.c.bf16 %v2476, %v2458
  %v2623 = vpack.c.bf16 %v2511, %v2493
  %v2624 = vpack.c.bf16 %v2512, %v2494
  %v2625 = vpack.c.bf16 %v2547, %v2529
  %v2626 = vpack.c.bf16 %v2548, %v2530
  %v2627 = vpack.c.bf16 %v2583, %v2565
  %v2628 = vpack.c.bf16 %v2584, %v2566
  %v2629 = vpack.c.bf16 %v2601, %v2601
  %v2630 = vpack.c.bf16 %v2602, %v2602
  %v2631 = vld [vmem:[%s5] sm:$0xff]
  %v2632 = vld [vmem:[%s5 + $0x8] sm:$0xff]
  %v2633 = vld [vmem:[%s5 + $0x10] sm:$0xff]
  %v2634 = vld [vmem:[%s5 + $0x18] sm:$0xff]
  %v2635 = vld [vmem:[%s5 + $0x20] sm:$0xff]
  %v2636 = vld [vmem:[%s5 + $0x28] sm:$0xff]
  %v2637 = vld [vmem:[%s5 + $0x30] sm:$0xff]
  %v2638 = vld [vmem:[%s5 + $0x38] sm:$0xff]
  %v2639 = vld [vmem:[%s5 + $0x40] sm:$0xff]
  %v2640 = vld [vmem:[%s5 + $0x48] sm:$0xff]
  %v2641 = vld [vmem:[%s5 + $0x50] sm:$0xff]
  %v2642 = vld [vmem:[%s5 + $0x58] sm:$0xff]
  %v2643 = vld [vmem:[%s5 + $0x60] sm:$0xff]
  %v2644 = vld [vmem:[%s5 + $0x68] sm:$0xff]
  %v2645 = vld [vmem:[%s5 + $0x70] sm:$0xff]
  %v2646 = vld [vmem:[%s5 + $0x78] sm:$0xff]
  %v2647 = vld [vmem:[%s5 + $0x80] sm:$0xff]
  %v2648 = vld [vmem:[%s5 + $0x88] sm:$0xff]
  %v2649 = vld [vmem:[%s5 + $0x90] sm:$0xff]
  %v2650 = vld [vmem:[%s5 + $0x98] sm:$0xff]
  %v2651 = vld [vmem:[%s5 + $0xa0] sm:$0xff]
  %v2652 = vld [vmem:[%s5 + $0xa8] sm:$0xff]
  %v2653 = vld [vmem:[%s5 + $0xb0] sm:$0xff]
  %v2654 = vld [vmem:[%s5 + $0xb8] sm:$0xff]
  %v2655 = vld [vmem:[%s5 + $0xc0] sm:$0xff]
  %v2656 = vld [vmem:[%s5 + $0xc8] sm:$0xff]
  %v2657 = vld [vmem:[%s5 + $0xd0] sm:$0xff]
  %v2658 = vld [vmem:[%s5 + $0xd8] sm:$0xff]
  %v2659 = vld [vmem:[%s5 + $0xe0] sm:$0xff]
  %v2660 = vld [vmem:[%s5 + $0xe8] sm:$0xff]
  %v2661 = vld [vmem:[%s5 + $0xf0] sm:$0xff]
  %v2662 = vld [vmem:[%s5 + $0xf8] sm:$0xff]
  %v2663 = vld [vmem:[%s6] sm:$0x3]
  %v2665 = vlaneseq
  %v2666 = vshrl.u32 %v2665, 7
  %v2667 = vsub.s32 0, %v2666
  %v2668 = vrot.slane %v2663, %v2667
  %v2669 = vlaneseq
  %v2670 = vshrl.u32 %v2669, 7
  %v2671 = vsub.s32 1, %v2670
  %v2672 = vrot.slane %v2663, %v2671
  %v2707 = vunpack.c.l.b16 %v2631
  %v2708 = vunpack.c.h.b16 %v2631
  %v2709 = vunpack.c.l.b16 %v2632
  %v2710 = vunpack.c.h.b16 %v2632
  %v2711 = vunpack.c.l.b16 %v2633
  %v2712 = vunpack.c.h.b16 %v2633
  %v2713 = vunpack.c.l.b16 %v2634
  %v2714 = vunpack.c.h.b16 %v2634
  %v2715 = vunpack.c.l.b16 %v2635
  %v2716 = vunpack.c.h.b16 %v2635
  %v2717 = vunpack.c.l.b16 %v2636
  %v2718 = vunpack.c.h.b16 %v2636
  %v2719 = vunpack.c.l.b16 %v2637
  %v2720 = vunpack.c.h.b16 %v2637
  %v2721 = vunpack.c.l.b16 %v2638
  %v2722 = vunpack.c.h.b16 %v2638
  %v2723 = vunpack.c.l.b16 %v2639
  %v2724 = vunpack.c.h.b16 %v2639
  %v2725 = vunpack.c.l.b16 %v2640
  %v2726 = vunpack.c.h.b16 %v2640
  %v2727 = vunpack.c.l.b16 %v2641
  %v2728 = vunpack.c.h.b16 %v2641
  %v2729 = vunpack.c.l.b16 %v2642
  %v2730 = vunpack.c.h.b16 %v2642
  %v2731 = vunpack.c.l.b16 %v2643
  %v2732 = vunpack.c.h.b16 %v2643
  %v2733 = vunpack.c.l.b16 %v2644
  %v2734 = vunpack.c.h.b16 %v2644
  %v2735 = vunpack.c.l.b16 %v2645
  %v2736 = vunpack.c.h.b16 %v2645
  %v2737 = vunpack.c.l.b16 %v2646
  %v2738 = vunpack.c.h.b16 %v2646
  %v2739 = vunpack.c.l.b16 %v2647
  %v2740 = vunpack.c.h.b16 %v2647
  %v2741 = vunpack.c.l.b16 %v2648
  %v2742 = vunpack.c.h.b16 %v2648
  %v2743 = vunpack.c.l.b16 %v2649
  %v2744 = vunpack.c.h.b16 %v2649
  %v2745 = vunpack.c.l.b16 %v2650
  %v2746 = vunpack.c.h.b16 %v2650
  %v2747 = vunpack.c.l.b16 %v2651
  %v2748 = vunpack.c.h.b16 %v2651
  %v2749 = vunpack.c.l.b16 %v2652
  %v2750 = vunpack.c.h.b16 %v2652
  %v2751 = vunpack.c.l.b16 %v2653
  %v2752 = vunpack.c.h.b16 %v2653
  %v2753 = vunpack.c.l.b16 %v2654
  %v2754 = vunpack.c.h.b16 %v2654
  %v2755 = vunpack.c.l.b16 %v2655
  %v2756 = vunpack.c.h.b16 %v2655
  %v2757 = vunpack.c.l.b16 %v2656
  %v2758 = vunpack.c.h.b16 %v2656
  %v2759 = vunpack.c.l.b16 %v2657
  %v2760 = vunpack.c.h.b16 %v2657
  %v2761 = vunpack.c.l.b16 %v2658
  %v2762 = vunpack.c.h.b16 %v2658
  %v2763 = vunpack.c.l.b16 %v2659
  %v2764 = vunpack.c.h.b16 %v2659
  %v2765 = vunpack.c.l.b16 %v2660
  %v2766 = vunpack.c.h.b16 %v2660
  %v2767 = vunpack.c.l.b16 %v2661
  %v2768 = vunpack.c.h.b16 %v2661
  %v2769 = vunpack.c.l.b16 %v2662
  %v2770 = vunpack.c.h.b16 %v2662
  %v2771 = vpack.c.b16 %v2709, %v2707
  %v2772 = vpack.c.b16 %v2710, %v2708
  %v2773 = vpack.c.b16 %v2713, %v2711
  %v2774 = vpack.c.b16 %v2714, %v2712
  %v2775 = vpack.c.b16 %v2717, %v2715
  %v2776 = vpack.c.b16 %v2718, %v2716
  %v2777 = vpack.c.b16 %v2721, %v2719
  %v2778 = vpack.c.b16 %v2722, %v2720
  %v2779 = vpack.c.b16 %v2725, %v2723
  %v2780 = vpack.c.b16 %v2726, %v2724
  %v2781 = vpack.c.b16 %v2729, %v2727
  %v2782 = vpack.c.b16 %v2730, %v2728
  %v2783 = vpack.c.b16 %v2733, %v2731
  %v2784 = vpack.c.b16 %v2734, %v2732
  %v2785 = vpack.c.b16 %v2737, %v2735
  %v2786 = vpack.c.b16 %v2738, %v2736
  %v2787 = vpack.c.b16 %v2741, %v2739
  %v2788 = vpack.c.b16 %v2742, %v2740
  %v2789 = vpack.c.b16 %v2745, %v2743
  %v2790 = vpack.c.b16 %v2746, %v2744
  %v2791 = vpack.c.b16 %v2749, %v2747
  %v2792 = vpack.c.b16 %v2750, %v2748
  %v2793 = vpack.c.b16 %v2753, %v2751
  %v2794 = vpack.c.b16 %v2754, %v2752
  %v2795 = vpack.c.b16 %v2757, %v2755
  %v2796 = vpack.c.b16 %v2758, %v2756
  %v2797 = vpack.c.b16 %v2761, %v2759
  %v2798 = vpack.c.b16 %v2762, %v2760
  %v2799 = vpack.c.b16 %v2765, %v2763
  %v2800 = vpack.c.b16 %v2766, %v2764
  %v2801 = vpack.c.b16 %v2769, %v2767
  %v2802 = vpack.c.b16 %v2770, %v2768
  %2835 = vmatprep.subr.bf16.mxu0 %v2786
  %2836 = vmatpush1.bf16.msra.mxu0 %v2785
  %2837 = vmatprep.subr.bf16.mxu0 %v2784
  %2838 = vmatpush1.bf16.msra.mxu0 %v2783
  %2839 = vmatprep.subr.bf16.mxu0 %v2782
  %2840 = vmatpush1.bf16.msra.mxu0 %v2781
  %2841 = vmatprep.subr.bf16.mxu0 %v2780
  %2842 = vmatpush1.bf16.msra.mxu0 %v2779
  %2843 = vmatprep.subr.bf16.mxu0 %v2778
  %2844 = vmatpush1.bf16.msra.mxu0 %v2777
  %2845 = vmatprep.subr.bf16.mxu0 %v2776
  %2846 = vmatpush1.bf16.msra.mxu0 %v2775
  %2847 = vmatprep.subr.bf16.mxu0 %v2774
  %2848 = vmatpush1.bf16.msra.mxu0 %v2773
  %2849 = vmatprep.subr.bf16.mxu0 %v2772
  %2850 = vmatpush1.bf16.msra.mxu0 %v2771
  %2851 = vmatprep.subr.bf16.mxu0 %v2802
  %2852 = vmatpush2.bf16.msra.mxu0 %v2801
  %2853 = vmatprep.subr.bf16.mxu0 %v2800
  %2854 = vmatpush2.bf16.msra.mxu0 %v2799
  %2855 = vmatprep.subr.bf16.mxu0 %v2798
  %2856 = vmatpush2.bf16.msra.mxu0 %v2797
  %2857 = vmatprep.subr.bf16.mxu0 %v2796
  %2858 = vmatpush2.bf16.msra.mxu0 %v2795
  %2859 = vmatprep.subr.bf16.mxu0 %v2794
  %2860 = vmatpush2.bf16.msra.mxu0 %v2793
  %2861 = vmatprep.subr.bf16.mxu0 %v2792
  %2862 = vmatpush2.bf16.msra.mxu0 %v2791
  %2863 = vmatprep.subr.bf16.mxu0 %v2790
  %2864 = vmatpush2.bf16.msra.mxu0 %v2789
  %2865 = vmatprep.subr.bf16.mxu0 %v2788
  %2866 = vmatpush2.bf16.msra.mxu0 %v2787
  %2867 = vmatprep.mubr.bf16.mxu0 %v2622
  %2868 = vmatmul.mubr.bf16.gmra.mxu0 %v2621
  %v2869 = vpop.f32.mrf.mxu0
  %v2870 = vadd.f32 %v2668, %v2869
  %v2871 = vpop.f32.mrf.mxu0
  %v2872 = vadd.f32 %v2672, %v2871
  %v2873 = vpop.f32.mrf.mxu0
  %v2874 = vadd.f32 %v2668, %v2873
  %v2875 = vpop.f32.mrf.mxu0
  %v2876 = vadd.f32 %v2672, %v2875
  %2877 = vmatprep.mubr.bf16.mxu0 %v2624
  %2878 = vmatmul.mubr.bf16.gmra.mxu0 %v2623
  %v2879 = vpop.f32.mrf.mxu0
  %v2880 = vadd.f32 %v2668, %v2879
  %v2881 = vpop.f32.mrf.mxu0
  %v2882 = vadd.f32 %v2672, %v2881
  %v2883 = vpop.f32.mrf.mxu0
  %v2884 = vadd.f32 %v2668, %v2883
  %v2885 = vpop.f32.mrf.mxu0
  %v2886 = vadd.f32 %v2672, %v2885
  %2887 = vmatprep.mubr.bf16.mxu0 %v2626
  %2888 = vmatmul.mubr.bf16.gmra.mxu0 %v2625
  %v2889 = vpop.f32.mrf.mxu0
  %v2890 = vadd.f32 %v2668, %v2889
  %v2891 = vpop.f32.mrf.mxu0
  %v2892 = vadd.f32 %v2672, %v2891
  %v2893 = vpop.f32.mrf.mxu0
  %v2894 = vadd.f32 %v2668, %v2893
  %v2895 = vpop.f32.mrf.mxu0
  %v2896 = vadd.f32 %v2672, %v2895
  %2897 = vmatprep.mubr.bf16.mxu0 %v2628
  %2898 = vmatmul.mubr.bf16.gmra.mxu0 %v2627
  %v2899 = vpop.f32.mrf.mxu0
  %v2900 = vadd.f32 %v2668, %v2899
  %v2901 = vpop.f32.mrf.mxu0
  %v2902 = vadd.f32 %v2672, %v2901
  %v2903 = vpop.f32.mrf.mxu0
  %v2904 = vadd.f32 %v2668, %v2903
  %v2905 = vpop.f32.mrf.mxu0
  %v2906 = vadd.f32 %v2672, %v2905
  %2907 = vmatprep.mubr.bf16.mxu0 %v2630
  %2908 = vmatmul.mubr.bf16.gmra.mxu0 %v2629
  %v2909 = vpop.f32.mrf.mxu0
  %v2910 = vadd.f32 %v2668, %v2909
  %v2911 = vpop.f32.mrf.mxu0
  %v2912 = vadd.f32 %v2672, %v2911
  %v2913 = vpop.f32.mrf.mxu0
  %v2914 = vpop.f32.mrf.mxu0
  %2915 = vdwg.mxu0
  %v2916 = vmul.f32 %v2870, 0.5
  %v2917 = vmul.f32 %v2872, 0.5
  %v2918 = vmul.f32 %v2874, 0.5
  %v2919 = vmul.f32 %v2876, 0.5
  %v2920 = vmul.f32 %v2880, 0.5
  %v2921 = vmul.f32 %v2882, 0.5
  %v2922 = vmul.f32 %v2884, 0.5
  %v2923 = vmul.f32 %v2886, 0.5
  %v2924 = vmul.f32 %v2890, 0.5
  %v2925 = vmul.f32 %v2892, 0.5
  %v2926 = vmul.f32 %v2894, 0.5
  %v2927 = vmul.f32 %v2896, 0.5
  %v2928 = vmul.f32 %v2900, 0.5
  %v2929 = vmul.f32 %v2902, 0.5
  %v2930 = vmul.f32 %v2904, 0.5
  %v2931 = vmul.f32 %v2906, 0.5
  %v2932 = vmul.f32 %v2910, 0.5
  %v2933 = vmul.f32 %v2912, 0.5
  %v2934 = vmul.f32 %v2870, 0.70710677
  %v2935 = vmul.f32 %v2872, 0.70710677
  %v2936 = vmul.f32 %v2874, 0.70710677
  %v2937 = vmul.f32 %v2876, 0.70710677
  %v2938 = vmul.f32 %v2880, 0.70710677
  %v2939 = vmul.f32 %v2882, 0.70710677
  %v2940 = vmul.f32 %v2884, 0.70710677
  %v2941 = vmul.f32 %v2886, 0.70710677
  %v2942 = vmul.f32 %v2890, 0.70710677
  %v2943 = vmul.f32 %v2892, 0.70710677
  %v2944 = vmul.f32 %v2894, 0.70710677
  %v2945 = vmul.f32 %v2896, 0.70710677
  %v2946 = vmul.f32 %v2900, 0.70710677
  %v2947 = vmul.f32 %v2902, 0.70710677
  %v2948 = vmul.f32 %v2904, 0.70710677
  %v2949 = vmul.f32 %v2906, 0.70710677
  %v2950 = vmul.f32 %v2910, 0.70710677
  %v2951 = vmul.f32 %v2912, 0.70710677
  %v2952 = verf.f32.pop %v2934
  %v2953 = verf.f32.pop %v2935
  %v2954 = verf.f32.pop %v2936
  %v2955 = verf.f32.pop %v2937
  %v2956 = verf.f32.pop %v2938
  %v2957 = verf.f32.pop %v2939
  %v2958 = verf.f32.pop %v2940
  %v2959 = verf.f32.pop %v2941
  %v2960 = verf.f32.pop %v2942
  %v2961 = verf.f32.pop %v2943
  %v2962 = verf.f32.pop %v2944
  %v2963 = verf.f32.pop %v2945
  %v2964 = verf.f32.pop %v2946
  %v2965 = verf.f32.pop %v2947
  %v2966 = verf.f32.pop %v2948
  %v2967 = verf.f32.pop %v2949
  %v2968 = verf.f32.pop %v2950
  %v2969 = verf.f32.pop %v2951
  %v2970 = vadd.f32 %v2952, 1.0
  %v2971 = vadd.f32 %v2953, 1.0
  %v2972 = vadd.f32 %v2954, 1.0
  %v2973 = vadd.f32 %v2955, 1.0
  %v2974 = vadd.f32 %v2956, 1.0
  %v2975 = vadd.f32 %v2957, 1.0
  %v2976 = vadd.f32 %v2958, 1.0
  %v2977 = vadd.f32 %v2959, 1.0
  %v2978 = vadd.f32 %v2960, 1.0
  %v2979 = vadd.f32 %v2961, 1.0
  %v2980 = vadd.f32 %v2962, 1.0
  %v2981 = vadd.f32 %v2963, 1.0
  %v2982 = vadd.f32 %v2964, 1.0
  %v2983 = vadd.f32 %v2965, 1.0
  %v2984 = vadd.f32 %v2966, 1.0
  %v2985 = vadd.f32 %v2967, 1.0
  %v2986 = vadd.f32 %v2968, 1.0
  %v2987 = vadd.f32 %v2969, 1.0
  %v2988 = vmul.f32 %v2916, %v2970
  %v2989 = vmul.f32 %v2917, %v2971
  %v2990 = vmul.f32 %v2918, %v2972
  %v2991 = vmul.f32 %v2919, %v2973
  %v2992 = vmul.f32 %v2920, %v2974
  %v2993 = vmul.f32 %v2921, %v2975
  %v2994 = vmul.f32 %v2922, %v2976
  %v2995 = vmul.f32 %v2923, %v2977
  %v2996 = vmul.f32 %v2924, %v2978
  %v2997 = vmul.f32 %v2925, %v2979
  %v2998 = vmul.f32 %v2926, %v2980
  %v2999 = vmul.f32 %v2927, %v2981
  %v3000 = vmul.f32 %v2928, %v2982
  %v3001 = vmul.f32 %v2929, %v2983
  %v3002 = vmul.f32 %v2930, %v2984
  %v3003 = vmul.f32 %v2931, %v2985
  %v3004 = vmul.f32 %v2932, %v2986
  %v3005 = vmul.f32 %v2933, %v2987
  %v3006 = vmul.f32 %v2663, 0.5
  %v3007 = vmul.f32 %v2663, 0.70710677
  %v3008 = verf.f32.pop %v3007
  %v3009 = vadd.f32 %v3008, 1.0
  %v3010 = vmul.f32 %v3006, %v3009
  %v3011 = vadd.f32 %v2988, %v2990
  %v3012 = vadd.f32 %v3011, %v2992
  %v3013 = vadd.f32 %v3012, %v2994
  %v3014 = vadd.f32 %v3013, %v2996
  %v3015 = vadd.f32 %v3014, %v2998
  %v3016 = vadd.f32 %v3015, %v3000
  %v3017 = vadd.f32 %v3016, %v3002
  %v3018 = vadd.f32 %v3017, %v3004
  %v3019 = vrot.slane %v3018, 4
  %v3020 = vadd.f32 %v3018, %v3019
  %v3021 = vrot.slane %v3020, 2
  %v3022 = vadd.f32 %v3020, %v3021
  %v3023 = vrot.slane %v3022, 1
  %v3024 = vadd.f32 %v3022, %v3023
  %v3025 = vadd.f32 %v2989, %v2991
  %v3026 = vadd.f32 %v3025, %v2993
  %v3027 = vadd.f32 %v3026, %v2995
  %v3028 = vadd.f32 %v3027, %v2997
  %v3029 = vadd.f32 %v3028, %v2999
  %v3030 = vadd.f32 %v3029, %v3001
  %v3031 = vadd.f32 %v3030, %v3003
  %v3032 = vadd.f32 %v3031, %v3005
  %v3033 = vrot.slane %v3032, 4
  %v3034 = vadd.f32 %v3032, %v3033
  %v3035 = vrot.slane %v3034, 2
  %v3036 = vadd.f32 %v3034, %v3035
  %v3037 = vrot.slane %v3036, 1
  %v3038 = vadd.f32 %v3036, %v3037
  %v3039 = vmul.f32 %v3010, 56.0
  %v3041 = vlaneseq
  %v3042 = vshrl.u32 %v3041, 7
  %v3043 = vsub.s32 0, %v3042
  %v3044 = vrot.slane %v3039, %v3043
  %v3045 = vlaneseq
  %v3046 = vshrl.u32 %v3045, 7
  %v3047 = vsub.s32 1, %v3046
  %v3048 = vrot.slane %v3039, %v3047
  %v3051 = vadd.f32 %v3024, %v3044
  %v3052 = vadd.f32 %v3038, %v3048
  %v3053 = vrcp.pop 128.0
  %v3054 = vmul.f32 %v3051, %v3053
  %v3055 = vmul.f32 %v3052, %v3053
  %v3056 = vlaneseq
  %v3057 = vshrl.u32 %v3056, 7
  %v3058 = vsub.s32 0, %v3057
  %v3059 = vrot.slane %v3054, %v3058
  %v3060 = vlaneseq
  %v3061 = vshrl.u32 %v3060, 7
  %v3062 = vsub.s32 0, %v3061
  %v3063 = vrot.slane %v3055, %v3062
  %v3064 = vsub.f32 %v2988, %v3059
  %v3065 = vsub.f32 %v2989, %v3063
  %v3066 = vsub.f32 %v2990, %v3059
  %v3067 = vsub.f32 %v2991, %v3063
  %v3068 = vsub.f32 %v2992, %v3059
  %v3069 = vsub.f32 %v2993, %v3063
  %v3070 = vsub.f32 %v2994, %v3059
  %v3071 = vsub.f32 %v2995, %v3063
  %v3072 = vsub.f32 %v2996, %v3059
  %v3073 = vsub.f32 %v2997, %v3063
  %v3074 = vsub.f32 %v2998, %v3059
  %v3075 = vsub.f32 %v2999, %v3063
  %v3076 = vsub.f32 %v3000, %v3059
  %v3077 = vsub.f32 %v3001, %v3063
  %v3078 = vsub.f32 %v3002, %v3059
  %v3079 = vsub.f32 %v3003, %v3063
  %v3080 = vsub.f32 %v3004, %v3059
  %v3081 = vsub.f32 %v3005, %v3063
  %v3084 = vcombine.low %v3054, %v3055
  %v3086 = vunpack.c.l.s4 1966171168
  %v3087 = vunpack.c.0.s8 %v3086
  %v3088 = vlaneseq
  %v3089 = vshrl.u32 %v3088, 7
  %v3090 = vsub.s32 %v3087, %v3089
  %v3091 = vrot.slane %v3084, %v3090
  %v3093 = vunpack.c.l.s4 1966171168
  %v3094 = vunpack.c.0.s8 %v3093
  %v3095 = vlaneseq
  %v3096 = vshrl.u32 %v3095, 7
  %v3097 = vsub.s32 %v3094, %v3096
  %v3098 = vrot.slane %v3091, %v3097
  %v3100 = vsub.f32 %v3010, %v3098
  %v3101 = vmul.f32 %v3064, %v3064
  %v3102 = vmul.f32 %v3065, %v3065
  %v3103 = vmul.f32 %v3066, %v3066
  %v3104 = vmul.f32 %v3067, %v3067
  %v3105 = vmul.f32 %v3068, %v3068
  %v3106 = vmul.f32 %v3069, %v3069
  %v3107 = vmul.f32 %v3070, %v3070
  %v3108 = vmul.f32 %v3071, %v3071
  %v3109 = vmul.f32 %v3072, %v3072
  %v3110 = vmul.f32 %v3073, %v3073
  %v3111 = vmul.f32 %v3074, %v3074
  %v3112 = vmul.f32 %v3075, %v3075
  %v3113 = vmul.f32 %v3076, %v3076
  %v3114 = vmul.f32 %v3077, %v3077
  %v3115 = vmul.f32 %v3078, %v3078
  %v3116 = vmul.f32 %v3079, %v3079
  %v3117 = vmul.f32 %v3080, %v3080
  %v3118 = vmul.f32 %v3081, %v3081
  %v3119 = vadd.f32 %v3101, %v3103
  %v3120 = vadd.f32 %v3119, %v3105
  %v3121 = vadd.f32 %v3120, %v3107
  %v3122 = vadd.f32 %v3121, %v3109
  %v3123 = vadd.f32 %v3122, %v3111
  %v3124 = vadd.f32 %v3123, %v3113
  %v3125 = vadd.f32 %v3124, %v3115
  %v3126 = vadd.f32 %v3125, %v3117
  %v3127 = vrot.slane %v3126, 4
  %v3128 = vadd.f32 %v3126, %v3127
  %v3129 = vrot.slane %v3128, 2
  %v3130 = vadd.f32 %v3128, %v3129
  %v3131 = vrot.slane %v3130, 1
  %v3132 = vadd.f32 %v3130, %v3131
  %v3133 = vadd.f32 %v3102, %v3104
  %v3134 = vadd.f32 %v3133, %v3106
  %v3135 = vadd.f32 %v3134, %v3108
  %v3136 = vadd.f32 %v3135, %v3110
  %v3137 = vadd.f32 %v3136, %v3112
  %v3138 = vadd.f32 %v3137, %v3114
  %v3139 = vadd.f32 %v3138, %v3116
  %v3140 = vadd.f32 %v3139, %v3118
  %v3141 = vrot.slane %v3140, 4
  %v3142 = vadd.f32 %v3140, %v3141
  %v3143 = vrot.slane %v3142, 2
  %v3144 = vadd.f32 %v3142, %v3143
  %v3145 = vrot.slane %v3144, 1
  %v3146 = vadd.f32 %v3144, %v3145
  %v3147 = vmul.f32 %v3100, %v3100
  %v3148 = vmul.f32 %v3147, 56.0
  %v3150 = vlaneseq
  %v3151 = vshrl.u32 %v3150, 7
  %v3152 = vsub.s32 0, %v3151
  %v3153 = vrot.slane %v3148, %v3152
  %v3154 = vlaneseq
  %v3155 = vshrl.u32 %v3154, 7
  %v3156 = vsub.s32 1, %v3155
  %v3157 = vrot.slane %v3148, %v3156
  %v3160 = vadd.f32 %v3132, %v3153
  %v3161 = vadd.f32 %v3146, %v3157
  %v3162 = vmul.f32 %v3160, %v3053
  %v3163 = vmul.f32 %v3161, %v3053
  %v3164 = vadd.f32 %v3162, 1e-05
  %v3165 = vadd.f32 %v3163, 1e-05
  %v3166 = vrsqrt.pop %v3164
  %v3167 = vrsqrt.pop %v3165
  %v3168 = vlaneseq
  %v3169 = vshrl.u32 %v3168, 7
  %v3170 = vsub.s32 0, %v3169
  %v3171 = vrot.slane %v3166, %v3170
  %v3172 = vlaneseq
  %v3173 = vshrl.u32 %v3172, 7
  %v3174 = vsub.s32 0, %v3173
  %v3175 = vrot.slane %v3167, %v3174
  %v3176 = vmul.f32 %v3064, %v3171
  %v3177 = vmul.f32 %v3065, %v3175
  %v3178 = vmul.f32 %v3066, %v3171
  %v3179 = vmul.f32 %v3067, %v3175
  %v3180 = vmul.f32 %v3068, %v3171
  %v3181 = vmul.f32 %v3069, %v3175
  %v3182 = vmul.f32 %v3070, %v3171
  %v3183 = vmul.f32 %v3071, %v3175
  %v3184 = vmul.f32 %v3072, %v3171
  %v3185 = vmul.f32 %v3073, %v3175
  %v3186 = vmul.f32 %v3074, %v3171
  %v3187 = vmul.f32 %v3075, %v3175
  %v3188 = vmul.f32 %v3076, %v3171
  %v3189 = vmul.f32 %v3077, %v3175
  %v3190 = vmul.f32 %v3078, %v3171
  %v3191 = vmul.f32 %v3079, %v3175
  %v3192 = vmul.f32 %v3080, %v3171
  %v3193 = vmul.f32 %v3081, %v3175
  %v3194 = vld [vmem:[%s7] sm:$0x3]
  %v3196 = vlaneseq
  %v3197 = vshrl.u32 %v3196, 7
  %v3198 = vsub.s32 0, %v3197
  %v3199 = vrot.slane %v3194, %v3198
  %v3200 = vlaneseq
  %v3201 = vshrl.u32 %v3200, 7
  %v3202 = vsub.s32 1, %v3201
  %v3203 = vrot.slane %v3194, %v3202
  %v3206 = vmul.f32 %v3176, %v3199
  %v3207 = vmul.f32 %v3177, %v3203
  %v3208 = vmul.f32 %v3178, %v3199
  %v3209 = vmul.f32 %v3179, %v3203
  %v3210 = vmul.f32 %v3180, %v3199
  %v3211 = vmul.f32 %v3181, %v3203
  %v3212 = vmul.f32 %v3182, %v3199
  %v3213 = vmul.f32 %v3183, %v3203
  %v3214 = vmul.f32 %v3184, %v3199
  %v3215 = vmul.f32 %v3185, %v3203
  %v3216 = vmul.f32 %v3186, %v3199
  %v3217 = vmul.f32 %v3187, %v3203
  %v3218 = vmul.f32 %v3188, %v3199
  %v3219 = vmul.f32 %v3189, %v3203
  %v3220 = vmul.f32 %v3190, %v3199
  %v3221 = vmul.f32 %v3191, %v3203
  %v3222 = vmul.f32 %v3192, %v3199
  %v3223 = vmul.f32 %v3193, %v3203
  %v3224 = vld [vmem:[%s8] sm:$0x3]
  %v3226 = vlaneseq
  %v3227 = vshrl.u32 %v3226, 7
  %v3228 = vsub.s32 0, %v3227
  %v3229 = vrot.slane %v3224, %v3228
  %v3230 = vlaneseq
  %v3231 = vshrl.u32 %v3230, 7
  %v3232 = vsub.s32 1, %v3231
  %v3233 = vrot.slane %v3224, %v3232
  %v3236 = vadd.f32 %v3206, %v3229
  %v3237 = vadd.f32 %v3207, %v3233
  %v3238 = vadd.f32 %v3208, %v3229
  %v3239 = vadd.f32 %v3209, %v3233
  %v3240 = vadd.f32 %v3210, %v3229
  %v3241 = vadd.f32 %v3211, %v3233
  %v3242 = vadd.f32 %v3212, %v3229
  %v3243 = vadd.f32 %v3213, %v3233
  %v3244 = vadd.f32 %v3214, %v3229
  %v3245 = vadd.f32 %v3215, %v3233
  %v3246 = vadd.f32 %v3216, %v3229
  %v3247 = vadd.f32 %v3217, %v3233
  %v3248 = vadd.f32 %v3218, %v3229
  %v3249 = vadd.f32 %v3219, %v3233
  %v3250 = vadd.f32 %v3220, %v3229
  %v3251 = vadd.f32 %v3221, %v3233
  %v3252 = vadd.f32 %v3222, %v3229
  %v3253 = vadd.f32 %v3223, %v3233
  %v3272 = vcombine.low %v3236, %v3237
  %v3273 = vcombine.high %v3236, %v3237
  %v3275 = vunpack.c.l.s4 1983009808
  %v3276 = vunpack.c.0.s8 %v3275
  %v3277 = vlaneseq
  %v3278 = vshrl.u32 %v3277, 7
  %v3279 = vsub.s32 %v3276, %v3278
  %v3280 = vrot.slane %v3272, %v3279
  %v3282 = vunpack.c.l.s4 1983009808
  %v3283 = vunpack.c.0.s8 %v3282
  %v3284 = vlaneseq
  %v3285 = vshrl.u32 %v3284, 7
  %v3286 = vsub.s32 %v3283, %v3285
  %v3287 = vrot.slane %v3273, %v3286
  %v3288 = vcombine.high %v3280, %v3280
  %v3289 = vcombine.high %v3287, %v3287
  %v3290 = vcombine.low %v3238, %v3239
  %v3291 = vcombine.high %v3238, %v3239
  %v3293 = vunpack.c.l.s4 1983009808
  %v3294 = vunpack.c.0.s8 %v3293
  %v3295 = vlaneseq
  %v3296 = vshrl.u32 %v3295, 7
  %v3297 = vsub.s32 %v3294, %v3296
  %v3298 = vrot.slane %v3290, %v3297
  %v3300 = vunpack.c.l.s4 1983009808
  %v3301 = vunpack.c.0.s8 %v3300
  %v3302 = vlaneseq
  %v3303 = vshrl.u32 %v3302, 7
  %v3304 = vsub.s32 %v3301, %v3303
  %v3305 = vrot.slane %v3291, %v3304
  %v3306 = vcombine.high %v3298, %v3298
  %v3307 = vcombine.high %v3305, %v3305
  %v3308 = vcombine.low %v3240, %v3241
  %v3309 = vcombine.high %v3240, %v3241
  %v3311 = vunpack.c.l.s4 1983009808
  %v3312 = vunpack.c.0.s8 %v3311
  %v3313 = vlaneseq
  %v3314 = vshrl.u32 %v3313, 7
  %v3315 = vsub.s32 %v3312, %v3314
  %v3316 = vrot.slane %v3308, %v3315
  %v3318 = vunpack.c.l.s4 1983009808
  %v3319 = vunpack.c.0.s8 %v3318
  %v3320 = vlaneseq
  %v3321 = vshrl.u32 %v3320, 7
  %v3322 = vsub.s32 %v3319, %v3321
  %v3323 = vrot.slane %v3309, %v3322
  %v3324 = vcombine.high %v3316, %v3316
  %v3325 = vcombine.high %v3323, %v3323
  %v3326 = vcombine.low %v3242, %v3243
  %v3327 = vcombine.high %v3242, %v3243
  %v3329 = vunpack.c.l.s4 1983009808
  %v3330 = vunpack.c.0.s8 %v3329
  %v3331 = vlaneseq
  %v3332 = vshrl.u32 %v3331, 7
  %v3333 = vsub.s32 %v3330, %v3332
  %v3334 = vrot.slane %v3326, %v3333
  %v3336 = vunpack.c.l.s4 1983009808
  %v3337 = vunpack.c.0.s8 %v3336
  %v3338 = vlaneseq
  %v3339 = vshrl.u32 %v3338, 7
  %v3340 = vsub.s32 %v3337, %v3339
  %v3341 = vrot.slane %v3327, %v3340
  %v3342 = vcombine.high %v3334, %v3334
  %v3343 = vcombine.high %v3341, %v3341
  %v3344 = vcombine.low %v3244, %v3245
  %v3345 = vcombine.high %v3244, %v3245
  %v3347 = vunpack.c.l.s4 1983009808
  %v3348 = vunpack.c.0.s8 %v3347
  %v3349 = vlaneseq
  %v3350 = vshrl.u32 %v3349, 7
  %v3351 = vsub.s32 %v3348, %v3350
  %v3352 = vrot.slane %v3344, %v3351
  %v3354 = vunpack.c.l.s4 1983009808
  %v3355 = vunpack.c.0.s8 %v3354
  %v3356 = vlaneseq
  %v3357 = vshrl.u32 %v3356, 7
  %v3358 = vsub.s32 %v3355, %v3357
  %v3359 = vrot.slane %v3345, %v3358
  %v3360 = vcombine.high %v3352, %v3352
  %v3361 = vcombine.high %v3359, %v3359
  %v3362 = vcombine.low %v3246, %v3247
  %v3363 = vcombine.high %v3246, %v3247
  %v3365 = vunpack.c.l.s4 1983009808
  %v3366 = vunpack.c.0.s8 %v3365
  %v3367 = vlaneseq
  %v3368 = vshrl.u32 %v3367, 7
  %v3369 = vsub.s32 %v3366, %v3368
  %v3370 = vrot.slane %v3362, %v3369
  %v3372 = vunpack.c.l.s4 1983009808
  %v3373 = vunpack.c.0.s8 %v3372
  %v3374 = vlaneseq
  %v3375 = vshrl.u32 %v3374, 7
  %v3376 = vsub.s32 %v3373, %v3375
  %v3377 = vrot.slane %v3363, %v3376
  %v3378 = vcombine.high %v3370, %v3370
  %v3379 = vcombine.high %v3377, %v3377
  %v3380 = vcombine.low %v3248, %v3249
  %v3381 = vcombine.high %v3248, %v3249
  %v3383 = vunpack.c.l.s4 1983009808
  %v3384 = vunpack.c.0.s8 %v3383
  %v3385 = vlaneseq
  %v3386 = vshrl.u32 %v3385, 7
  %v3387 = vsub.s32 %v3384, %v3386
  %v3388 = vrot.slane %v3380, %v3387
  %v3390 = vunpack.c.l.s4 1983009808
  %v3391 = vunpack.c.0.s8 %v3390
  %v3392 = vlaneseq
  %v3393 = vshrl.u32 %v3392, 7
  %v3394 = vsub.s32 %v3391, %v3393
  %v3395 = vrot.slane %v3381, %v3394
  %v3396 = vcombine.high %v3388, %v3388
  %v3397 = vcombine.high %v3395, %v3395
  %v3398 = vcombine.low %v3250, %v3251
  %v3399 = vcombine.high %v3250, %v3251
  %v3401 = vunpack.c.l.s4 1983009808
  %v3402 = vunpack.c.0.s8 %v3401
  %v3403 = vlaneseq
  %v3404 = vshrl.u32 %v3403, 7
  %v3405 = vsub.s32 %v3402, %v3404
  %v3406 = vrot.slane %v3398, %v3405
  %v3408 = vunpack.c.l.s4 1983009808
  %v3409 = vunpack.c.0.s8 %v3408
  %v3410 = vlaneseq
  %v3411 = vshrl.u32 %v3410, 7
  %v3412 = vsub.s32 %v3409, %v3411
  %v3413 = vrot.slane %v3399, %v3412
  %v3414 = vcombine.high %v3406, %v3406
  %v3415 = vcombine.high %v3413, %v3413
  %v3416 = vcombine.low %v3252, %v3253
  %v3417 = vcombine.high %v3252, %v3253
  %v3419 = vunpack.c.l.s4 1983009808
  %v3420 = vunpack.c.0.s8 %v3419
  %v3421 = vlaneseq
  %v3422 = vshrl.u32 %v3421, 7
  %v3423 = vsub.s32 %v3420, %v3422
  %v3424 = vrot.slane %v3416, %v3423
  %v3426 = vunpack.c.l.s4 1983009808
  %v3427 = vunpack.c.0.s8 %v3426
  %v3428 = vlaneseq
  %v3429 = vshrl.u32 %v3428, 7
  %v3430 = vsub.s32 %v3427, %v3429
  %v3431 = vrot.slane %v3417, %v3430
  %v3432 = vcombine.high %v3424, %v3424
  %v3433 = vcombine.high %v3431, %v3431
  %v3436 = vcombine.low %v3166, %v3167
  %v3438 = vunpack.c.l.s4 1966171168
  %v3439 = vunpack.c.0.s8 %v3438
  %v3440 = vlaneseq
  %v3441 = vshrl.u32 %v3440, 7
  %v3442 = vsub.s32 %v3439, %v3441
  %v3443 = vrot.slane %v3436, %v3442
  %v3445 = vunpack.c.l.s4 1966171168
  %v3446 = vunpack.c.0.s8 %v3445
  %v3447 = vlaneseq
  %v3448 = vshrl.u32 %v3447, 7
  %v3449 = vsub.s32 %v3446, %v3448
  %v3450 = vrot.slane %v3443, %v3449
  %v3452 = vmul.f32 %v3100, %v3450
  %v3453 = vmul.f32 %v3452, %v3194
  %v3454 = vadd.f32 %v3453, %v3224
  %v3456 = vlaneseq
  %v3457 = vshrl.u32 %v3456, 7
  %v3458 = vsub.s32 0, %v3457
  %v3459 = vrot.slane %v3454, %v3458
  %v3460 = vlaneseq
  %v3461 = vshrl.u32 %v3460, 7
  %v3462 = vsub.s32 1, %v3461
  %v3463 = vrot.slane %v3454, %v3462
  %v3466 = vcombine.low %v3280, %v3288
  %v3468 = vunpack.c.l.s4 1983009808
  %v3469 = vunpack.c.0.s8 %v3468
  %v3470 = vlaneseq
  %v3471 = vshrl.u32 %v3470, 7
  %v3472 = vsub.s32 %v3469, %v3471
  %v3473 = vrot.slane %v3466, %v3472
  %v3475 = vunpack.c.l.s4 1983009808
  %v3476 = vunpack.c.0.s8 %v3475
  %v3477 = vlaneseq
  %v3478 = vshrl.u32 %v3477, 7
  %v3479 = vsub.s32 %v3476, %v3478
  %v3480 = vrot.slane %v3287, %v3479
  %v3481 = vcombine.low %v3473, %v3480
  %v3482 = vcombine.high %v3473, %v3480
  %v3483 = vcombine.low %v3289, %v3298
  %v3485 = vunpack.c.l.s4 1983009808
  %v3486 = vunpack.c.0.s8 %v3485
  %v3487 = vlaneseq
  %v3488 = vshrl.u32 %v3487, 7
  %v3489 = vsub.s32 %v3486, %v3488
  %v3490 = vrot.slane %v3483, %v3489
  %v3492 = vunpack.c.l.s4 1983009808
  %v3493 = vunpack.c.0.s8 %v3492
  %v3494 = vlaneseq
  %v3495 = vshrl.u32 %v3494, 7
  %v3496 = vsub.s32 %v3493, %v3495
  %v3497 = vrot.slane %v3306, %v3496
  %v3498 = vcombine.low %v3490, %v3497
  %v3499 = vcombine.high %v3490, %v3497
  %v3500 = vcombine.low %v3305, %v3307
  %v3502 = vunpack.c.l.s4 1983009808
  %v3503 = vunpack.c.0.s8 %v3502
  %v3504 = vlaneseq
  %v3505 = vshrl.u32 %v3504, 7
  %v3506 = vsub.s32 %v3503, %v3505
  %v3507 = vrot.slane %v3500, %v3506
  %v3509 = vunpack.c.l.s4 1983009808
  %v3510 = vunpack.c.0.s8 %v3509
  %v3511 = vlaneseq
  %v3512 = vshrl.u32 %v3511, 7
  %v3513 = vsub.s32 %v3510, %v3512
  %v3514 = vrot.slane %v3316, %v3513
  %v3515 = vcombine.low %v3507, %v3514
  %v3516 = vcombine.high %v3507, %v3514
  %v3517 = vcombine.low %v3324, %v3323
  %v3519 = vunpack.c.l.s4 1983009808
  %v3520 = vunpack.c.0.s8 %v3519
  %v3521 = vlaneseq
  %v3522 = vshrl.u32 %v3521, 7
  %v3523 = vsub.s32 %v3520, %v3522
  %v3524 = vrot.slane %v3517, %v3523
  %v3526 = vunpack.c.l.s4 1983009808
  %v3527 = vunpack.c.0.s8 %v3526
  %v3528 = vlaneseq
  %v3529 = vshrl.u32 %v3528, 7
  %v3530 = vsub.s32 %v3527, %v3529
  %v3531 = vrot.slane %v3325, %v3530
  %v3532 = vcombine.low %v3524, %v3531
  %v3533 = vcombine.high %v3524, %v3531
  %v3534 = vcombine.low %v3334, %v3342
  %v3536 = vunpack.c.l.s4 1983009808
  %v3537 = vunpack.c.0.s8 %v3536
  %v3538 = vlaneseq
  %v3539 = vshrl.u32 %v3538, 7
  %v3540 = vsub.s32 %v3537, %v3539
  %v3541 = vrot.slane %v3534, %v3540
  %v3543 = vunpack.c.l.s4 1983009808
  %v3544 = vunpack.c.0.s8 %v3543
  %v3545 = vlaneseq
  %v3546 = vshrl.u32 %v3545, 7
  %v3547 = vsub.s32 %v3544, %v3546
  %v3548 = vrot.slane %v3341, %v3547
  %v3549 = vcombine.low %v3541, %v3548
  %v3550 = vcombine.high %v3541, %v3548
  %v3551 = vcombine.low %v3343, %v3352
  %v3553 = vunpack.c.l.s4 1983009808
  %v3554 = vunpack.c.0.s8 %v3553
  %v3555 = vlaneseq
  %v3556 = vshrl.u32 %v3555, 7
  %v3557 = vsub.s32 %v3554, %v3556
  %v3558 = vrot.slane %v3551, %v3557
  %v3560 = vunpack.c.l.s4 1983009808
  %v3561 = vunpack.c.0.s8 %v3560
  %v3562 = vlaneseq
  %v3563 = vshrl.u32 %v3562, 7
  %v3564 = vsub.s32 %v3561, %v3563
  %v3565 = vrot.slane %v3360, %v3564
  %v3566 = vcombine.low %v3558, %v3565
  %v3567 = vcombine.high %v3558, %v3565
  %v3568 = vcombine.low %v3359, %v3361
  %v3570 = vunpack.c.l.s4 1983009808
  %v3571 = vunpack.c.0.s8 %v3570
  %v3572 = vlaneseq
  %v3573 = vshrl.u32 %v3572, 7
  %v3574 = vsub.s32 %v3571, %v3573
  %v3575 = vrot.slane %v3568, %v3574
  %v3577 = vunpack.c.l.s4 1983009808
  %v3578 = vunpack.c.0.s8 %v3577
  %v3579 = vlaneseq
  %v3580 = vshrl.u32 %v3579, 7
  %v3581 = vsub.s32 %v3578, %v3580
  %v3582 = vrot.slane %v3370, %v3581
  %v3583 = vcombine.low %v3575, %v3582
  %v3584 = vcombine.high %v3575, %v3582
  %v3585 = vcombine.low %v3378, %v3377
  %v3587 = vunpack.c.l.s4 1983009808
  %v3588 = vunpack.c.0.s8 %v3587
  %v3589 = vlaneseq
  %v3590 = vshrl.u32 %v3589, 7
  %v3591 = vsub.s32 %v3588, %v3590
  %v3592 = vrot.slane %v3585, %v3591
  %v3594 = vunpack.c.l.s4 1983009808
  %v3595 = vunpack.c.0.s8 %v3594
  %v3596 = vlaneseq
  %v3597 = vshrl.u32 %v3596, 7
  %v3598 = vsub.s32 %v3595, %v3597
  %v3599 = vrot.slane %v3379, %v3598
  %v3600 = vcombine.low %v3592, %v3599
  %v3601 = vcombine.high %v3592, %v3599
  %v3602 = vcombine.low %v3388, %v3396
  %v3604 = vunpack.c.l.s4 1983009808
  %v3605 = vunpack.c.0.s8 %v3604
  %v3606 = vlaneseq
  %v3607 = vshrl.u32 %v3606, 7
  %v3608 = vsub.s32 %v3605, %v3607
  %v3609 = vrot.slane %v3602, %v3608
  %v3611 = vunpack.c.l.s4 1983009808
  %v3612 = vunpack.c.0.s8 %v3611
  %v3613 = vlaneseq
  %v3614 = vshrl.u32 %v3613, 7
  %v3615 = vsub.s32 %v3612, %v3614
  %v3616 = vrot.slane %v3395, %v3615
  %v3617 = vcombine.low %v3609, %v3616
  %v3618 = vcombine.high %v3609, %v3616
  %v3619 = vcombine.low %v3397, %v3406
  %v3621 = vunpack.c.l.s4 1983009808
  %v3622 = vunpack.c.0.s8 %v3621
  %v3623 = vlaneseq
  %v3624 = vshrl.u32 %v3623, 7
  %v3625 = vsub.s32 %v3622, %v3624
  %v3626 = vrot.slane %v3619, %v3625
  %v3628 = vunpack.c.l.s4 1983009808
  %v3629 = vunpack.c.0.s8 %v3628
  %v3630 = vlaneseq
  %v3631 = vshrl.u32 %v3630, 7
  %v3632 = vsub.s32 %v3629, %v3631
  %v3633 = vrot.slane %v3414, %v3632
  %v3634 = vcombine.low %v3626, %v3633
  %v3635 = vcombine.high %v3626, %v3633
  %v3636 = vcombine.low %v3413, %v3415
  %v3638 = vunpack.c.l.s4 1983009808
  %v3639 = vunpack.c.0.s8 %v3638
  %v3640 = vlaneseq
  %v3641 = vshrl.u32 %v3640, 7
  %v3642 = vsub.s32 %v3639, %v3641
  %v3643 = vrot.slane %v3636, %v3642
  %v3645 = vunpack.c.l.s4 1983009808
  %v3646 = vunpack.c.0.s8 %v3645
  %v3647 = vlaneseq
  %v3648 = vshrl.u32 %v3647, 7
  %v3649 = vsub.s32 %v3646, %v3648
  %v3650 = vrot.slane %v3424, %v3649
  %v3651 = vcombine.low %v3643, %v3650
  %v3652 = vcombine.high %v3643, %v3650
  %v3653 = vcombine.low %v3432, %v3431
  %v3655 = vunpack.c.l.s4 1983009808
  %v3656 = vunpack.c.0.s8 %v3655
  %v3657 = vlaneseq
  %v3658 = vshrl.u32 %v3657, 7
  %v3659 = vsub.s32 %v3656, %v3658
  %v3660 = vrot.slane %v3653, %v3659
  %v3662 = vunpack.c.l.s4 1983009808
  %v3663 = vunpack.c.0.s8 %v3662
  %v3664 = vlaneseq
  %v3665 = vshrl.u32 %v3664, 7
  %v3666 = vsub.s32 %v3663, %v3665
  %v3667 = vrot.slane %v3433, %v3666
  %v3668 = vcombine.low %v3660, %v3667
  %v3669 = vcombine.high %v3660, %v3667
  %v3670 = vrot.slane %v3481, 7
  %v3671 = vrot.slane %v3482, 7
  %v3672 = vrot.slane %v3498, 7
  %v3673 = vrot.slane %v3499, 7
  %v3674 = vrot.slane %v3515, 7
  %v3675 = vrot.slane %v3516, 7
  %v3676 = vrot.slane %v3532, 7
  %v3677 = vrot.slane %v3533, 7
  %v3678 = vrot.slane %v3549, 7
  %v3679 = vrot.slane %v3550, 7
  %v3680 = vrot.slane %v3566, 7
  %v3681 = vrot.slane %v3567, 7
  %v3682 = vrot.slane %v3583, 7
  %v3683 = vrot.slane %v3584, 7
  %v3684 = vrot.slane %v3600, 7
  %v3685 = vrot.slane %v3601, 7
  %v3686 = vrot.slane %v3617, 7
  %v3687 = vrot.slane %v3618, 7
  %v3688 = vrot.slane %v3634, 7
  %v3689 = vrot.slane %v3635, 7
  %v3690 = vrot.slane %v3651, 7
  %v3691 = vrot.slane %v3652, 7
  %v3692 = vrot.slane %v3668, 7
  %v3693 = vrot.slane %v3669, 7
  %v3718 = vsel %vm128, %v3459, %v3670
  %v3719 = vsel %vm128, %v3463, %v3671
  %v3720 = vsel %vm128, %v3459, %v3672
  %v3721 = vsel %vm128, %v3463, %v3673
  %v3722 = vsel %vm128, %v3459, %v3674
  %v3723 = vsel %vm128, %v3463, %v3675
  %v3724 = vsel %vm128, %v3459, %v3676
  %v3725 = vsel %vm128, %v3463, %v3677
  %v3726 = vsel %vm128, %v3459, %v3678
  %v3727 = vsel %vm128, %v3463, %v3679
  %v3728 = vsel %vm128, %v3459, %v3680
  %v3729 = vsel %vm128, %v3463, %v3681
  %v3730 = vsel %vm128, %v3459, %v3682
  %v3731 = vsel %vm128, %v3463, %v3683
  %v3732 = vsel %vm128, %v3459, %v3684
  %v3733 = vsel %vm128, %v3463, %v3685
  %v3734 = vsel %vm128, %v3459, %v3686
  %v3735 = vsel %vm128, %v3463, %v3687
  %v3736 = vsel %vm128, %v3459, %v3688
  %v3737 = vsel %vm128, %v3463, %v3689
  %v3738 = vsel %vm128, %v3459, %v3690
  %v3739 = vsel %vm128, %v3463, %v3691
  %v3740 = vsel %vm128, %v3459, %v3692
  %v3741 = vsel %vm128, %v3463, %v3693
  %v3742 = vsel %vm153, %v3718, %v3459
  %v3743 = vsel %vm153, %v3719, %v3463
  %v3744 = vsel %vm153, %v3720, %v3459
  %v3745 = vsel %vm153, %v3721, %v3463
  %v3746 = vsel %vm153, %v3722, %v3459
  %v3747 = vsel %vm153, %v3723, %v3463
  %v3748 = vsel %vm153, %v3724, %v3459
  %v3749 = vsel %vm153, %v3725, %v3463
  %v3750 = vsel %vm153, %v3726, %v3459
  %v3751 = vsel %vm153, %v3727, %v3463
  %v3752 = vsel %vm153, %v3728, %v3459
  %v3753 = vsel %vm153, %v3729, %v3463
  %v3754 = vsel %vm153, %v3730, %v3459
  %v3755 = vsel %vm153, %v3731, %v3463
  %v3756 = vsel %vm153, %v3732, %v3459
  %v3757 = vsel %vm153, %v3733, %v3463
  %v3758 = vsel %vm153, %v3734, %v3459
  %v3759 = vsel %vm153, %v3735, %v3463
  %v3760 = vsel %vm153, %v3736, %v3459
  %v3761 = vsel %vm153, %v3737, %v3463
  %v3762 = vsel %vm153, %v3738, %v3459
  %v3763 = vsel %vm153, %v3739, %v3463
  %v3764 = vsel %vm153, %v3740, %v3459
  %v3765 = vsel %vm153, %v3741, %v3463
  %3766 = vst [vmem:[%s9] sm:$0xff] %v3459
  %3767 = vst [vmem:[%s9 + $0x8] sm:$0xff] %v3463
  %3768 = vst [vmem:[%s9 + $0x10] sm:$0xff] %v3742
  %3769 = vst [vmem:[%s9 + $0x18] sm:$0xff] %v3743
  %3770 = vst [vmem:[%s9 + $0x20] sm:$0xff] %v3744
  %3771 = vst [vmem:[%s9 + $0x28] sm:$0xff] %v3745
  %3772 = vst [vmem:[%s9 + $0x30] sm:$0xff] %v3746
  %3773 = vst [vmem:[%s9 + $0x38] sm:$0xff] %v3747
  %3774 = vst [vmem:[%s9 + $0x40] sm:$0xff] %v3748
  %3775 = vst [vmem:[%s9 + $0x48] sm:$0xff] %v3749
  %3776 = vst [vmem:[%s9 + $0x50] sm:$0xff] %v3750
  %3777 = vst [vmem:[%s9 + $0x58] sm:$0xff] %v3751
  %3778 = vst [vmem:[%s9 + $0x60] sm:$0xff] %v3752
  %3779 = vst [vmem:[%s9 + $0x68] sm:$0xff] %v3753
  %3780 = vst [vmem:[%s9 + $0x70] sm:$0xff] %v3459
  %3781 = vst [vmem:[%s9 + $0x78] sm:$0xff] %v3463
  %3782 = vst [vmem:[%s9 + $0x80] sm:$0xff] %v3459
  %3783 = vst [vmem:[%s9 + $0x88] sm:$0xff] %v3463
  %3784 = vst [vmem:[%s9 + $0x90] sm:$0xff] %v3754
  %3785 = vst [vmem:[%s9 + $0x98] sm:$0xff] %v3755
  %3786 = vst [vmem:[%s9 + $0xa0] sm:$0xff] %v3756
  %3787 = vst [vmem:[%s9 + $0xa8] sm:$0xff] %v3757
  %3788 = vst [vmem:[%s9 + $0xb0] sm:$0xff] %v3758
  %3789 = vst [vmem:[%s9 + $0xb8] sm:$0xff] %v3759
  %3790 = vst [vmem:[%s9 + $0xc0] sm:$0xff] %v3760
  %3791 = vst [vmem:[%s9 + $0xc8] sm:$0xff] %v3761
  %3792 = vst [vmem:[%s9 + $0xd0] sm:$0xff] %v3762
  %3793 = vst [vmem:[%s9 + $0xd8] sm:$0xff] %v3763
  %3794 = vst [vmem:[%s9 + $0xe0] sm:$0xff] %v3764
  %3795 = vst [vmem:[%s9 + $0xe8] sm:$0xff] %v3765
  %3796 = vst [vmem:[%s9 + $0xf0] sm:$0xff] %v3459
  %3797 = vst [vmem:[%s9 + $0xf8] sm:$0xff] %v3463
  // Predicated region
  $region38: #{patch_convmix_convnext_forward.6} parent=0 // pred_check
    _
  $region39: #{patch_convmix_convnext_forward.6} parent=0 // pred_check_branch
    %3799 = sbr.rel (0) target = $region41
  $region40: #{patch_convmix_convnext_forward.6} parent=0 // pred_region
    _
  $region41: #{patch_convmix_convnext_forward.6} parent=0 // pred_fallthru
    _
  // Predicated region
  $region42: #{patch_convmix_convnext_forward.6} parent=0 // pred_check
    _
  $region43: #{patch_convmix_convnext_forward.6} parent=0 // pred_check_branch
    %3801 = sbr.rel (0) target = $region45
  $region44: #{patch_convmix_convnext_forward.6} parent=0 // pred_region
    _
  $region45: #{patch_convmix_convnext_forward.6} parent=0 // pred_fallthru
    _

</llo_original>
